<compile_context>
chip_gen: v6e
topology: v6e:2x2x1
jax: 0.10.0
libtpu: 0.0.40
codegen_flags: <defaults>
</compile_context>

<pallas_src>
import functools

import jax
import jax.numpy as jnp
from jax.experimental import pallas as pl
from jax.experimental.pallas import tpu as pltpu


# ----------------------------- Pallas kernels ------------------------------ #

def _fused_conv_kernel(xu_ref, sk_ref, wa_ref, wb_ref, mask_ref,
                       out_ref, st_ref, *, wp, l_out):
    """One (n, z, dz) step: 9 shifted taps of the 3x3x3 conv for both branches.

    xu_ref : (1, in_c, 1, 1, Lin)  bf16 padded-flat plane z+dz of upsampled x
    sk_ref : (1, out_c, 1, 1, Lin) bf16 padded-flat plane z+dz of skip
    wa_ref : (1, 9, out_c, in_c)   bf16 composed (w3_first_half @ w1x1) taps, this dz
    wb_ref : (1, 9, out_c, out_c)  bf16 skip-branch taps, this dz
    mask_ref: (1, L0) f32 validity of interior positions
    out_ref: (1, out_c, 1, 1, L0)  f32 conv accumulator (revisited over dz)
    st_ref : (1, 1, out_c, 2)      f32 per-plane masked [sum, sum_sq]
    """
    dz = pl.program_id(2)
    A = xu_ref[0, :, 0, 0, :]                      # (in_c, Lin) bf16
    B = sk_ref[0, :, 0, 0, :]                      # (out_c, Lin) bf16
    in_c = A.shape[0]
    oc = B.shape[0]

    acc = jnp.zeros((out_ref.shape[1], l_out), jnp.float32)
    for dy in range(3):
        for dx in range(3):
            off = dy * wp + dx
            t = dy * 3 + dx
            a = jax.lax.slice(A, (0, off), (in_c, off + l_out))
            b = jax.lax.slice(B, (0, off), (oc, off + l_out))
            acc = acc + jnp.dot(wa_ref[0, t], a,
                                preferred_element_type=jnp.float32)
            acc = acc + jnp.dot(wb_ref[0, t], b,
                                preferred_element_type=jnp.float32)

    @pl.when(dz == 0)
    def _():
        out_ref[0, :, 0, 0, :] = acc

    @pl.when(dz > 0)
    def _():
        out_ref[0, :, 0, 0, :] = out_ref[0, :, 0, 0, :] + acc

    @pl.when(dz == pl.num_programs(2) - 1)
    def _():
        y = out_ref[0, :, 0, 0, :]                 # final conv plane (out_c, L0)
        ym = y * mask_ref[...]                     # zero out padded-border cols
        st_ref[0, 0, :, 0:1] = jnp.sum(ym, axis=-1, keepdims=True)
        st_ref[0, 0, :, 1:2] = jnp.sum(ym * y, axis=-1, keepdims=True)


def _norm_lrelu_kernel(x_ref, st_ref, o_ref, *, slope):
    """InstanceNorm (precomputed mean / inv_std) + LeakyReLU, per (n, z) plane."""
    x = x_ref[0, :, 0, 0, :]                       # (out_c, L0) f32
    mean = st_ref[0, :, 0:1]                       # (out_c, 1)
    istd = st_ref[0, :, 1:2]                       # (out_c, 1)
    y = (x - mean) * istd
    o_ref[0, :, 0, 0, :] = jnp.where(y >= 0, y, slope * y)


# ------------------------------- JAX glue ---------------------------------- #

def _upsample_trilinear(x, out_size):
    """x: (N, C, D, H, W) -> (N, C, Do, Ho, Wo); PyTorch align_corners=False."""
    # TODO(synk): fold this gather+lerp into the conv kernel via scalar-prefetched
    # source indices/weights so the upsampled tensor never round-trips HBM.
    def interp_axis(arr, axis, out_len):
        in_len = arr.shape[axis]
        scale = in_len / out_len
        dst = jnp.arange(out_len, dtype=jnp.float32)
        src = jnp.maximum((dst + 0.5) * scale - 0.5, 0.0)
        i0 = jnp.minimum(jnp.floor(src).astype(jnp.int32), in_len - 1)
        i1 = jnp.minimum(i0 + 1, in_len - 1)
        w1 = src - i0.astype(jnp.float32)
        w0 = 1.0 - w1
        a0 = jnp.take(arr, i0, axis=axis)
        a1 = jnp.take(arr, i1, axis=axis)
        bshape = [1] * arr.ndim
        bshape[axis] = out_len
        return a0 * w0.reshape(bshape) + a1 * w1.reshape(bshape)

    x = interp_axis(x, 2, out_size[0])
    x = interp_axis(x, 3, out_size[1])
    x = interp_axis(x, 4, out_size[2])
    return x


@jax.jit
def up_merge_forward(x, skip_x, w1x1, w3, *, eps=1e-5, slope=0.01):
    """x: (N, in_c, D, H, W); skip_x: (N, out_c, Ds, Hs, Ws).
    w1x1: (out_c, in_c, 1, 1, 1); w3: (out_c, 2*out_c, 3, 3, 3).
    Returns (N, out_c, Ds, Hs, Ws)."""
    N, in_c = x.shape[0], x.shape[1]
    out_c, Ds, Hs, Ws = skip_x.shape[1], skip_x.shape[2], skip_x.shape[3], skip_x.shape[4]
    Dp, Hp, Wp = Ds + 2, Hs + 2, Ws + 2
    L0 = Hp * Wp                   # conv-output flat length per plane (padded footprint)
    Lin = L0 + 3 * Wp              # input flat length (covers max tap offset 2*Wp+2)

    # 1) trilinear upsample (plain XLA glue on the channels-first layout).
    xu = _upsample_trilinear(x, (Ds, Hs, Ws))                    # (N, in_c, Ds, Hs, Ws)

    # 2) zero-pad spatially (+3 slack rows in H so every tap slice stays in
    #    range), flatten (H, W) per plane, add a dummy dim so the BlockSpec's
    #    last two dims equal the full array dims, cast to bf16 for the MXU.
    def prep(t):
        tp = jnp.pad(t, ((0, 0), (0, 0), (1, 1), (1, 4), (1, 1)))
        n_, c_, d_, h_, w_ = tp.shape
        return tp.reshape(n_, c_, d_, 1, h_ * w_).astype(jnp.bfloat16)

    xu_pf = prep(xu)                                             # (N, in_c, Dp, 1, Lin)
    sk_pf = prep(skip_x)                                         # (N, out_c, Dp, 1, Lin)

    # 3) fold the 1x1x1 conv into the first half of the 3x3x3 weights and split
    #    the channel concat into two per-dz weight banks of 9 taps each.
    w1_2d = w1x1.reshape(out_c, in_c)
    w3_a, w3_b = w3[:, :out_c], w3[:, out_c:]
    weff = jnp.einsum('ocdhw,ci->dhwoi', w3_a, w1_2d)            # (3,3,3,out_c,in_c)
    weff = weff.reshape(3, 9, out_c, in_c).astype(jnp.bfloat16)
    wsk = jnp.transpose(w3_b, (2, 3, 4, 0, 1)).reshape(3, 9, out_c, out_c)
    wsk = wsk.astype(jnp.bfloat16)

    # validity mask of the padded-footprint flat plane (interior positions).
    jj = jnp.arange(L0, dtype=jnp.int32)
    mask = (((jj // Wp) < Hs) & ((jj % Wp) < Ws)).astype(jnp.float32).reshape(1, L0)

    # 4) fused (upsample->1x1 conv, skip) -> 3x3x3 conv + per-plane norm stats.
    conv_pf, pstats = pl.pallas_call(
        functools.partial(_fused_conv_kernel, wp=Wp, l_out=L0),
        out_shape=(jax.ShapeDtypeStruct((N, out_c, Ds, 1, L0), jnp.float32),
                   jax.ShapeDtypeStruct((N, Ds, out_c, 2), jnp.float32)),
        grid=(N, Ds, 3),
        in_specs=[
            pl.BlockSpec((1, in_c, 1, 1, Lin), lambda n, z, dz: (n, 0, z + dz, 0, 0)),
            pl.BlockSpec((1, out_c, 1, 1, Lin), lambda n, z, dz: (n, 0, z + dz, 0, 0)),
            pl.BlockSpec((1, 9, out_c, in_c), lambda n, z, dz: (dz, 0, 0, 0)),
            pl.BlockSpec((1, 9, out_c, out_c), lambda n, z, dz: (dz, 0, 0, 0)),
            pl.BlockSpec((1, L0), lambda n, z, dz: (0, 0)),
        ],
        out_specs=(
            pl.BlockSpec((1, out_c, 1, 1, L0), lambda n, z, dz: (n, 0, z, 0, 0)),
            pl.BlockSpec((1, 1, out_c, 2), lambda n, z, dz: (n, z, 0, 0)),
        ),
        compiler_params=pltpu.CompilerParams(
            dimension_semantics=("parallel", "parallel", "arbitrary")),
    )(xu_pf, sk_pf, weff, wsk, mask)

    # 5) finish InstanceNorm stats (tiny reduction over depth planes, f32).
    cnt = float(Ds * Hs * Ws)
    mean = jnp.sum(pstats[..., 0], axis=1) / cnt                 # (N, out_c)
    var = jnp.maximum(jnp.sum(pstats[..., 1], axis=1) / cnt - mean * mean, 0.0)
    istd = jax.lax.rsqrt(var + eps)
    stats2 = jnp.stack([mean, istd], axis=-1)                    # (N, out_c, 2)

    # 6) normalize + LeakyReLU (lightweight second pass; S on lanes, tiled by z).
    norm_pf = pl.pallas_call(
        functools.partial(_norm_lrelu_kernel, slope=slope),
        out_shape=jax.ShapeDtypeStruct((N, out_c, Ds, 1, L0), jnp.float32),
        grid=(N, Ds),
        in_specs=[
            pl.BlockSpec((1, out_c, 1, 1, L0), lambda n, z: (n, 0, z, 0, 0)),
            pl.BlockSpec((1, out_c, 2), lambda n, z: (n, 0, 0)),
        ],
        out_specs=pl.BlockSpec((1, out_c, 1, 1, L0), lambda n, z: (n, 0, z, 0, 0)),
        compiler_params=pltpu.CompilerParams(
            dimension_semantics=("parallel", "parallel")),
    )(conv_pf, stats2)

    # 7) extract the valid interior of the padded footprint -> NCDHW output.
    out = norm_pf.reshape(N, out_c, Ds, Hp, Wp)[:, :, :, :Hs, :Ws]
    return out


# --------------------------------- main ------------------------------------ #

if __name__ == "__main__":
    in_c, out_c = 8, 4
    N = 2
    # low-res input and its skip connection (2x spatial everywhere)
    x_shape = (N, in_c, 4, 8, 8)
    skip_shape = (N, out_c, 8, 16, 16)

    key = jax.random.PRNGKey(0)
    k1, k2, k3, k4 = jax.random.split(key, 4)
    x = jax.random.normal(k1, x_shape, jnp.float32)
    skip_x = jax.random.normal(k2, skip_shape, jnp.float32)
    # deterministic synthetic parameters (module __init__ shapes, bias=False)
    w1x1 = 0.10 * jax.random.normal(k3, (out_c, in_c, 1, 1, 1), jnp.float32)
    w3 = 0.05 * jax.random.normal(k4, (out_c, 2 * out_c, 3, 3, 3), jnp.float32)

    out = up_merge_forward(x, skip_x, w1x1, w3)
    out = jax.block_until_ready(out)

    assert out.shape == (N, out_c, 8, 16, 16), out.shape
    assert bool(jnp.all(jnp.isfinite(out)))
    print("KERNEL_OK")
</pallas_src>

<mosaic_0001>
module attributes {stable_mosaic.version = 11 : i64} {
  func.func @_fused_conv_kernel(%arg0: i32, %arg1: i32, %arg2: i32, %arg3: memref<1x8x1x1x378xbf16, #tpu.memory_space<vmem>>, %arg4: memref<1x4x1x1x378xbf16, #tpu.memory_space<vmem>>, %arg5: memref<1x9x4x8xbf16, #tpu.memory_space<vmem>>, %arg6: memref<1x9x4x4xbf16, #tpu.memory_space<vmem>>, %arg7: memref<1x324xf32, #tpu.memory_space<vmem>>, %arg8: memref<1x4x1x1x324xf32, #tpu.memory_space<vmem>>, %arg9: memref<1x1x4x2xf32, #tpu.memory_space<vmem>>) attributes {dimension_semantics = [#tpu.dimension_semantics<parallel>, #tpu.dimension_semantics<parallel>, #tpu.dimension_semantics<arbitrary>], iteration_bounds = array<i64: 2, 8, 3>, scalar_prefetch = 0 : i64, scratch_operands = 0 : i64, tpu.core_type = #tpu.core_type<tc>, window_params = [{transform_indices = @transform_0, window_bounds = array<i64: 1, 8, 1, 1, 378>}, {transform_indices = @transform_1, window_bounds = array<i64: 1, 4, 1, 1, 378>}, {transform_indices = @transform_2, window_bounds = array<i64: 1, 9, 4, 8>}, {transform_indices = @transform_3, window_bounds = array<i64: 1, 9, 4, 4>}, {pipeline_mode = #tpu.pipeline_mode<synchronous>, transform_indices = @transform_4, window_bounds = array<i64: 1, 324>}, {transform_indices = @transform_5, window_bounds = array<i64: 1, 4, 1, 1, 324>}, {transform_indices = @transform_6, window_bounds = array<i64: 1, 1, 4, 2>}]} {
    %c0 = arith.constant 0 : index
    %c0_0 = arith.constant 0 : index
    %c0_1 = arith.constant 0 : index
    %c0_2 = arith.constant 0 : index
    %c0_3 = arith.constant 0 : index
    %0 = vector.load %arg3[%c0, %c0_0, %c0_1, %c0_2, %c0_3] : memref<1x8x1x1x378xbf16, #tpu.memory_space<vmem>>, vector<1x8x1x1x378xbf16>
    %1 = vector.shape_cast %0 : vector<1x8x1x1x378xbf16> to vector<8x378xbf16>
    %c0_4 = arith.constant 0 : index
    %c0_5 = arith.constant 0 : index
    %c0_6 = arith.constant 0 : index
    %c0_7 = arith.constant 0 : index
    %c0_8 = arith.constant 0 : index
    %2 = vector.load %arg4[%c0_4, %c0_5, %c0_6, %c0_7, %c0_8] : memref<1x4x1x1x378xbf16, #tpu.memory_space<vmem>>, vector<1x4x1x1x378xbf16>
    %3 = vector.shape_cast %2 : vector<1x4x1x1x378xbf16> to vector<4x378xbf16>
    %cst = arith.constant 0.000000e+00 : f32
    %4 = vector.broadcast %cst : f32 to vector<4x324xf32>
    %5 = vector.extract_strided_slice %1 {offsets = [0, 0], sizes = [8, 324], strides = [1, 1]} : vector<8x378xbf16> to vector<8x324xbf16>
    %6 = vector.extract_strided_slice %3 {offsets = [0, 0], sizes = [4, 324], strides = [1, 1]} : vector<4x378xbf16> to vector<4x324xbf16>
    %c0_9 = arith.constant 0 : index
    %c0_10 = arith.constant 0 : index
    %c0_11 = arith.constant 0 : index
    %c0_12 = arith.constant 0 : index
    %7 = vector.load %arg5[%c0_9, %c0_10, %c0_11, %c0_12] : memref<1x9x4x8xbf16, #tpu.memory_space<vmem>>, vector<1x1x4x8xbf16>
    %8 = vector.shape_cast %7 : vector<1x1x4x8xbf16> to vector<4x8xbf16>
    %cst_13 = arith.constant dense<0.000000e+00> : vector<4x324xf32>
    %9 = tpu.matmul %8, %5, %cst_13 {dimension_numbers = #tpu.dot_dimension_numbers<[1], [0], [0], [1], [0, 0, 1, 1], [], []>} : vector<4x8xbf16>, vector<8x324xbf16>, vector<4x324xf32> -> vector<4x324xf32>
    %10 = arith.addf %4, %9 : vector<4x324xf32>
    %c0_14 = arith.constant 0 : index
    %c0_15 = arith.constant 0 : index
    %c0_16 = arith.constant 0 : index
    %c0_17 = arith.constant 0 : index
    %11 = vector.load %arg6[%c0_14, %c0_15, %c0_16, %c0_17] : memref<1x9x4x4xbf16, #tpu.memory_space<vmem>>, vector<1x1x4x4xbf16>
    %12 = vector.shape_cast %11 : vector<1x1x4x4xbf16> to vector<4x4xbf16>
    %cst_18 = arith.constant dense<0.000000e+00> : vector<4x324xf32>
    %13 = tpu.matmul %12, %6, %cst_18 {dimension_numbers = #tpu.dot_dimension_numbers<[1], [0], [0], [1], [0, 0, 1, 1], [], []>} : vector<4x4xbf16>, vector<4x324xbf16>, vector<4x324xf32> -> vector<4x324xf32>
    %14 = arith.addf %10, %13 : vector<4x324xf32>
    %15 = vector.extract_strided_slice %1 {offsets = [0, 1], sizes = [8, 324], strides = [1, 1]} : vector<8x378xbf16> to vector<8x324xbf16>
    %16 = vector.extract_strided_slice %3 {offsets = [0, 1], sizes = [4, 324], strides = [1, 1]} : vector<4x378xbf16> to vector<4x324xbf16>
    %c0_19 = arith.constant 0 : index
    %c1 = arith.constant 1 : index
    %c0_20 = arith.constant 0 : index
    %c0_21 = arith.constant 0 : index
    %17 = vector.load %arg5[%c0_19, %c1, %c0_20, %c0_21] : memref<1x9x4x8xbf16, #tpu.memory_space<vmem>>, vector<1x1x4x8xbf16>
    %18 = vector.shape_cast %17 : vector<1x1x4x8xbf16> to vector<4x8xbf16>
    %cst_22 = arith.constant dense<0.000000e+00> : vector<4x324xf32>
    %19 = tpu.matmul %18, %15, %cst_22 {dimension_numbers = #tpu.dot_dimension_numbers<[1], [0], [0], [1], [0, 0, 1, 1], [], []>} : vector<4x8xbf16>, vector<8x324xbf16>, vector<4x324xf32> -> vector<4x324xf32>
    %20 = arith.addf %14, %19 : vector<4x324xf32>
    %c0_23 = arith.constant 0 : index
    %c1_24 = arith.constant 1 : index
    %c0_25 = arith.constant 0 : index
    %c0_26 = arith.constant 0 : index
    %21 = vector.load %arg6[%c0_23, %c1_24, %c0_25, %c0_26] : memref<1x9x4x4xbf16, #tpu.memory_space<vmem>>, vector<1x1x4x4xbf16>
    %22 = vector.shape_cast %21 : vector<1x1x4x4xbf16> to vector<4x4xbf16>
    %cst_27 = arith.constant dense<0.000000e+00> : vector<4x324xf32>
    %23 = tpu.matmul %22, %16, %cst_27 {dimension_numbers = #tpu.dot_dimension_numbers<[1], [0], [0], [1], [0, 0, 1, 1], [], []>} : vector<4x4xbf16>, vector<4x324xbf16>, vector<4x324xf32> -> vector<4x324xf32>
    %24 = arith.addf %20, %23 : vector<4x324xf32>
    %25 = vector.extract_strided_slice %1 {offsets = [0, 2], sizes = [8, 324], strides = [1, 1]} : vector<8x378xbf16> to vector<8x324xbf16>
    %26 = vector.extract_strided_slice %3 {offsets = [0, 2], sizes = [4, 324], strides = [1, 1]} : vector<4x378xbf16> to vector<4x324xbf16>
    %c0_28 = arith.constant 0 : index
    %c2 = arith.constant 2 : index
    %c0_29 = arith.constant 0 : index
    %c0_30 = arith.constant 0 : index
    %27 = vector.load %arg5[%c0_28, %c2, %c0_29, %c0_30] : memref<1x9x4x8xbf16, #tpu.memory_space<vmem>>, vector<1x1x4x8xbf16>
    %28 = vector.shape_cast %27 : vector<1x1x4x8xbf16> to vector<4x8xbf16>
    %cst_31 = arith.constant dense<0.000000e+00> : vector<4x324xf32>
    %29 = tpu.matmul %28, %25, %cst_31 {dimension_numbers = #tpu.dot_dimension_numbers<[1], [0], [0], [1], [0, 0, 1, 1], [], []>} : vector<4x8xbf16>, vector<8x324xbf16>, vector<4x324xf32> -> vector<4x324xf32>
    %30 = arith.addf %24, %29 : vector<4x324xf32>
    %c0_32 = arith.constant 0 : index
    %c2_33 = arith.constant 2 : index
    %c0_34 = arith.constant 0 : index
    %c0_35 = arith.constant 0 : index
    %31 = vector.load %arg6[%c0_32, %c2_33, %c0_34, %c0_35] : memref<1x9x4x4xbf16, #tpu.memory_space<vmem>>, vector<1x1x4x4xbf16>
    %32 = vector.shape_cast %31 : vector<1x1x4x4xbf16> to vector<4x4xbf16>
    %cst_36 = arith.constant dense<0.000000e+00> : vector<4x324xf32>
    %33 = tpu.matmul %32, %26, %cst_36 {dimension_numbers = #tpu.dot_dimension_numbers<[1], [0], [0], [1], [0, 0, 1, 1], [], []>} : vector<4x4xbf16>, vector<4x324xbf16>, vector<4x324xf32> -> vector<4x324xf32>
    %34 = arith.addf %30, %33 : vector<4x324xf32>
    %35 = vector.extract_strided_slice %1 {offsets = [0, 18], sizes = [8, 324], strides = [1, 1]} : vector<8x378xbf16> to vector<8x324xbf16>
    %36 = vector.extract_strided_slice %3 {offsets = [0, 18], sizes = [4, 324], strides = [1, 1]} : vector<4x378xbf16> to vector<4x324xbf16>
    %c0_37 = arith.constant 0 : index
    %c3 = arith.constant 3 : index
    %c0_38 = arith.constant 0 : index
    %c0_39 = arith.constant 0 : index
    %37 = vector.load %arg5[%c0_37, %c3, %c0_38, %c0_39] : memref<1x9x4x8xbf16, #tpu.memory_space<vmem>>, vector<1x1x4x8xbf16>
    %38 = vector.shape_cast %37 : vector<1x1x4x8xbf16> to vector<4x8xbf16>
    %cst_40 = arith.constant dense<0.000000e+00> : vector<4x324xf32>
    %39 = tpu.matmul %38, %35, %cst_40 {dimension_numbers = #tpu.dot_dimension_numbers<[1], [0], [0], [1], [0, 0, 1, 1], [], []>} : vector<4x8xbf16>, vector<8x324xbf16>, vector<4x324xf32> -> vector<4x324xf32>
    %40 = arith.addf %34, %39 : vector<4x324xf32>
    %c0_41 = arith.constant 0 : index
    %c3_42 = arith.constant 3 : index
    %c0_43 = arith.constant 0 : index
    %c0_44 = arith.constant 0 : index
    %41 = vector.load %arg6[%c0_41, %c3_42, %c0_43, %c0_44] : memref<1x9x4x4xbf16, #tpu.memory_space<vmem>>, vector<1x1x4x4xbf16>
    %42 = vector.shape_cast %41 : vector<1x1x4x4xbf16> to vector<4x4xbf16>
    %cst_45 = arith.constant dense<0.000000e+00> : vector<4x324xf32>
    %43 = tpu.matmul %42, %36, %cst_45 {dimension_numbers = #tpu.dot_dimension_numbers<[1], [0], [0], [1], [0, 0, 1, 1], [], []>} : vector<4x4xbf16>, vector<4x324xbf16>, vector<4x324xf32> -> vector<4x324xf32>
    %44 = arith.addf %40, %43 : vector<4x324xf32>
    %45 = vector.extract_strided_slice %1 {offsets = [0, 19], sizes = [8, 324], strides = [1, 1]} : vector<8x378xbf16> to vector<8x324xbf16>
    %46 = vector.extract_strided_slice %3 {offsets = [0, 19], sizes = [4, 324], strides = [1, 1]} : vector<4x378xbf16> to vector<4x324xbf16>
    %c0_46 = arith.constant 0 : index
    %c4 = arith.constant 4 : index
    %c0_47 = arith.constant 0 : index
    %c0_48 = arith.constant 0 : index
    %47 = vector.load %arg5[%c0_46, %c4, %c0_47, %c0_48] : memref<1x9x4x8xbf16, #tpu.memory_space<vmem>>, vector<1x1x4x8xbf16>
    %48 = vector.shape_cast %47 : vector<1x1x4x8xbf16> to vector<4x8xbf16>
    %cst_49 = arith.constant dense<0.000000e+00> : vector<4x324xf32>
    %49 = tpu.matmul %48, %45, %cst_49 {dimension_numbers = #tpu.dot_dimension_numbers<[1], [0], [0], [1], [0, 0, 1, 1], [], []>} : vector<4x8xbf16>, vector<8x324xbf16>, vector<4x324xf32> -> vector<4x324xf32>
    %50 = arith.addf %44, %49 : vector<4x324xf32>
    %c0_50 = arith.constant 0 : index
    %c4_51 = arith.constant 4 : index
    %c0_52 = arith.constant 0 : index
    %c0_53 = arith.constant 0 : index
    %51 = vector.load %arg6[%c0_50, %c4_51, %c0_52, %c0_53] : memref<1x9x4x4xbf16, #tpu.memory_space<vmem>>, vector<1x1x4x4xbf16>
    %52 = vector.shape_cast %51 : vector<1x1x4x4xbf16> to vector<4x4xbf16>
    %cst_54 = arith.constant dense<0.000000e+00> : vector<4x324xf32>
    %53 = tpu.matmul %52, %46, %cst_54 {dimension_numbers = #tpu.dot_dimension_numbers<[1], [0], [0], [1], [0, 0, 1, 1], [], []>} : vector<4x4xbf16>, vector<4x324xbf16>, vector<4x324xf32> -> vector<4x324xf32>
    %54 = arith.addf %50, %53 : vector<4x324xf32>
    %55 = vector.extract_strided_slice %1 {offsets = [0, 20], sizes = [8, 324], strides = [1, 1]} : vector<8x378xbf16> to vector<8x324xbf16>
    %56 = vector.extract_strided_slice %3 {offsets = [0, 20], sizes = [4, 324], strides = [1, 1]} : vector<4x378xbf16> to vector<4x324xbf16>
    %c0_55 = arith.constant 0 : index
    %c5 = arith.constant 5 : index
    %c0_56 = arith.constant 0 : index
    %c0_57 = arith.constant 0 : index
    %57 = vector.load %arg5[%c0_55, %c5, %c0_56, %c0_57] : memref<1x9x4x8xbf16, #tpu.memory_space<vmem>>, vector<1x1x4x8xbf16>
    %58 = vector.shape_cast %57 : vector<1x1x4x8xbf16> to vector<4x8xbf16>
    %cst_58 = arith.constant dense<0.000000e+00> : vector<4x324xf32>
    %59 = tpu.matmul %58, %55, %cst_58 {dimension_numbers = #tpu.dot_dimension_numbers<[1], [0], [0], [1], [0, 0, 1, 1], [], []>} : vector<4x8xbf16>, vector<8x324xbf16>, vector<4x324xf32> -> vector<4x324xf32>
    %60 = arith.addf %54, %59 : vector<4x324xf32>
    %c0_59 = arith.constant 0 : index
    %c5_60 = arith.constant 5 : index
    %c0_61 = arith.constant 0 : index
    %c0_62 = arith.constant 0 : index
    %61 = vector.load %arg6[%c0_59, %c5_60, %c0_61, %c0_62] : memref<1x9x4x4xbf16, #tpu.memory_space<vmem>>, vector<1x1x4x4xbf16>
    %62 = vector.shape_cast %61 : vector<1x1x4x4xbf16> to vector<4x4xbf16>
    %cst_63 = arith.constant dense<0.000000e+00> : vector<4x324xf32>
    %63 = tpu.matmul %62, %56, %cst_63 {dimension_numbers = #tpu.dot_dimension_numbers<[1], [0], [0], [1], [0, 0, 1, 1], [], []>} : vector<4x4xbf16>, vector<4x324xbf16>, vector<4x324xf32> -> vector<4x324xf32>
    %64 = arith.addf %60, %63 : vector<4x324xf32>
    %65 = vector.extract_strided_slice %1 {offsets = [0, 36], sizes = [8, 324], strides = [1, 1]} : vector<8x378xbf16> to vector<8x324xbf16>
    %66 = vector.extract_strided_slice %3 {offsets = [0, 36], sizes = [4, 324], strides = [1, 1]} : vector<4x378xbf16> to vector<4x324xbf16>
    %c0_64 = arith.constant 0 : index
    %c6 = arith.constant 6 : index
    %c0_65 = arith.constant 0 : index
    %c0_66 = arith.constant 0 : index
    %67 = vector.load %arg5[%c0_64, %c6, %c0_65, %c0_66] : memref<1x9x4x8xbf16, #tpu.memory_space<vmem>>, vector<1x1x4x8xbf16>
    %68 = vector.shape_cast %67 : vector<1x1x4x8xbf16> to vector<4x8xbf16>
    %cst_67 = arith.constant dense<0.000000e+00> : vector<4x324xf32>
    %69 = tpu.matmul %68, %65, %cst_67 {dimension_numbers = #tpu.dot_dimension_numbers<[1], [0], [0], [1], [0, 0, 1, 1], [], []>} : vector<4x8xbf16>, vector<8x324xbf16>, vector<4x324xf32> -> vector<4x324xf32>
    %70 = arith.addf %64, %69 : vector<4x324xf32>
    %c0_68 = arith.constant 0 : index
    %c6_69 = arith.constant 6 : index
    %c0_70 = arith.constant 0 : index
    %c0_71 = arith.constant 0 : index
    %71 = vector.load %arg6[%c0_68, %c6_69, %c0_70, %c0_71] : memref<1x9x4x4xbf16, #tpu.memory_space<vmem>>, vector<1x1x4x4xbf16>
    %72 = vector.shape_cast %71 : vector<1x1x4x4xbf16> to vector<4x4xbf16>
    %cst_72 = arith.constant dense<0.000000e+00> : vector<4x324xf32>
    %73 = tpu.matmul %72, %66, %cst_72 {dimension_numbers = #tpu.dot_dimension_numbers<[1], [0], [0], [1], [0, 0, 1, 1], [], []>} : vector<4x4xbf16>, vector<4x324xbf16>, vector<4x324xf32> -> vector<4x324xf32>
    %74 = arith.addf %70, %73 : vector<4x324xf32>
    %75 = vector.extract_strided_slice %1 {offsets = [0, 37], sizes = [8, 324], strides = [1, 1]} : vector<8x378xbf16> to vector<8x324xbf16>
    %76 = vector.extract_strided_slice %3 {offsets = [0, 37], sizes = [4, 324], strides = [1, 1]} : vector<4x378xbf16> to vector<4x324xbf16>
    %c0_73 = arith.constant 0 : index
    %c7 = arith.constant 7 : index
    %c0_74 = arith.constant 0 : index
    %c0_75 = arith.constant 0 : index
    %77 = vector.load %arg5[%c0_73, %c7, %c0_74, %c0_75] : memref<1x9x4x8xbf16, #tpu.memory_space<vmem>>, vector<1x1x4x8xbf16>
    %78 = vector.shape_cast %77 : vector<1x1x4x8xbf16> to vector<4x8xbf16>
    %cst_76 = arith.constant dense<0.000000e+00> : vector<4x324xf32>
    %79 = tpu.matmul %78, %75, %cst_76 {dimension_numbers = #tpu.dot_dimension_numbers<[1], [0], [0], [1], [0, 0, 1, 1], [], []>} : vector<4x8xbf16>, vector<8x324xbf16>, vector<4x324xf32> -> vector<4x324xf32>
    %80 = arith.addf %74, %79 : vector<4x324xf32>
    %c0_77 = arith.constant 0 : index
    %c7_78 = arith.constant 7 : index
    %c0_79 = arith.constant 0 : index
    %c0_80 = arith.constant 0 : index
    %81 = vector.load %arg6[%c0_77, %c7_78, %c0_79, %c0_80] : memref<1x9x4x4xbf16, #tpu.memory_space<vmem>>, vector<1x1x4x4xbf16>
    %82 = vector.shape_cast %81 : vector<1x1x4x4xbf16> to vector<4x4xbf16>
    %cst_81 = arith.constant dense<0.000000e+00> : vector<4x324xf32>
    %83 = tpu.matmul %82, %76, %cst_81 {dimension_numbers = #tpu.dot_dimension_numbers<[1], [0], [0], [1], [0, 0, 1, 1], [], []>} : vector<4x4xbf16>, vector<4x324xbf16>, vector<4x324xf32> -> vector<4x324xf32>
    %84 = arith.addf %80, %83 : vector<4x324xf32>
    %85 = vector.extract_strided_slice %1 {offsets = [0, 38], sizes = [8, 324], strides = [1, 1]} : vector<8x378xbf16> to vector<8x324xbf16>
    %86 = vector.extract_strided_slice %3 {offsets = [0, 38], sizes = [4, 324], strides = [1, 1]} : vector<4x378xbf16> to vector<4x324xbf16>
    %c0_82 = arith.constant 0 : index
    %c8 = arith.constant 8 : index
    %c0_83 = arith.constant 0 : index
    %c0_84 = arith.constant 0 : index
    %87 = vector.load %arg5[%c0_82, %c8, %c0_83, %c0_84] : memref<1x9x4x8xbf16, #tpu.memory_space<vmem>>, vector<1x1x4x8xbf16>
    %88 = vector.shape_cast %87 : vector<1x1x4x8xbf16> to vector<4x8xbf16>
    %cst_85 = arith.constant dense<0.000000e+00> : vector<4x324xf32>
    %89 = tpu.matmul %88, %85, %cst_85 {dimension_numbers = #tpu.dot_dimension_numbers<[1], [0], [0], [1], [0, 0, 1, 1], [], []>} : vector<4x8xbf16>, vector<8x324xbf16>, vector<4x324xf32> -> vector<4x324xf32>
    %90 = arith.addf %84, %89 : vector<4x324xf32>
    %c0_86 = arith.constant 0 : index
    %c8_87 = arith.constant 8 : index
    %c0_88 = arith.constant 0 : index
    %c0_89 = arith.constant 0 : index
    %91 = vector.load %arg6[%c0_86, %c8_87, %c0_88, %c0_89] : memref<1x9x4x4xbf16, #tpu.memory_space<vmem>>, vector<1x1x4x4xbf16>
    %92 = vector.shape_cast %91 : vector<1x1x4x4xbf16> to vector<4x4xbf16>
    %cst_90 = arith.constant dense<0.000000e+00> : vector<4x324xf32>
    %93 = tpu.matmul %92, %86, %cst_90 {dimension_numbers = #tpu.dot_dimension_numbers<[1], [0], [0], [1], [0, 0, 1, 1], [], []>} : vector<4x4xbf16>, vector<4x324xbf16>, vector<4x324xf32> -> vector<4x324xf32>
    %94 = arith.addf %90, %93 : vector<4x324xf32>
    %c0_i32 = arith.constant 0 : i32
    %95 = arith.cmpi eq, %arg2, %c0_i32 : i32
    %96 = arith.extui %95 : i1 to i32
    %c0_i32_91 = arith.constant 0 : i32
    %97 = arith.cmpi ne, %96, %c0_i32_91 : i32
    scf.if %97 {
      %c0_95 = arith.constant 0 : index
      %c0_96 = arith.constant 0 : index
      %c0_97 = arith.constant 0 : index
      %c0_98 = arith.constant 0 : index
      %c0_99 = arith.constant 0 : index
      %104 = vector.load %arg8[%c0_95, %c0_96, %c0_97, %c0_98, %c0_99] : memref<1x4x1x1x324xf32, #tpu.memory_space<vmem>>, vector<1x4x1x1x324xf32>
      %105 = vector.shape_cast %104 : vector<1x4x1x1x324xf32> to vector<4x324xf32>
      %106 = vector.shape_cast %94 : vector<4x324xf32> to vector<1x4x1x1x324xf32>
      tpu.vector_store %arg8[%c0_95, %c0_96, %c0_97, %c0_98, %c0_99], %106 {strides = array<i32>} : memref<1x4x1x1x324xf32, #tpu.memory_space<vmem>>, vector<1x4x1x1x324xf32>,
    } else {
    }
    %c0_i32_92 = arith.constant 0 : i32
    %98 = arith.cmpi sgt, %arg2, %c0_i32_92 : i32
    %99 = arith.extui %98 : i1 to i32
    %c0_i32_93 = arith.constant 0 : i32
    %100 = arith.cmpi ne, %99, %c0_i32_93 : i32
    scf.if %100 {
      %c0_95 = arith.constant 0 : index
      %c0_96 = arith.constant 0 : index
      %c0_97 = arith.constant 0 : index
      %c0_98 = arith.constant 0 : index
      %c0_99 = arith.constant 0 : index
      %104 = vector.load %arg8[%c0_95, %c0_96, %c0_97, %c0_98, %c0_99] : memref<1x4x1x1x324xf32, #tpu.memory_space<vmem>>, vector<1x4x1x1x324xf32>
      %105 = vector.shape_cast %104 : vector<1x4x1x1x324xf32> to vector<4x324xf32>
      %106 = arith.addf %105, %94 : vector<4x324xf32>
      %c0_100 = arith.constant 0 : index
      %c0_101 = arith.constant 0 : index
      %c0_102 = arith.constant 0 : index
      %c0_103 = arith.constant 0 : index
      %c0_104 = arith.constant 0 : index
      %107 = vector.load %arg8[%c0_100, %c0_101, %c0_102, %c0_103, %c0_104] : memref<1x4x1x1x324xf32, #tpu.memory_space<vmem>>, vector<1x4x1x1x324xf32>
      %108 = vector.shape_cast %107 : vector<1x4x1x1x324xf32> to vector<4x324xf32>
      %109 = vector.shape_cast %106 : vector<4x324xf32> to vector<1x4x1x1x324xf32>
      tpu.vector_store %arg8[%c0_100, %c0_101, %c0_102, %c0_103, %c0_104], %109 {strides = array<i32>} : memref<1x4x1x1x324xf32, #tpu.memory_space<vmem>>, vector<1x4x1x1x324xf32>,
    } else {
    }
    %c2_i32 = arith.constant 2 : i32
    %101 = arith.cmpi eq, %arg2, %c2_i32 : i32
    %102 = arith.extui %101 : i1 to i32
    %c0_i32_94 = arith.constant 0 : i32
    %103 = arith.cmpi ne, %102, %c0_i32_94 : i32
    scf.if %103 {
      %c0_95 = arith.constant 0 : index
      %c0_96 = arith.constant 0 : index
      %c0_97 = arith.constant 0 : index
      %c0_98 = arith.constant 0 : index
      %c0_99 = arith.constant 0 : index
      %104 = vector.load %arg8[%c0_95, %c0_96, %c0_97, %c0_98, %c0_99] : memref<1x4x1x1x324xf32, #tpu.memory_space<vmem>>, vector<1x4x1x1x324xf32>
      %105 = vector.shape_cast %104 : vector<1x4x1x1x324xf32> to vector<4x324xf32>
      %c0_100 = arith.constant 0 : index
      %c0_101 = arith.constant 0 : index
      %106 = vector.load %arg7[%c0_100, %c0_101] : memref<1x324xf32, #tpu.memory_space<vmem>>, vector<1x324xf32>
      %107 = vector.broadcast %106 : vector<1x324xf32> to vector<4x324xf32>
      %108 = arith.mulf %105, %107 : vector<4x324xf32>
      %cst_102 = arith.constant dense<0.000000e+00> : vector<4xf32>
      %109 = vector.multi_reduction <add>, %108, %cst_102 [1] : vector<4x324xf32> to vector<4xf32>
      %110 = vector.shape_cast %109 : vector<4xf32> to vector<4x1xf32>
      %c0_103 = arith.constant 0 : index
      %c0_104 = arith.constant 0 : index
      %c0_105 = arith.constant 0 : index
      %c0_106 = arith.constant 0 : index
      %111 = vector.load %arg9[%c0_103, %c0_104, %c0_105, %c0_106] : memref<1x1x4x2xf32, #tpu.memory_space<vmem>>, vector<1x1x4x1xf32>
      %112 = vector.shape_cast %111 : vector<1x1x4x1xf32> to vector<4x1xf32>
      %113 = vector.shape_cast %110 : vector<4x1xf32> to vector<1x1x4x1xf32>
      tpu.vector_store %arg9[%c0_103, %c0_104, %c0_105, %c0_106], %113 {strides = array<i32>} : memref<1x1x4x2xf32, #tpu.memory_space<vmem>>, vector<1x1x4x1xf32>,
      %114 = arith.mulf %108, %105 : vector<4x324xf32>
      %cst_107 = arith.constant dense<0.000000e+00> : vector<4xf32>
      %115 = vector.multi_reduction <add>, %114, %cst_107 [1] : vector<4x324xf32> to vector<4xf32>
      %116 = vector.shape_cast %115 : vector<4xf32> to vector<4x1xf32>
      %c0_108 = arith.constant 0 : index
      %c0_109 = arith.constant 0 : index
      %c0_110 = arith.constant 0 : index
      %c1_111 = arith.constant 1 : index
      %117 = vector.load %arg9[%c0_108, %c0_109, %c0_110, %c1_111] : memref<1x1x4x2xf32, #tpu.memory_space<vmem>>, vector<1x1x4x1xf32>
      %118 = vector.shape_cast %117 : vector<1x1x4x1xf32> to vector<4x1xf32>
      %119 = vector.shape_cast %116 : vector<4x1xf32> to vector<1x1x4x1xf32>
      tpu.vector_store %arg9[%c0_108, %c0_109, %c0_110, %c1_111], %119 {strides = array<i32>} : memref<1x1x4x2xf32, #tpu.memory_space<vmem>>, vector<1x1x4x1xf32>,
    } else {
    }
    return
  }
  func.func @transform_0(%arg0: i32, %arg1: i32, %arg2: i32) -> (i32, i32, i32, i32, i32) {
    %0 = arith.addi %arg1, %arg2 : i32
    %c0_i32 = arith.constant 0 : i32
    %c0_i32_0 = arith.constant 0 : i32
    %c0_i32_1 = arith.constant 0 : i32
    %c0_i32_2 = arith.constant 0 : i32
    return %arg0, %c0_i32, %0, %c0_i32_0, %c0_i32_1 : i32, i32, i32, i32, i32
  }
  func.func @transform_1(%arg0: i32, %arg1: i32, %arg2: i32) -> (i32, i32, i32, i32, i32) {
    %0 = arith.addi %arg1, %arg2 : i32
    %c0_i32 = arith.constant 0 : i32
    %c0_i32_0 = arith.constant 0 : i32
    %c0_i32_1 = arith.constant 0 : i32
    %c0_i32_2 = arith.constant 0 : i32
    return %arg0, %c0_i32, %0, %c0_i32_0, %c0_i32_1 : i32, i32, i32, i32, i32
  }
  func.func @transform_2(%arg0: i32, %arg1: i32, %arg2: i32) -> (i32, i32, i32, i32) {
    %c0_i32 = arith.constant 0 : i32
    %c0_i32_0 = arith.constant 0 : i32
    %c0_i32_1 = arith.constant 0 : i32
    %c0_i32_2 = arith.constant 0 : i32
    return %arg2, %c0_i32, %c0_i32_0, %c0_i32_1 : i32, i32, i32, i32
  }
  func.func @transform_3(%arg0: i32, %arg1: i32, %arg2: i32) -> (i32, i32, i32, i32) {
    %c0_i32 = arith.constant 0 : i32
    %c0_i32_0 = arith.constant 0 : i32
    %c0_i32_1 = arith.constant 0 : i32
    %c0_i32_2 = arith.constant 0 : i32
    return %arg2, %c0_i32, %c0_i32_0, %c0_i32_1 : i32, i32, i32, i32
  }
  func.func @transform_4(%arg0: i32, %arg1: i32, %arg2: i32) -> (i32, i32) {
    %c0_i32 = arith.constant 0 : i32
    %c0_i32_0 = arith.constant 0 : i32
    %c0_i32_1 = arith.constant 0 : i32
    return %c0_i32, %c0_i32_0 : i32, i32
  }
  func.func @transform_5(%arg0: i32, %arg1: i32, %arg2: i32) -> (i32, i32, i32, i32, i32) {
    %c0_i32 = arith.constant 0 : i32
    %c0_i32_0 = arith.constant 0 : i32
    %c0_i32_1 = arith.constant 0 : i32
    %c0_i32_2 = arith.constant 0 : i32
    return %arg0, %c0_i32, %arg1, %c0_i32_0, %c0_i32_1 : i32, i32, i32, i32, i32
  }
  func.func @transform_6(%arg0: i32, %arg1: i32, %arg2: i32) -> (i32, i32, i32, i32) {
    %c0_i32 = arith.constant 0 : i32
    %c0_i32_0 = arith.constant 0 : i32
    %c0_i32_1 = arith.constant 0 : i32
    return %arg0, %arg1, %c0_i32, %c0_i32_0 : i32, i32, i32, i32
  }
}

module attributes {stable_mosaic.version = 11 : i64} {
  func.func @_norm_lrelu_kernel(%arg0: i32, %arg1: i32, %arg2: memref<1x4x1x1x324xf32, #tpu.memory_space<vmem>>, %arg3: memref<1x4x2xf32, #tpu.memory_space<vmem>>, %arg4: memref<1x4x1x1x324xf32, #tpu.memory_space<vmem>>) attributes {dimension_semantics = [#tpu.dimension_semantics<parallel>, #tpu.dimension_semantics<parallel>], iteration_bounds = array<i64: 2, 8>, scalar_prefetch = 0 : i64, scratch_operands = 0 : i64, tpu.core_type = #tpu.core_type<tc>, window_params = [{transform_indices = @transform_0, window_bounds = array<i64: 1, 4, 1, 1, 324>}, {transform_indices = @transform_1, window_bounds = array<i64: 1, 4, 2>}, {transform_indices = @transform_2, window_bounds = array<i64: 1, 4, 1, 1, 324>}]} {
    %c0 = arith.constant 0 : index
    %c0_0 = arith.constant 0 : index
    %c0_1 = arith.constant 0 : index
    %c0_2 = arith.constant 0 : index
    %c0_3 = arith.constant 0 : index
    %0 = vector.load %arg2[%c0, %c0_0, %c0_1, %c0_2, %c0_3] : memref<1x4x1x1x324xf32, #tpu.memory_space<vmem>>, vector<1x4x1x1x324xf32>
    %1 = vector.shape_cast %0 : vector<1x4x1x1x324xf32> to vector<4x324xf32>
    %c0_4 = arith.constant 0 : index
    %c0_5 = arith.constant 0 : index
    %c0_6 = arith.constant 0 : index
    %2 = vector.load %arg3[%c0_4, %c0_5, %c0_6] : memref<1x4x2xf32, #tpu.memory_space<vmem>>, vector<1x4x1xf32>
    %3 = vector.shape_cast %2 : vector<1x4x1xf32> to vector<4x1xf32>
    %c0_7 = arith.constant 0 : index
    %c0_8 = arith.constant 0 : index
    %c1 = arith.constant 1 : index
    %4 = vector.load %arg3[%c0_7, %c0_8, %c1] : memref<1x4x2xf32, #tpu.memory_space<vmem>>, vector<1x4x1xf32>
    %5 = vector.shape_cast %4 : vector<1x4x1xf32> to vector<4x1xf32>
    %6 = vector.broadcast %3 : vector<4x1xf32> to vector<4x324xf32>
    %7 = arith.subf %1, %6 : vector<4x324xf32>
    %8 = vector.broadcast %5 : vector<4x1xf32> to vector<4x324xf32>
    %9 = arith.mulf %7, %8 : vector<4x324xf32>
    %cst = arith.constant 0.000000e+00 : f32
    %10 = vector.broadcast %cst : f32 to vector<4x324xf32>
    %11 = arith.cmpf oge, %9, %10 : vector<4x324xf32>
    %cst_9 = arith.constant 0.00999999977 : f32
    %12 = vector.broadcast %cst_9 : f32 to vector<4x324xf32>
    %13 = arith.mulf %12, %9 : vector<4x324xf32>
    %14 = arith.select %11, %9, %13 : vector<4x324xi1>, vector<4x324xf32>
    %c0_10 = arith.constant 0 : index
    %c0_11 = arith.constant 0 : index
    %c0_12 = arith.constant 0 : index
    %c0_13 = arith.constant 0 : index
    %c0_14 = arith.constant 0 : index
    %15 = vector.load %arg4[%c0_10, %c0_11, %c0_12, %c0_13, %c0_14] : memref<1x4x1x1x324xf32, #tpu.memory_space<vmem>>, vector<1x4x1x1x324xf32>
    %16 = vector.shape_cast %15 : vector<1x4x1x1x324xf32> to vector<4x324xf32>
    %17 = vector.shape_cast %14 : vector<4x324xf32> to vector<1x4x1x1x324xf32>
    tpu.vector_store %arg4[%c0_10, %c0_11, %c0_12, %c0_13, %c0_14], %17 {strides = array<i32>} : memref<1x4x1x1x324xf32, #tpu.memory_space<vmem>>, vector<1x4x1x1x324xf32>,
    return
  }
  func.func @transform_0(%arg0: i32, %arg1: i32) -> (i32, i32, i32, i32, i32) {
    %c0_i32 = arith.constant 0 : i32
    %c0_i32_0 = arith.constant 0 : i32
    %c0_i32_1 = arith.constant 0 : i32
    %c0_i32_2 = arith.constant 0 : i32
    return %arg0, %c0_i32, %arg1, %c0_i32_0, %c0_i32_1 : i32, i32, i32, i32, i32
  }
  func.func @transform_1(%arg0: i32, %arg1: i32) -> (i32, i32, i32) {
    %c0_i32 = arith.constant 0 : i32
    %c0_i32_0 = arith.constant 0 : i32
    %c0_i32_1 = arith.constant 0 : i32
    return %arg0, %c0_i32, %c0_i32_0 : i32, i32, i32
  }
  func.func @transform_2(%arg0: i32, %arg1: i32) -> (i32, i32, i32, i32, i32) {
    %c0_i32 = arith.constant 0 : i32
    %c0_i32_0 = arith.constant 0 : i32
    %c0_i32_1 = arith.constant 0 : i32
    %c0_i32_2 = arith.constant 0 : i32
    return %arg0, %c0_i32, %arg1, %c0_i32_0, %c0_i32_1 : i32, i32, i32, i32, i32
  }
}

</mosaic_0001>

<llo_original>
// kernel: up_merge_forward.3
$region0: #{up_merge_forward.3}
  #allocation0 [shape = 'u32[]', space=smem, size = 0x4, offset = 0x4, fixed_abs, tag = 'smem constant byte address 0x4 - core index']
  #allocation1 [shape = 'u32[144,128]{1,0:T(1,128)}', space=vmem, size = 0x12000, scoped, tag = 'internal scratch']
  %s0 = inlined_call_operand.vmem [shape: f32[2,4,8,1,324], index: 0, kind: input, shape index: {}]
  %s1 = inlined_call_operand.vmem [shape: f32[2,4,2], index: 1, kind: input, shape index: {}]
  %s2 = inlined_call_operand.vmem [shape: f32[2,4,8,1,324], index: 2, kind: output, shape index: {}]
  %s3 = sld [smem:[#allocation0]]
  $region119: #{up_merge_forward.3} parent=0
    _
  %s5 = ssub.s32 1, %s3
  %s6 = scalar_select 0, %s5, %s3
  $region1: #{up_merge_forward.3} parent=0
    #allocation2 [shape = 'u8[12288]{0}', space=vmem, size = 0x3000, scoped, tag = 'input window, operand 0']
    #allocation3 [shape = 'u8[12288]{0}', space=vmem, size = 0x3000, scoped, tag = 'output window, operand 0']
    loop: start=0, step=1, limit=18
    $region2: #{up_merge_forward.3} parent=1 // loop_pre_header
      _
    $region3: #{up_merge_forward.3} parent=1 // loop_header
      %s8 = sphi 0, %s12
      %p9 = scmp.ge.s32.totalorder %s8, 18
      %s15 = sphi 0, %s27
      %s16 = sphi 0, %s23
      %s17 = sphi 0, %s15
      %s18 = sphi 0, %s16
      %s19 = sphi 0, %s17
      %s20 = sphi 0, %s18
      %s32 = sphi 0, %s34
      %s35 = sphi 0, %s32
      %s36 = sphi 0, %s35
      %s52 = sphi 0, %s36
      %s58 = sphi 0, %s60
      %s61 = sphi 0, %s58
      %s62 = sphi 0, %s61
      %s78 = sphi 0, %s62
      %s86 = sphi 0, %s88
      %s89 = sphi 0, %s86
      %s90 = sphi 0, %s89
      %s106 = sphi 0, %s90
    $region4: #{up_merge_forward.3} parent=1 // loop_header_branch
      %11 = sbr.rel (%p9) target = $region8
    $region5: #{up_merge_forward.3} parent=1 // loop_body
      %s13 = ssub.s32 %s8, 1
      %s14 = ssub.s32 %s8, 2
      %s21 = sadd.s32 1, %s16
      %p22 = scmp.ge.s32.totalorder %s21, 8
      %s23 = scalar_select %p22, 0, %s21
      %s24 = sadd.s32 1, %s15
      %s25 = scalar_select %p22, %s24, %s15
      %p26 = scmp.ge.s32.totalorder %s25, 2
      %s27 = scalar_select %p26, 0, %s25
      %s28 = ssub.s32 %s15, %s27
      %s29 = ssub.s32 %s16, %s23
      %s30 = sor.u32 %s28, %s29
      %p31 = scmp.eq.s32.totalorder %s30, 0
      %s33 = sadd.s32 %s32, 1
      %s34 = scalar_select %p31, %s32, %s33
      %p37 = pneg %p31
      %p38 = scmp.eq.s32.totalorder %s8, 15
      %p39 = por %p37, %p38
      %p40 = scmp.ne.s32.totalorder %s32, %s35
      %p41 = scmp.eq.s32.totalorder %s8, 0
      %p42 = por %p40, %p41
      %p43 = scmp.ne.s32.totalorder %s32, %s35
      %p44 = scmp.eq.s32.totalorder %s13, 15
      %p45 = por %p43, %p44
      %p46 = scmp.ne.s32.totalorder %s35, %s36
      %p47 = scmp.eq.s32.totalorder %s13, 0
      %p48 = por %p46, %p47
      %p49 = scmp.ne.s32.totalorder %s35, %s36
      %p50 = scmp.eq.s32.totalorder %s14, 15
      %p51 = por %p49, %p50
      %p53 = scmp.ne.s32.totalorder %s36, %s52
      %p54 = scmp.eq.s32.totalorder %s14, 0
      %p55 = por %p53, %p54
      %s56 = ssub.s32 %s15, %s27
      %p57 = scmp.eq.s32.totalorder %s56, 0
      %s59 = sadd.s32 %s58, 1
      %s60 = scalar_select %p57, %s58, %s59
      %p63 = pneg %p57
      %p64 = scmp.eq.s32.totalorder %s8, 15
      %p65 = por %p63, %p64
      %p66 = scmp.ne.s32.totalorder %s58, %s61
      %p67 = scmp.eq.s32.totalorder %s8, 0
      %p68 = por %p66, %p67
      %p69 = scmp.ne.s32.totalorder %s58, %s61
      %p70 = scmp.eq.s32.totalorder %s13, 15
      %p71 = por %p69, %p70
      %p72 = scmp.ne.s32.totalorder %s61, %s62
      %p73 = scmp.eq.s32.totalorder %s13, 0
      %p74 = por %p72, %p73
      %p75 = scmp.ne.s32.totalorder %s61, %s62
      %p76 = scmp.eq.s32.totalorder %s14, 15
      %p77 = por %p75, %p76
      %p79 = scmp.ne.s32.totalorder %s62, %s78
      %p80 = scmp.eq.s32.totalorder %s14, 0
      %p81 = por %p79, %p80
      %s82 = ssub.s32 %s15, %s27
      %s83 = ssub.s32 %s16, %s23
      %s84 = sor.u32 %s82, %s83
      %p85 = scmp.eq.s32.totalorder %s84, 0
      %s87 = sadd.s32 %s86, 1
      %s88 = scalar_select %p85, %s86, %s87
      %p91 = pneg %p85
      %p92 = scmp.eq.s32.totalorder %s8, 15
      %p93 = por %p91, %p92
      %p94 = scmp.ne.s32.totalorder %s86, %s89
      %p95 = scmp.eq.s32.totalorder %s8, 0
      %p96 = por %p94, %p95
      %p97 = scmp.ne.s32.totalorder %s86, %s89
      %p98 = scmp.eq.s32.totalorder %s13, 15
      %p99 = por %p97, %p98
      %p100 = scmp.ne.s32.totalorder %s89, %s90
      %p101 = scmp.eq.s32.totalorder %s13, 0
      %p102 = por %p100, %p101
      %p103 = scmp.ne.s32.totalorder %s89, %s90
      %p104 = scmp.eq.s32.totalorder %s14, 15
      %p105 = por %p103, %p104
      %p107 = scmp.ne.s32.totalorder %s90, %s106
      %p108 = scmp.eq.s32.totalorder %s14, 0
      %p109 = por %p107, %p108
      %p110 = scmp.le.s32.totalorder 1, %s8
      %p111 = scmp.lt.s32.totalorder %s8, 17
      %p112 = pnand %p110, %p111
      %p113 = pneg %p112
      // Predicated region
      $region9: #{up_merge_forward.3} parent=5 // pred_check
        _
      $region10: #{up_merge_forward.3} parent=5 // pred_check_branch
        %115 = sbr.rel (%p112) target = $region12
      $region11: #{up_merge_forward.3} parent=5 // pred_region
        %s116 = ssub.s32 %s8, 1
      $region12: #{up_merge_forward.3} parent=5 // pred_fallthru
        _
      %p117 = scmp.lt.s32.totalorder %s8, 16
      // Predicated region
      $region13: #{up_merge_forward.3} parent=5 // pred_check
        %p118 = pneg %p117
      $region14: #{up_merge_forward.3} parent=5 // pred_check_branch
        %120 = sbr.rel (%p118) target = $region16
      $region15: #{up_merge_forward.3} parent=5 // pred_region
        // Predicated region
        $region17: #{up_merge_forward.3} parent=15 // pred_check
          %p121 = pneg %p42
        $region18: #{up_merge_forward.3} parent=15 // pred_check_branch
          %123 = sbr.rel (%p121) target = $region20
        $region19: #{up_merge_forward.3} parent=15 // pred_region
          %s124 = sand.u32 %s32, 1
          %s125 = sand.u32 %s32, 1
          %s126 = smul.addr %s125, 12
          %s127 = scalar_lea.vmem [#allocation2], %s126
          %s128 = smul.addr %s16, 3
          %s129 = smul.addr %s15, 96
          %s130 = sadd.s32 %s128, %s129
          %s131 = scalar_lea.vmem %s0, %s130
          // Predicated region
          $region21: #{up_merge_forward.3} parent=19 // pred_check
            _
          $region22: #{up_merge_forward.3} parent=19 // pred_check_branch
            %133 = sbr.rel (0) target = $region24
          $region23: #{up_merge_forward.3} parent=19 // pred_region
            // Predicated region
            $region25: #{up_merge_forward.3} parent=23 // pred_check
              _
            $region26: #{up_merge_forward.3} parent=23 // pred_check_branch
              %135 = sbr.rel target = $region28
            $region27: #{up_merge_forward.3} parent=23 // pred_region
              // Predicated region
              $region40: #{up_merge_forward.3} parent=27 // pred_check
                _
              $region41: #{up_merge_forward.3} parent=27 // pred_check_branch
                %157 = sbr.rel (0) target = $region43
              $region42: #{up_merge_forward.3} parent=27 // pred_region
                loop: start=0, step=1, limit=1
                $region44: #{up_merge_forward.3} parent=42 // loop_pre_header
                  _
                $region45: #{up_merge_forward.3} parent=42 // loop_header
                  %s159 = sphi 0, %s163
                  %p160 = scmp.ge.s32.totalorder %s159, 1
                  %s164 = sphi %s131, %s131
                  %s165 = sphi %s127, %s127
                $region46: #{up_merge_forward.3} parent=42 // loop_header_branch
                  %162 = sbr.rel (%p160) target = $region50
                $region47: #{up_merge_forward.3} parent=42 // loop_body
                  _
                $region48: #{up_merge_forward.3} parent=42 // loop_footer
                  %s163 = sadd.s32 1, %s159
                $region49: #{up_merge_forward.3} parent=42 // loop_footer_branch
                  %158 = sbr.rel target = $region45
                $region50: #{up_merge_forward.3} parent=42 // loop_exit
                  _
                %s167 = ssub.s32 8, 1
                loop: start=0, step=1, limit=1
                $region51: #{up_merge_forward.3} parent=42 // loop_pre_header
                  _
                $region52: #{up_merge_forward.3} parent=42 // loop_header
                  %s169 = sphi 0, %s173
                  %p170 = scmp.ge.s32.totalorder %s169, 1
                  %s174 = sphi %s131, %s131
                  %s175 = sphi %s127, %s127
                $region53: #{up_merge_forward.3} parent=42 // loop_header_branch
                  %172 = sbr.rel (%p170) target = $region57
                $region54: #{up_merge_forward.3} parent=42 // loop_body
                  %v176 = vld [vmem:[%s174] sm:%s167]
                  %177 = vst [vmem:[%s175] sm:%s167] %v176
                  %v178 = vld [vmem:[%s174 + $0x18] sm:%s167]
                  %179 = vst [vmem:[%s175 + $0x3] sm:%s167] %v178
                  %v180 = vld [vmem:[%s174 + $0x30] sm:%s167]
                  %181 = vst [vmem:[%s175 + $0x6] sm:%s167] %v180
                  %v182 = vld [vmem:[%s174 + $0x48] sm:%s167]
                  %183 = vst [vmem:[%s175 + $0x9] sm:%s167] %v182
                $region55: #{up_merge_forward.3} parent=42 // loop_footer
                  %s173 = sadd.s32 1, %s169
                $region56: #{up_merge_forward.3} parent=42 // loop_footer_branch
                  %168 = sbr.rel target = $region52
                $region57: #{up_merge_forward.3} parent=42 // loop_exit
                  _
              $region43: #{up_merge_forward.3} parent=27 // pred_fallthru
                _
            $region28: #{up_merge_forward.3} parent=23 // pred_fallthru
              _
            // Predicated region
            $region29: #{up_merge_forward.3} parent=23 // pred_check
              _
            $region30: #{up_merge_forward.3} parent=23 // pred_check_branch
              %137 = sbr.rel (0) target = $region32
            $region31: #{up_merge_forward.3} parent=23 // pred_region
              %s139 = ssub.s32 8, 1
              loop: start=0, step=1, limit=1
              $region33: #{up_merge_forward.3} parent=31 // loop_pre_header
                _
              $region34: #{up_merge_forward.3} parent=31 // loop_header
                %s141 = sphi 0, %s145
                %p142 = scmp.ge.s32.totalorder %s141, 1
                %s146 = sphi %s131, %s131
                %s147 = sphi %s127, %s127
              $region35: #{up_merge_forward.3} parent=31 // loop_header_branch
                %144 = sbr.rel (%p142) target = $region39
              $region36: #{up_merge_forward.3} parent=31 // loop_body
                %v148 = vld [vmem:[%s146] sm:%s139]
                %149 = vst [vmem:[%s147] sm:%s139] %v148
                %v150 = vld [vmem:[%s146 + $0x18] sm:%s139]
                %151 = vst [vmem:[%s147 + $0x3] sm:%s139] %v150
                %v152 = vld [vmem:[%s146 + $0x30] sm:%s139]
                %153 = vst [vmem:[%s147 + $0x6] sm:%s139] %v152
                %v154 = vld [vmem:[%s146 + $0x48] sm:%s139]
                %155 = vst [vmem:[%s147 + $0x9] sm:%s139] %v154
              $region37: #{up_merge_forward.3} parent=31 // loop_footer
                %s145 = sadd.s32 1, %s141
              $region38: #{up_merge_forward.3} parent=31 // loop_footer_branch
                %140 = sbr.rel target = $region34
              $region39: #{up_merge_forward.3} parent=31 // loop_exit
                _
            $region32: #{up_merge_forward.3} parent=23 // pred_fallthru
              _
          $region24: #{up_merge_forward.3} parent=19 // pred_fallthru
            _
          %184 = vnop
        $region20: #{up_merge_forward.3} parent=15 // pred_fallthru
          _
        // Predicated region
        $region58: #{up_merge_forward.3} parent=15 // pred_check
          %p185 = pneg %p68
        $region59: #{up_merge_forward.3} parent=15 // pred_check_branch
          %187 = sbr.rel (%p185) target = $region61
        $region60: #{up_merge_forward.3} parent=15 // pred_region
          %p188 = scmp.lt.s32.totalorder %s15, 1
          %s189 = scalar_select %p188, %s15, 1
          %s190 = smul.addr %s189, 4
          %s191 = scalar_lea.vmem %s1, %s190
        $region61: #{up_merge_forward.3} parent=15 // pred_fallthru
          _
      $region16: #{up_merge_forward.3} parent=5 // pred_fallthru
        _
      %p192 = scmp.le.s32.totalorder 1, %s8
      %p193 = scmp.lt.s32.totalorder %s8, 17
      %p194 = pnand %p192, %p193
      %p195 = pneg %p194
      // Predicated region
      $region62: #{up_merge_forward.3} parent=5 // pred_check
        _
      $region63: #{up_merge_forward.3} parent=5 // pred_check_branch
        %197 = sbr.rel (%p194) target = $region65
      $region64: #{up_merge_forward.3} parent=5 // pred_region
        %s198 = ssub.s32 %s8, 1
        %s199 = sand.u32 %s35, 1
        %s200 = sand.u32 %s35, 1
        %s201 = smul.addr %s200, 12
        %s202 = scalar_lea.vmem [#allocation2], %s201
        // Predicated region
        $region66: #{up_merge_forward.3} parent=64 // pred_check
          %p203 = pneg %p48
        $region67: #{up_merge_forward.3} parent=64 // pred_check_branch
          %205 = sbr.rel (%p203) target = $region69
        $region68: #{up_merge_forward.3} parent=64 // pred_region
          _
        $region69: #{up_merge_forward.3} parent=64 // pred_fallthru
          _
        %s206 = sand.u32 %s35, 1
        %s207 = sand.u32 %s35, 1
        %s208 = smul.addr %s207, 12
        %s209 = scalar_lea.vmem [#allocation2], %s208
        %p210 = pneg %p48
        %p211 = pneg %p45
        %p212 = scmp.lt.s32.totalorder %s17, 1
        %s213 = scalar_select %p212, %s17, 1
        %s214 = smul.addr %s213, 4
        %s215 = scalar_lea.vmem %s1, %s214
        %p216 = pneg %p74
        %p217 = pneg %p71
        %p218 = pneg %p102
        %p219 = pneg %p99
        %s220 = sand.u32 %s89, 1
        %s221 = sand.u32 %s89, 1
        %s222 = smul.addr %s221, 12
        %s223 = scalar_lea.vmem [#allocation3], %s222
        %p224 = scmp.lt.s32.totalorder %s17, 1
        %s225 = scalar_select %p224, %s17, 1
        %s226 = smul.addr %s225, 4
        %s227 = scalar_lea.vmem %s1, %s226
        %v228 = vld [vmem:[%s202] sm:$0x7]
        %v229 = vld [vmem:[%s202 + $0x3] sm:$0x7]
        %v230 = vld [vmem:[%s202 + $0x6] sm:$0x7]
        %v231 = vld [vmem:[%s202 + $0x9] sm:$0x7]
        %v232 = vld [vmem:[%s227] sm:$0xf]
        %234 = vset.pattern.permute.xlu0 0
        %235 = vperm.xlu0 %234, %v232
        %v236 = vpop.permute.xlu0 %235
        %v237 = vlaneseq
        %v238 = vshrl.u32 %v237, 7
        %v239 = vsub.s32 0, %v238
        %v240 = vrot.slane %v236, %v239
        %v241 = vlaneseq
        %v242 = vshrl.u32 %v241, 7
        %v243 = vsub.s32 1, %v242
        %v244 = vrot.slane %v236, %v243
        %v245 = vlaneseq
        %v246 = vshrl.u32 %v245, 7
        %v247 = vsub.s32 2, %v246
        %v248 = vrot.slane %v236, %v247
        %v249 = vlaneseq
        %v250 = vshrl.u32 %v249, 7
        %v251 = vsub.s32 3, %v250
        %v252 = vrot.slane %v236, %v251
        %v257 = vsub.f32 %v228, %v240
        %v258 = vsub.f32 %v229, %v244
        %v259 = vsub.f32 %v230, %v248
        %v260 = vsub.f32 %v231, %v252
        %261 = vset.pattern.permute.xlu0 1
        %262 = vperm.xlu0 %261, %v232
        %v263 = vpop.permute.xlu0 %262
        %v264 = vlaneseq
        %v265 = vshrl.u32 %v264, 7
        %v266 = vsub.s32 0, %v265
        %v267 = vrot.slane %v263, %v266
        %v268 = vlaneseq
        %v269 = vshrl.u32 %v268, 7
        %v270 = vsub.s32 1, %v269
        %v271 = vrot.slane %v263, %v270
        %v272 = vlaneseq
        %v273 = vshrl.u32 %v272, 7
        %v274 = vsub.s32 2, %v273
        %v275 = vrot.slane %v263, %v274
        %v276 = vlaneseq
        %v277 = vshrl.u32 %v276, 7
        %v278 = vsub.s32 3, %v277
        %v279 = vrot.slane %v263, %v278
        %v284 = vmul.f32 %v257, %v267
        %v285 = vmul.f32 %v258, %v271
        %v286 = vmul.f32 %v259, %v275
        %v287 = vmul.f32 %v260, %v279
        %vm288 = vcmp.ge.f32.partialorder %v284, 0.0
        %vm289 = vcmp.ge.f32.partialorder %v285, 0.0
        %vm290 = vcmp.ge.f32.partialorder %v286, 0.0
        %vm291 = vcmp.ge.f32.partialorder %v287, 0.0
        %v292 = vmul.f32 %v284, 0.01
        %v293 = vmul.f32 %v285, 0.01
        %v294 = vmul.f32 %v286, 0.01
        %v295 = vmul.f32 %v287, 0.01
        %v296 = vsel %vm288, %v284, %v292
        %v297 = vsel %vm289, %v285, %v293
        %v298 = vsel %vm290, %v286, %v294
        %v299 = vsel %vm291, %v287, %v295
        %v300 = vlaneseq
        %vm301 = vcmp.ge.s32.totalorder %v300, 0
        %vm302 = vcmp.lt.s32.totalorder %v300, 324
        %vm303 = vmand %vm301, %vm302
        %304 = vst.msk [vmem:[%s223] sm:$0x7] %vm303, %v296
        %305 = vst.msk [vmem:[%s223 + $0x3] sm:$0x7] %vm303, %v297
        %306 = vst.msk [vmem:[%s223 + $0x6] sm:$0x7] %vm303, %v298
        %307 = vst.msk [vmem:[%s223 + $0x9] sm:$0x7] %vm303, %v299
        %s308 = sand.u32 %s89, 1
        %s309 = sand.u32 %s89, 1
        %s310 = smul.addr %s309, 12
        %s311 = scalar_lea.vmem [#allocation3], %s310
        // Predicated region
        $region70: #{up_merge_forward.3} parent=64 // pred_check
          %p312 = pneg %p99
        $region71: #{up_merge_forward.3} parent=64 // pred_check_branch
          %314 = sbr.rel (%p312) target = $region73
        $region72: #{up_merge_forward.3} parent=64 // pred_region
          %s315 = smul.addr %s18, 3
          %s316 = smul.addr %s17, 96
          %s317 = sadd.s32 %s315, %s316
          %s318 = scalar_lea.vmem %s2, %s317
          // Predicated region
          $region74: #{up_merge_forward.3} parent=72 // pred_check
            _
          $region75: #{up_merge_forward.3} parent=72 // pred_check_branch
            %320 = sbr.rel (0) target = $region77
          $region76: #{up_merge_forward.3} parent=72 // pred_region
            // Predicated region
            $region78: #{up_merge_forward.3} parent=76 // pred_check
              _
            $region79: #{up_merge_forward.3} parent=76 // pred_check_branch
              %322 = sbr.rel target = $region81
            $region80: #{up_merge_forward.3} parent=76 // pred_region
              // Predicated region
              $region93: #{up_merge_forward.3} parent=80 // pred_check
                _
              $region94: #{up_merge_forward.3} parent=80 // pred_check_branch
                %344 = sbr.rel (0) target = $region96
              $region95: #{up_merge_forward.3} parent=80 // pred_region
                loop: start=0, step=1, limit=1
                $region97: #{up_merge_forward.3} parent=95 // loop_pre_header
                  _
                $region98: #{up_merge_forward.3} parent=95 // loop_header
                  %s346 = sphi 0, %s350
                  %p347 = scmp.ge.s32.totalorder %s346, 1
                  %s351 = sphi %s311, %s311
                  %s352 = sphi %s318, %s318
                $region99: #{up_merge_forward.3} parent=95 // loop_header_branch
                  %349 = sbr.rel (%p347) target = $region103
                $region100: #{up_merge_forward.3} parent=95 // loop_body
                  _
                $region101: #{up_merge_forward.3} parent=95 // loop_footer
                  %s350 = sadd.s32 1, %s346
                $region102: #{up_merge_forward.3} parent=95 // loop_footer_branch
                  %345 = sbr.rel target = $region98
                $region103: #{up_merge_forward.3} parent=95 // loop_exit
                  _
                %s354 = ssub.s32 8, 1
                loop: start=0, step=1, limit=1
                $region104: #{up_merge_forward.3} parent=95 // loop_pre_header
                  _
                $region105: #{up_merge_forward.3} parent=95 // loop_header
                  %s356 = sphi 0, %s360
                  %p357 = scmp.ge.s32.totalorder %s356, 1
                  %s361 = sphi %s311, %s311
                  %s362 = sphi %s318, %s318
                $region106: #{up_merge_forward.3} parent=95 // loop_header_branch
                  %359 = sbr.rel (%p357) target = $region110
                $region107: #{up_merge_forward.3} parent=95 // loop_body
                  %v363 = vld [vmem:[%s361] sm:%s354]
                  %364 = vst [vmem:[%s362] sm:%s354] %v363
                  %v365 = vld [vmem:[%s361 + $0x3] sm:%s354]
                  %366 = vst [vmem:[%s362 + $0x18] sm:%s354] %v365
                  %v367 = vld [vmem:[%s361 + $0x6] sm:%s354]
                  %368 = vst [vmem:[%s362 + $0x30] sm:%s354] %v367
                  %v369 = vld [vmem:[%s361 + $0x9] sm:%s354]
                  %370 = vst [vmem:[%s362 + $0x48] sm:%s354] %v369
                $region108: #{up_merge_forward.3} parent=95 // loop_footer
                  %s360 = sadd.s32 1, %s356
                $region109: #{up_merge_forward.3} parent=95 // loop_footer_branch
                  %355 = sbr.rel target = $region105
                $region110: #{up_merge_forward.3} parent=95 // loop_exit
                  _
              $region96: #{up_merge_forward.3} parent=80 // pred_fallthru
                _
            $region81: #{up_merge_forward.3} parent=76 // pred_fallthru
              _
            // Predicated region
            $region82: #{up_merge_forward.3} parent=76 // pred_check
              _
            $region83: #{up_merge_forward.3} parent=76 // pred_check_branch
              %324 = sbr.rel (0) target = $region85
            $region84: #{up_merge_forward.3} parent=76 // pred_region
              %s326 = ssub.s32 8, 1
              loop: start=0, step=1, limit=1
              $region86: #{up_merge_forward.3} parent=84 // loop_pre_header
                _
              $region87: #{up_merge_forward.3} parent=84 // loop_header
                %s328 = sphi 0, %s332
                %p329 = scmp.ge.s32.totalorder %s328, 1
                %s333 = sphi %s311, %s311
                %s334 = sphi %s318, %s318
              $region88: #{up_merge_forward.3} parent=84 // loop_header_branch
                %331 = sbr.rel (%p329) target = $region92
              $region89: #{up_merge_forward.3} parent=84 // loop_body
                %v335 = vld [vmem:[%s333] sm:%s326]
                %336 = vst [vmem:[%s334] sm:%s326] %v335
                %v337 = vld [vmem:[%s333 + $0x3] sm:%s326]
                %338 = vst [vmem:[%s334 + $0x18] sm:%s326] %v337
                %v339 = vld [vmem:[%s333 + $0x6] sm:%s326]
                %340 = vst [vmem:[%s334 + $0x30] sm:%s326] %v339
                %v341 = vld [vmem:[%s333 + $0x9] sm:%s326]
                %342 = vst [vmem:[%s334 + $0x48] sm:%s326] %v341
              $region90: #{up_merge_forward.3} parent=84 // loop_footer
                %s332 = sadd.s32 1, %s328
              $region91: #{up_merge_forward.3} parent=84 // loop_footer_branch
                %327 = sbr.rel target = $region87
              $region92: #{up_merge_forward.3} parent=84 // loop_exit
                _
            $region85: #{up_merge_forward.3} parent=76 // pred_fallthru
              _
          $region77: #{up_merge_forward.3} parent=72 // pred_fallthru
            _
          %371 = vnop
        $region73: #{up_merge_forward.3} parent=64 // pred_fallthru
          _
      $region65: #{up_merge_forward.3} parent=5 // pred_fallthru
        _
      %p372 = scmp.le.s32.totalorder 2, %s8
      // Predicated region
      $region111: #{up_merge_forward.3} parent=5 // pred_check
        %p373 = pneg %p372
      $region112: #{up_merge_forward.3} parent=5 // pred_check_branch
        %375 = sbr.rel (%p373) target = $region114
      $region113: #{up_merge_forward.3} parent=5 // pred_region
        %s376 = ssub.s32 %s8, 2
        // Predicated region
        $region115: #{up_merge_forward.3} parent=113 // pred_check
          %p377 = pneg %p105
        $region116: #{up_merge_forward.3} parent=113 // pred_check_branch
          %379 = sbr.rel (%p377) target = $region118
        $region117: #{up_merge_forward.3} parent=113 // pred_region
          %s380 = sand.u32 %s90, 1
          %s381 = sand.u32 %s90, 1
          %s382 = smul.addr %s381, 12
          %s383 = scalar_lea.vmem [#allocation3], %s382
        $region118: #{up_merge_forward.3} parent=113 // pred_fallthru
          _
      $region114: #{up_merge_forward.3} parent=5 // pred_fallthru
        _
    $region6: #{up_merge_forward.3} parent=1 // loop_footer
      %s12 = sadd.s32 1, %s8
    $region7: #{up_merge_forward.3} parent=1 // loop_footer_branch
      %7 = sbr.rel target = $region3
    $region8: #{up_merge_forward.3} parent=1 // loop_exit
      _

// kernel: up_merge_forward.2
$region0: #{up_merge_forward.2}
  #allocation0 [shape = 'u32[]', space=smem, size = 0x4, offset = 0x4, fixed_abs, tag = 'smem constant byte address 0x4 - core index']
  #allocation1 [shape = 'u32[144,128]{1,0:T(1,128)}', space=vmem, size = 0x12000, scoped, tag = 'internal scratch']
  %s0 = inlined_call_operand.vmem [shape: bf16[2,8,10,1,378], index: 0, kind: input, shape index: {}]
  %s1 = inlined_call_operand.vmem [shape: bf16[2,4,10,1,378], index: 1, kind: input, shape index: {}]
  %s2 = inlined_call_operand.vmem [shape: bf16[3,9,4,8], index: 2, kind: input, shape index: {}]
  %s3 = inlined_call_operand.vmem [shape: bf16[3,9,4,4], index: 3, kind: input, shape index: {}]
  %s4 = inlined_call_operand.vmem [shape: f32[1,324], index: 4, kind: input, shape index: {}]
  %s5 = inlined_call_operand.vmem [shape: f32[2,4,8,1,324], index: 5, kind: output, shape index: {0}]
  %s6 = inlined_call_operand.vmem [shape: f32[2,8,4,2], index: 6, kind: output, shape index: {1}]
  %7 = xla_tuple %s5, %s6
  %s8 = sld [smem:[#allocation0]]
  $region192: #{up_merge_forward.2} parent=0
    _
  %s10 = ssub.s32 1, %s8
  %s11 = scalar_select 0, %s10, %s8
  $region1: #{up_merge_forward.2} parent=0
    #allocation2 [shape = 'u8[24576]{0}', space=vmem, size = 0x6000, scoped, tag = 'input window, operand 0']
    #allocation3 [shape = 'u8[12288]{0}', space=vmem, size = 0x3000, scoped, tag = 'input window, operand 1']
    #allocation4 [shape = 'u8[12288]{0}', space=vmem, size = 0x3000, scoped, tag = 'output window, operand 0']
    loop: start=0, step=1, limit=50
    $region2: #{up_merge_forward.2} parent=1 // loop_pre_header
      _
    $region3: #{up_merge_forward.2} parent=1 // loop_header
      %s13 = sphi 0, %s17
      %p14 = scmp.ge.s32.totalorder %s13, 50
      %s20 = sphi 0, %s39
      %s21 = sphi 0, %s35
      %s22 = sphi 0, %s31
      %s23 = sphi 0, %s20
      %s24 = sphi 0, %s21
      %s25 = sphi 0, %s22
      %s26 = sphi 0, %s23
      %s27 = sphi 0, %s24
      %s28 = sphi 0, %s25
      %s46 = sphi 0, %s48
      %s49 = sphi 0, %s46
      %s50 = sphi 0, %s49
      %s66 = sphi 0, %s50
      %s76 = sphi 0, %s78
      %s79 = sphi 0, %s76
      %s80 = sphi 0, %s79
      %s96 = sphi 0, %s80
      %s102 = sphi 0, %s104
      %s105 = sphi 0, %s102
      %s106 = sphi 0, %s105
      %s122 = sphi 0, %s106
      %s128 = sphi 0, %s130
      %s131 = sphi 0, %s128
      %s132 = sphi 0, %s131
      %s148 = sphi 0, %s132
      %s152 = sphi 0, %s152
      %s154 = sphi 0, %s152
      %s155 = sphi 0, %s154
      %s169 = sphi 0, %s155
      %s177 = sphi 0, %s179
      %s180 = sphi 0, %s177
      %s181 = sphi 0, %s180
      %s197 = sphi 0, %s181
      %s205 = sphi 0, %s207
      %s208 = sphi 0, %s205
      %s209 = sphi 0, %s208
      %s225 = sphi 0, %s209
    $region4: #{up_merge_forward.2} parent=1 // loop_header_branch
      %16 = sbr.rel (%p14) target = $region8
    $region5: #{up_merge_forward.2} parent=1 // loop_body
      %s18 = ssub.s32 %s13, 1
      %s19 = ssub.s32 %s13, 2
      %s29 = sadd.s32 1, %s22
      %p30 = scmp.ge.s32.totalorder %s29, 3
      %s31 = scalar_select %p30, 0, %s29
      %s32 = sadd.s32 1, %s21
      %s33 = scalar_select %p30, %s32, %s21
      %p34 = scmp.ge.s32.totalorder %s33, 8
      %s35 = scalar_select %p34, 0, %s33
      %s36 = sadd.s32 1, %s20
      %s37 = scalar_select %p34, %s36, %s20
      %p38 = scmp.ge.s32.totalorder %s37, 2
      %s39 = scalar_select %p38, 0, %s37
      %s40 = sadd.s32 %s21, %s22
      %s41 = sadd.s32 %s35, %s31
      %s42 = ssub.s32 %s20, %s39
      %s43 = ssub.s32 %s40, %s41
      %s44 = sor.u32 %s42, %s43
      %p45 = scmp.eq.s32.totalorder %s44, 0
      %s47 = sadd.s32 %s46, 1
      %s48 = scalar_select %p45, %s46, %s47
      %p51 = pneg %p45
      %p52 = scmp.eq.s32.totalorder %s13, 47
      %p53 = por %p51, %p52
      %p54 = scmp.ne.s32.totalorder %s46, %s49
      %p55 = scmp.eq.s32.totalorder %s13, 0
      %p56 = por %p54, %p55
      %p57 = scmp.ne.s32.totalorder %s46, %s49
      %p58 = scmp.eq.s32.totalorder %s18, 47
      %p59 = por %p57, %p58
      %p60 = scmp.ne.s32.totalorder %s49, %s50
      %p61 = scmp.eq.s32.totalorder %s18, 0
      %p62 = por %p60, %p61
      %p63 = scmp.ne.s32.totalorder %s49, %s50
      %p64 = scmp.eq.s32.totalorder %s19, 47
      %p65 = por %p63, %p64
      %p67 = scmp.ne.s32.totalorder %s50, %s66
      %p68 = scmp.eq.s32.totalorder %s19, 0
      %p69 = por %p67, %p68
      %s70 = sadd.s32 %s21, %s22
      %s71 = sadd.s32 %s35, %s31
      %s72 = ssub.s32 %s20, %s39
      %s73 = ssub.s32 %s70, %s71
      %s74 = sor.u32 %s72, %s73
      %p75 = scmp.eq.s32.totalorder %s74, 0
      %s77 = sadd.s32 %s76, 1
      %s78 = scalar_select %p75, %s76, %s77
      %p81 = pneg %p75
      %p82 = scmp.eq.s32.totalorder %s13, 47
      %p83 = por %p81, %p82
      %p84 = scmp.ne.s32.totalorder %s76, %s79
      %p85 = scmp.eq.s32.totalorder %s13, 0
      %p86 = por %p84, %p85
      %p87 = scmp.ne.s32.totalorder %s76, %s79
      %p88 = scmp.eq.s32.totalorder %s18, 47
      %p89 = por %p87, %p88
      %p90 = scmp.ne.s32.totalorder %s79, %s80
      %p91 = scmp.eq.s32.totalorder %s18, 0
      %p92 = por %p90, %p91
      %p93 = scmp.ne.s32.totalorder %s79, %s80
      %p94 = scmp.eq.s32.totalorder %s19, 47
      %p95 = por %p93, %p94
      %p97 = scmp.ne.s32.totalorder %s80, %s96
      %p98 = scmp.eq.s32.totalorder %s19, 0
      %p99 = por %p97, %p98
      %s100 = ssub.s32 %s22, %s31
      %p101 = scmp.eq.s32.totalorder %s100, 0
      %s103 = sadd.s32 %s102, 1
      %s104 = scalar_select %p101, %s102, %s103
      %p107 = pneg %p101
      %p108 = scmp.eq.s32.totalorder %s13, 47
      %p109 = por %p107, %p108
      %p110 = scmp.ne.s32.totalorder %s102, %s105
      %p111 = scmp.eq.s32.totalorder %s13, 0
      %p112 = por %p110, %p111
      %p113 = scmp.ne.s32.totalorder %s102, %s105
      %p114 = scmp.eq.s32.totalorder %s18, 47
      %p115 = por %p113, %p114
      %p116 = scmp.ne.s32.totalorder %s105, %s106
      %p117 = scmp.eq.s32.totalorder %s18, 0
      %p118 = por %p116, %p117
      %p119 = scmp.ne.s32.totalorder %s105, %s106
      %p120 = scmp.eq.s32.totalorder %s19, 47
      %p121 = por %p119, %p120
      %p123 = scmp.ne.s32.totalorder %s106, %s122
      %p124 = scmp.eq.s32.totalorder %s19, 0
      %p125 = por %p123, %p124
      %s126 = ssub.s32 %s22, %s31
      %p127 = scmp.eq.s32.totalorder %s126, 0
      %s129 = sadd.s32 %s128, 1
      %s130 = scalar_select %p127, %s128, %s129
      %p133 = pneg %p127
      %p134 = scmp.eq.s32.totalorder %s13, 47
      %p135 = por %p133, %p134
      %p136 = scmp.ne.s32.totalorder %s128, %s131
      %p137 = scmp.eq.s32.totalorder %s13, 0
      %p138 = por %p136, %p137
      %p139 = scmp.ne.s32.totalorder %s128, %s131
      %p140 = scmp.eq.s32.totalorder %s18, 47
      %p141 = por %p139, %p140
      %p142 = scmp.ne.s32.totalorder %s131, %s132
      %p143 = scmp.eq.s32.totalorder %s18, 0
      %p144 = por %p142, %p143
      %p145 = scmp.ne.s32.totalorder %s131, %s132
      %p146 = scmp.eq.s32.totalorder %s19, 47
      %p147 = por %p145, %p146
      %p149 = scmp.ne.s32.totalorder %s132, %s148
      %p150 = scmp.eq.s32.totalorder %s19, 0
      %p151 = por %p149, %p150
      %s153 = sadd.s32 %s152, 1
      %p156 = scmp.eq.s32.totalorder %s13, 47
      %p157 = scmp.ne.s32.totalorder %s152, %s154
      %p158 = scmp.eq.s32.totalorder %s13, 0
      %p159 = por %p157, %p158
      %p160 = scmp.ne.s32.totalorder %s152, %s154
      %p161 = scmp.eq.s32.totalorder %s18, 47
      %p162 = por %p160, %p161
      %p163 = scmp.ne.s32.totalorder %s154, %s155
      %p164 = scmp.eq.s32.totalorder %s18, 0
      %p165 = por %p163, %p164
      %p166 = scmp.ne.s32.totalorder %s154, %s155
      %p167 = scmp.eq.s32.totalorder %s19, 47
      %p168 = por %p166, %p167
      %p170 = scmp.ne.s32.totalorder %s155, %s169
      %p171 = scmp.eq.s32.totalorder %s19, 0
      %p172 = por %p170, %p171
      %s173 = ssub.s32 %s20, %s39
      %s174 = ssub.s32 %s21, %s35
      %s175 = sor.u32 %s173, %s174
      %p176 = scmp.eq.s32.totalorder %s175, 0
      %s178 = sadd.s32 %s177, 1
      %s179 = scalar_select %p176, %s177, %s178
      %p182 = pneg %p176
      %p183 = scmp.eq.s32.totalorder %s13, 47
      %p184 = por %p182, %p183
      %p185 = scmp.ne.s32.totalorder %s177, %s180
      %p186 = scmp.eq.s32.totalorder %s13, 0
      %p187 = por %p185, %p186
      %p188 = scmp.ne.s32.totalorder %s177, %s180
      %p189 = scmp.eq.s32.totalorder %s18, 47
      %p190 = por %p188, %p189
      %p191 = scmp.ne.s32.totalorder %s180, %s181
      %p192 = scmp.eq.s32.totalorder %s18, 0
      %p193 = por %p191, %p192
      %p194 = scmp.ne.s32.totalorder %s180, %s181
      %p195 = scmp.eq.s32.totalorder %s19, 47
      %p196 = por %p194, %p195
      %p198 = scmp.ne.s32.totalorder %s181, %s197
      %p199 = scmp.eq.s32.totalorder %s19, 0
      %p200 = por %p198, %p199
      %s201 = ssub.s32 %s20, %s39
      %s202 = ssub.s32 %s21, %s35
      %s203 = sor.u32 %s201, %s202
      %p204 = scmp.eq.s32.totalorder %s203, 0
      %s206 = sadd.s32 %s205, 1
      %s207 = scalar_select %p204, %s205, %s206
      %p210 = pneg %p204
      %p211 = scmp.eq.s32.totalorder %s13, 47
      %p212 = por %p210, %p211
      %p213 = scmp.ne.s32.totalorder %s205, %s208
      %p214 = scmp.eq.s32.totalorder %s13, 0
      %p215 = por %p213, %p214
      %p216 = scmp.ne.s32.totalorder %s205, %s208
      %p217 = scmp.eq.s32.totalorder %s18, 47
      %p218 = por %p216, %p217
      %p219 = scmp.ne.s32.totalorder %s208, %s209
      %p220 = scmp.eq.s32.totalorder %s18, 0
      %p221 = por %p219, %p220
      %p222 = scmp.ne.s32.totalorder %s208, %s209
      %p223 = scmp.eq.s32.totalorder %s19, 47
      %p224 = por %p222, %p223
      %p226 = scmp.ne.s32.totalorder %s209, %s225
      %p227 = scmp.eq.s32.totalorder %s19, 0
      %p228 = por %p226, %p227
      %p229 = scmp.le.s32.totalorder 1, %s13
      %p230 = scmp.lt.s32.totalorder %s13, 49
      %p231 = pnand %p229, %p230
      %p232 = pneg %p231
      // Predicated region
      $region9: #{up_merge_forward.2} parent=5 // pred_check
        _
      $region10: #{up_merge_forward.2} parent=5 // pred_check_branch
        %234 = sbr.rel (%p231) target = $region12
      $region11: #{up_merge_forward.2} parent=5 // pred_region
        %s235 = ssub.s32 %s13, 1
        // Predicated region
        $region13: #{up_merge_forward.2} parent=11 // pred_check
          %p236 = pneg %p165
        $region14: #{up_merge_forward.2} parent=11 // pred_check_branch
          %238 = sbr.rel (%p236) target = $region16
        $region15: #{up_merge_forward.2} parent=11 // pred_region
          _
        $region16: #{up_merge_forward.2} parent=11 // pred_fallthru
          _
      $region12: #{up_merge_forward.2} parent=5 // pred_fallthru
        _
      %p239 = scmp.lt.s32.totalorder %s13, 48
      // Predicated region
      $region17: #{up_merge_forward.2} parent=5 // pred_check
        %p240 = pneg %p239
      $region18: #{up_merge_forward.2} parent=5 // pred_check_branch
        %242 = sbr.rel (%p240) target = $region20
      $region19: #{up_merge_forward.2} parent=5 // pred_region
        // Predicated region
        $region21: #{up_merge_forward.2} parent=19 // pred_check
          %p243 = pneg %p56
        $region22: #{up_merge_forward.2} parent=19 // pred_check_branch
          %245 = sbr.rel (%p243) target = $region24
        $region23: #{up_merge_forward.2} parent=19 // pred_region
          %s246 = sand.u32 %s46, 1
          %s247 = sand.u32 %s46, 1
          %s248 = smul.addr %s247, 24
          %s249 = scalar_lea.vmem [#allocation2], %s248
          %s250 = sadd.s32 %s21, %s22
          %s251 = smul.addr %s250, 3
          %s252 = smul.addr %s20, 240
          %s253 = sadd.s32 %s251, %s252
          %s254 = scalar_lea.vmem %s0, %s253
          // Predicated region
          $region25: #{up_merge_forward.2} parent=23 // pred_check
            _
          $region26: #{up_merge_forward.2} parent=23 // pred_check_branch
            %256 = sbr.rel (0) target = $region28
          $region27: #{up_merge_forward.2} parent=23 // pred_region
            // Predicated region
            $region29: #{up_merge_forward.2} parent=27 // pred_check
              _
            $region30: #{up_merge_forward.2} parent=27 // pred_check_branch
              %258 = sbr.rel target = $region32
            $region31: #{up_merge_forward.2} parent=27 // pred_region
              // Predicated region
              $region44: #{up_merge_forward.2} parent=31 // pred_check
                _
              $region45: #{up_merge_forward.2} parent=31 // pred_check_branch
                %288 = sbr.rel (0) target = $region47
              $region46: #{up_merge_forward.2} parent=31 // pred_region
                loop: start=0, step=1, limit=1
                $region48: #{up_merge_forward.2} parent=46 // loop_pre_header
                  _
                $region49: #{up_merge_forward.2} parent=46 // loop_header
                  %s290 = sphi 0, %s294
                  %p291 = scmp.ge.s32.totalorder %s290, 1
                  %s295 = sphi %s254, %s254
                  %s296 = sphi %s249, %s249
                $region50: #{up_merge_forward.2} parent=46 // loop_header_branch
                  %293 = sbr.rel (%p291) target = $region54
                $region51: #{up_merge_forward.2} parent=46 // loop_body
                  _
                $region52: #{up_merge_forward.2} parent=46 // loop_footer
                  %s294 = sadd.s32 1, %s290
                $region53: #{up_merge_forward.2} parent=46 // loop_footer_branch
                  %289 = sbr.rel target = $region49
                $region54: #{up_merge_forward.2} parent=46 // loop_exit
                  _
                %s298 = ssub.s32 8, 1
                loop: start=0, step=1, limit=1
                $region55: #{up_merge_forward.2} parent=46 // loop_pre_header
                  _
                $region56: #{up_merge_forward.2} parent=46 // loop_header
                  %s300 = sphi 0, %s304
                  %p301 = scmp.ge.s32.totalorder %s300, 1
                  %s305 = sphi %s254, %s254
                  %s306 = sphi %s249, %s249
                $region57: #{up_merge_forward.2} parent=46 // loop_header_branch
                  %303 = sbr.rel (%p301) target = $region61
                $region58: #{up_merge_forward.2} parent=46 // loop_body
                  %v307 = vld [vmem:[%s305] sm:%s298]
                  %308 = vst [vmem:[%s306] sm:%s298] %v307
                  %v309 = vld [vmem:[%s305 + $0x1e] sm:%s298]
                  %310 = vst [vmem:[%s306 + $0x3] sm:%s298] %v309
                  %v311 = vld [vmem:[%s305 + $0x3c] sm:%s298]
                  %312 = vst [vmem:[%s306 + $0x6] sm:%s298] %v311
                  %v313 = vld [vmem:[%s305 + $0x5a] sm:%s298]
                  %314 = vst [vmem:[%s306 + $0x9] sm:%s298] %v313
                  %v315 = vld [vmem:[%s305 + $0x78] sm:%s298]
                  %316 = vst [vmem:[%s306 + $0xc] sm:%s298] %v315
                  %v317 = vld [vmem:[%s305 + $0x96] sm:%s298]
                  %318 = vst [vmem:[%s306 + $0xf] sm:%s298] %v317
                  %v319 = vld [vmem:[%s305 + $0xb4] sm:%s298]
                  %320 = vst [vmem:[%s306 + $0x12] sm:%s298] %v319
                  %v321 = vld [vmem:[%s305 + $0xd2] sm:%s298]
                  %322 = vst [vmem:[%s306 + $0x15] sm:%s298] %v321
                $region59: #{up_merge_forward.2} parent=46 // loop_footer
                  %s304 = sadd.s32 1, %s300
                $region60: #{up_merge_forward.2} parent=46 // loop_footer_branch
                  %299 = sbr.rel target = $region56
                $region61: #{up_merge_forward.2} parent=46 // loop_exit
                  _
              $region47: #{up_merge_forward.2} parent=31 // pred_fallthru
                _
            $region32: #{up_merge_forward.2} parent=27 // pred_fallthru
              _
            // Predicated region
            $region33: #{up_merge_forward.2} parent=27 // pred_check
              _
            $region34: #{up_merge_forward.2} parent=27 // pred_check_branch
              %260 = sbr.rel (0) target = $region36
            $region35: #{up_merge_forward.2} parent=27 // pred_region
              %s262 = ssub.s32 8, 1
              loop: start=0, step=1, limit=1
              $region37: #{up_merge_forward.2} parent=35 // loop_pre_header
                _
              $region38: #{up_merge_forward.2} parent=35 // loop_header
                %s264 = sphi 0, %s268
                %p265 = scmp.ge.s32.totalorder %s264, 1
                %s269 = sphi %s254, %s254
                %s270 = sphi %s249, %s249
              $region39: #{up_merge_forward.2} parent=35 // loop_header_branch
                %267 = sbr.rel (%p265) target = $region43
              $region40: #{up_merge_forward.2} parent=35 // loop_body
                %v271 = vld [vmem:[%s269] sm:%s262]
                %272 = vst [vmem:[%s270] sm:%s262] %v271
                %v273 = vld [vmem:[%s269 + $0x1e] sm:%s262]
                %274 = vst [vmem:[%s270 + $0x3] sm:%s262] %v273
                %v275 = vld [vmem:[%s269 + $0x3c] sm:%s262]
                %276 = vst [vmem:[%s270 + $0x6] sm:%s262] %v275
                %v277 = vld [vmem:[%s269 + $0x5a] sm:%s262]
                %278 = vst [vmem:[%s270 + $0x9] sm:%s262] %v277
                %v279 = vld [vmem:[%s269 + $0x78] sm:%s262]
                %280 = vst [vmem:[%s270 + $0xc] sm:%s262] %v279
                %v281 = vld [vmem:[%s269 + $0x96] sm:%s262]
                %282 = vst [vmem:[%s270 + $0xf] sm:%s262] %v281
                %v283 = vld [vmem:[%s269 + $0xb4] sm:%s262]
                %284 = vst [vmem:[%s270 + $0x12] sm:%s262] %v283
                %v285 = vld [vmem:[%s269 + $0xd2] sm:%s262]
                %286 = vst [vmem:[%s270 + $0x15] sm:%s262] %v285
              $region41: #{up_merge_forward.2} parent=35 // loop_footer
                %s268 = sadd.s32 1, %s264
              $region42: #{up_merge_forward.2} parent=35 // loop_footer_branch
                %263 = sbr.rel target = $region38
              $region43: #{up_merge_forward.2} parent=35 // loop_exit
                _
            $region36: #{up_merge_forward.2} parent=27 // pred_fallthru
              _
          $region28: #{up_merge_forward.2} parent=23 // pred_fallthru
            _
          %323 = vnop
        $region24: #{up_merge_forward.2} parent=19 // pred_fallthru
          _
        // Predicated region
        $region62: #{up_merge_forward.2} parent=19 // pred_check
          %p324 = pneg %p86
        $region63: #{up_merge_forward.2} parent=19 // pred_check_branch
          %326 = sbr.rel (%p324) target = $region65
        $region64: #{up_merge_forward.2} parent=19 // pred_region
          %s327 = sand.u32 %s76, 1
          %s328 = sand.u32 %s76, 1
          %s329 = smul.addr %s328, 12
          %s330 = scalar_lea.vmem [#allocation3], %s329
          %s331 = sadd.s32 %s21, %s22
          %s332 = smul.addr %s331, 3
          %s333 = smul.addr %s20, 120
          %s334 = sadd.s32 %s332, %s333
          %s335 = scalar_lea.vmem %s1, %s334
          // Predicated region
          $region66: #{up_merge_forward.2} parent=64 // pred_check
            _
          $region67: #{up_merge_forward.2} parent=64 // pred_check_branch
            %337 = sbr.rel (0) target = $region69
          $region68: #{up_merge_forward.2} parent=64 // pred_region
            // Predicated region
            $region70: #{up_merge_forward.2} parent=68 // pred_check
              _
            $region71: #{up_merge_forward.2} parent=68 // pred_check_branch
              %339 = sbr.rel target = $region73
            $region72: #{up_merge_forward.2} parent=68 // pred_region
              // Predicated region
              $region85: #{up_merge_forward.2} parent=72 // pred_check
                _
              $region86: #{up_merge_forward.2} parent=72 // pred_check_branch
                %361 = sbr.rel (0) target = $region88
              $region87: #{up_merge_forward.2} parent=72 // pred_region
                loop: start=0, step=1, limit=1
                $region89: #{up_merge_forward.2} parent=87 // loop_pre_header
                  _
                $region90: #{up_merge_forward.2} parent=87 // loop_header
                  %s363 = sphi 0, %s367
                  %p364 = scmp.ge.s32.totalorder %s363, 1
                  %s368 = sphi %s335, %s335
                  %s369 = sphi %s330, %s330
                $region91: #{up_merge_forward.2} parent=87 // loop_header_branch
                  %366 = sbr.rel (%p364) target = $region95
                $region92: #{up_merge_forward.2} parent=87 // loop_body
                  _
                $region93: #{up_merge_forward.2} parent=87 // loop_footer
                  %s367 = sadd.s32 1, %s363
                $region94: #{up_merge_forward.2} parent=87 // loop_footer_branch
                  %362 = sbr.rel target = $region90
                $region95: #{up_merge_forward.2} parent=87 // loop_exit
                  _
                %s371 = ssub.s32 8, 1
                loop: start=0, step=1, limit=1
                $region96: #{up_merge_forward.2} parent=87 // loop_pre_header
                  _
                $region97: #{up_merge_forward.2} parent=87 // loop_header
                  %s373 = sphi 0, %s377
                  %p374 = scmp.ge.s32.totalorder %s373, 1
                  %s378 = sphi %s335, %s335
                  %s379 = sphi %s330, %s330
                $region98: #{up_merge_forward.2} parent=87 // loop_header_branch
                  %376 = sbr.rel (%p374) target = $region102
                $region99: #{up_merge_forward.2} parent=87 // loop_body
                  %v380 = vld [vmem:[%s378] sm:%s371]
                  %381 = vst [vmem:[%s379] sm:%s371] %v380
                  %v382 = vld [vmem:[%s378 + $0x1e] sm:%s371]
                  %383 = vst [vmem:[%s379 + $0x3] sm:%s371] %v382
                  %v384 = vld [vmem:[%s378 + $0x3c] sm:%s371]
                  %385 = vst [vmem:[%s379 + $0x6] sm:%s371] %v384
                  %v386 = vld [vmem:[%s378 + $0x5a] sm:%s371]
                  %387 = vst [vmem:[%s379 + $0x9] sm:%s371] %v386
                $region100: #{up_merge_forward.2} parent=87 // loop_footer
                  %s377 = sadd.s32 1, %s373
                $region101: #{up_merge_forward.2} parent=87 // loop_footer_branch
                  %372 = sbr.rel target = $region97
                $region102: #{up_merge_forward.2} parent=87 // loop_exit
                  _
              $region88: #{up_merge_forward.2} parent=72 // pred_fallthru
                _
            $region73: #{up_merge_forward.2} parent=68 // pred_fallthru
              _
            // Predicated region
            $region74: #{up_merge_forward.2} parent=68 // pred_check
              _
            $region75: #{up_merge_forward.2} parent=68 // pred_check_branch
              %341 = sbr.rel (0) target = $region77
            $region76: #{up_merge_forward.2} parent=68 // pred_region
              %s343 = ssub.s32 8, 1
              loop: start=0, step=1, limit=1
              $region78: #{up_merge_forward.2} parent=76 // loop_pre_header
                _
              $region79: #{up_merge_forward.2} parent=76 // loop_header
                %s345 = sphi 0, %s349
                %p346 = scmp.ge.s32.totalorder %s345, 1
                %s350 = sphi %s335, %s335
                %s351 = sphi %s330, %s330
              $region80: #{up_merge_forward.2} parent=76 // loop_header_branch
                %348 = sbr.rel (%p346) target = $region84
              $region81: #{up_merge_forward.2} parent=76 // loop_body
                %v352 = vld [vmem:[%s350] sm:%s343]
                %353 = vst [vmem:[%s351] sm:%s343] %v352
                %v354 = vld [vmem:[%s350 + $0x1e] sm:%s343]
                %355 = vst [vmem:[%s351 + $0x3] sm:%s343] %v354
                %v356 = vld [vmem:[%s350 + $0x3c] sm:%s343]
                %357 = vst [vmem:[%s351 + $0x6] sm:%s343] %v356
                %v358 = vld [vmem:[%s350 + $0x5a] sm:%s343]
                %359 = vst [vmem:[%s351 + $0x9] sm:%s343] %v358
              $region82: #{up_merge_forward.2} parent=76 // loop_footer
                %s349 = sadd.s32 1, %s345
              $region83: #{up_merge_forward.2} parent=76 // loop_footer_branch
                %344 = sbr.rel target = $region79
              $region84: #{up_merge_forward.2} parent=76 // loop_exit
                _
            $region77: #{up_merge_forward.2} parent=68 // pred_fallthru
              _
          $region69: #{up_merge_forward.2} parent=64 // pred_fallthru
            _
          %388 = vnop
        $region65: #{up_merge_forward.2} parent=19 // pred_fallthru
          _
        // Predicated region
        $region103: #{up_merge_forward.2} parent=19 // pred_check
          %p389 = pneg %p112
        $region104: #{up_merge_forward.2} parent=19 // pred_check_branch
          %391 = sbr.rel (%p389) target = $region106
        $region105: #{up_merge_forward.2} parent=19 // pred_region
          %p392 = scmp.lt.s32.totalorder %s22, 2
          %s393 = scalar_select %p392, %s22, 2
          %s394 = smul.addr %s393, 9
          %s395 = smul.addr %s394, 2
          %s396 = scalar_lea.vmem %s2, %s395
        $region106: #{up_merge_forward.2} parent=19 // pred_fallthru
          _
        // Predicated region
        $region107: #{up_merge_forward.2} parent=19 // pred_check
          %p397 = pneg %p138
        $region108: #{up_merge_forward.2} parent=19 // pred_check_branch
          %399 = sbr.rel (%p397) target = $region110
        $region109: #{up_merge_forward.2} parent=19 // pred_region
          %p400 = scmp.lt.s32.totalorder %s22, 2
          %s401 = scalar_select %p400, %s22, 2
          %s402 = smul.addr %s401, 9
          %s403 = smul.addr %s402, 2
          %s404 = scalar_lea.vmem %s3, %s403
        $region110: #{up_merge_forward.2} parent=19 // pred_fallthru
          _
      $region20: #{up_merge_forward.2} parent=5 // pred_fallthru
        _
      %p405 = scmp.le.s32.totalorder 1, %s13
      %p406 = scmp.lt.s32.totalorder %s13, 49
      %p407 = pnand %p405, %p406
      %p408 = pneg %p407
      // Predicated region
      $region111: #{up_merge_forward.2} parent=5 // pred_check
        _
      $region112: #{up_merge_forward.2} parent=5 // pred_check_branch
        %410 = sbr.rel (%p407) target = $region114
      $region113: #{up_merge_forward.2} parent=5 // pred_region
        %s411 = ssub.s32 %s13, 1
        %s412 = sand.u32 %s49, 1
        %s413 = sand.u32 %s49, 1
        %s414 = smul.addr %s413, 24
        %s415 = scalar_lea.vmem [#allocation2], %s414
        // Predicated region
        $region115: #{up_merge_forward.2} parent=113 // pred_check
          %p416 = pneg %p62
        $region116: #{up_merge_forward.2} parent=113 // pred_check_branch
          %418 = sbr.rel (%p416) target = $region118
        $region117: #{up_merge_forward.2} parent=113 // pred_region
          _
        $region118: #{up_merge_forward.2} parent=113 // pred_fallthru
          _
        %s419 = sand.u32 %s79, 1
        %s420 = sand.u32 %s79, 1
        %s421 = smul.addr %s420, 12
        %s422 = scalar_lea.vmem [#allocation3], %s421
        // Predicated region
        $region119: #{up_merge_forward.2} parent=113 // pred_check
          %p423 = pneg %p92
        $region120: #{up_merge_forward.2} parent=113 // pred_check_branch
          %425 = sbr.rel (%p423) target = $region122
        $region121: #{up_merge_forward.2} parent=113 // pred_region
          _
        $region122: #{up_merge_forward.2} parent=113 // pred_fallthru
          _
        %s426 = sand.u32 %s49, 1
        %s427 = sand.u32 %s49, 1
        %s428 = smul.addr %s427, 24
        %s429 = scalar_lea.vmem [#allocation2], %s428
        %p430 = pneg %p62
        %p431 = pneg %p59
        %s432 = sand.u32 %s79, 1
        %s433 = sand.u32 %s79, 1
        %s434 = smul.addr %s433, 12
        %s435 = scalar_lea.vmem [#allocation3], %s434
        %p436 = pneg %p92
        %p437 = pneg %p89
        %p438 = scmp.lt.s32.totalorder %s25, 2
        %s439 = scalar_select %p438, %s25, 2
        %s440 = smul.addr %s439, 9
        %s441 = smul.addr %s440, 2
        %s442 = scalar_lea.vmem %s2, %s441
        %p443 = pneg %p118
        %p444 = pneg %p115
        %p445 = scmp.lt.s32.totalorder %s25, 2
        %s446 = scalar_select %p445, %s25, 2
        %s447 = smul.addr %s446, 9
        %s448 = smul.addr %s447, 2
        %s449 = scalar_lea.vmem %s3, %s448
        %p450 = pneg %p144
        %p451 = pneg %p141
        %p452 = pneg %p165
        %p453 = pneg %p162
        %p454 = pneg %p193
        %p455 = pneg %p190
        %s456 = sand.u32 %s180, 1
        %s457 = sand.u32 %s180, 1
        %s458 = smul.addr %s457, 12
        %s459 = scalar_lea.vmem [#allocation4], %s458
        %p460 = pneg %p221
        %p461 = pneg %p218
        %p462 = scmp.lt.s32.totalorder %s23, 1
        %s463 = scalar_select %p462, %s23, 1
        %p464 = scmp.lt.s32.totalorder %s24, 7
        %s465 = scalar_select %p464, %s24, 7
        %s466 = smul.addr %s463, 8
        %s467 = sadd.s32 %s465, %s466
        %s468 = smul.addr %s467, 4
        %s469 = scalar_lea.vmem %s6, %s468
        %s470 = sadd.s32 %s24, %s25
        %s471 = sadd.s32 %s24, %s25
        %p472 = scmp.lt.s32.totalorder %s25, 2
        %s473 = scalar_select %p472, %s25, 2
        %s474 = smul.addr %s473, 9
        %s475 = smul.addr %s474, 2
        %s476 = scalar_lea.vmem %s2, %s475
        %p477 = scmp.lt.s32.totalorder %s25, 2
        %s478 = scalar_select %p477, %s25, 2
        %s479 = smul.addr %s478, 9
        %s480 = smul.addr %s479, 2
        %s481 = scalar_lea.vmem %s3, %s480
        %p482 = scmp.lt.s32.totalorder %s23, 1
        %s483 = scalar_select %p482, %s23, 1
        %p484 = scmp.lt.s32.totalorder %s24, 7
        %s485 = scalar_select %p484, %s24, 7
        %s486 = smul.addr %s483, 8
        %s487 = sadd.s32 %s485, %s486
        %s488 = smul.addr %s487, 4
        %s489 = scalar_lea.vmem %s6, %s488
        %v491 = vld [vmem:[%s415] sm:$0x7]
        %v492 = vld [vmem:[%s415 + $0x3] sm:$0x7]
        %v493 = vld [vmem:[%s415 + $0x6] sm:$0x7]
        %v494 = vld [vmem:[%s415 + $0x9] sm:$0x7]
        %v495 = vld [vmem:[%s415 + $0xc] sm:$0x7]
        %v496 = vld [vmem:[%s415 + $0xf] sm:$0x7]
        %v497 = vld [vmem:[%s415 + $0x12] sm:$0x7]
        %v498 = vld [vmem:[%s415 + $0x15] sm:$0x7]
        %v499 = vld [vmem:[%s422] sm:$0x7]
        %v500 = vld [vmem:[%s422 + $0x3] sm:$0x7]
        %v501 = vld [vmem:[%s422 + $0x6] sm:$0x7]
        %v502 = vld [vmem:[%s422 + $0x9] sm:$0x7]
        %v503 = vld [vmem:[%s476] sm:$0x3]
        %v504 = vld [vmem:[%s481] sm:$0x3]
        %v510 = vunpack.c.l.s4 1966171168
        %v511 = vunpack.c.0.s8 %v510
        %v512 = vlaneseq
        %v513 = vshrl.u32 %v512, 7
        %v514 = vsub.s32 %v511, %v513
        %v515 = vrot.slane %v499, %v514
        %v516 = vcombine.high %v515, %v515
        %v518 = vunpack.c.l.s4 1966171168
        %v519 = vunpack.c.0.s8 %v518
        %v520 = vlaneseq
        %v521 = vshrl.u32 %v520, 7
        %v522 = vsub.s32 %v519, %v521
        %v523 = vrot.slane %v515, %v522
        %v525 = vunpack.c.l.s4 1966171168
        %v526 = vunpack.c.0.s8 %v525
        %v527 = vlaneseq
        %v528 = vshrl.u32 %v527, 7
        %v529 = vsub.s32 %v526, %v528
        %v530 = vrot.slane %v516, %v529
        %v531 = vcombine.high %v523, %v523
        %v533 = vunpack.c.l.s4 1966171168
        %v534 = vunpack.c.0.s8 %v533
        %v535 = vlaneseq
        %v536 = vshrl.u32 %v535, 7
        %v537 = vsub.s32 %v534, %v536
        %v538 = vrot.slane %v500, %v537
        %v539 = vcombine.high %v538, %v538
        %v541 = vunpack.c.l.s4 1966171168
        %v542 = vunpack.c.0.s8 %v541
        %v543 = vlaneseq
        %v544 = vshrl.u32 %v543, 7
        %v545 = vsub.s32 %v542, %v544
        %v546 = vrot.slane %v538, %v545
        %v548 = vunpack.c.l.s4 1966171168
        %v549 = vunpack.c.0.s8 %v548
        %v550 = vlaneseq
        %v551 = vshrl.u32 %v550, 7
        %v552 = vsub.s32 %v549, %v551
        %v553 = vrot.slane %v539, %v552
        %v554 = vcombine.high %v546, %v546
        %v556 = vunpack.c.l.s4 1966171168
        %v557 = vunpack.c.0.s8 %v556
        %v558 = vlaneseq
        %v559 = vshrl.u32 %v558, 7
        %v560 = vsub.s32 %v557, %v559
        %v561 = vrot.slane %v501, %v560
        %v562 = vcombine.high %v561, %v561
        %v564 = vunpack.c.l.s4 1966171168
        %v565 = vunpack.c.0.s8 %v564
        %v566 = vlaneseq
        %v567 = vshrl.u32 %v566, 7
        %v568 = vsub.s32 %v565, %v567
        %v569 = vrot.slane %v561, %v568
        %v571 = vunpack.c.l.s4 1966171168
        %v572 = vunpack.c.0.s8 %v571
        %v573 = vlaneseq
        %v574 = vshrl.u32 %v573, 7
        %v575 = vsub.s32 %v572, %v574
        %v576 = vrot.slane %v562, %v575
        %v577 = vcombine.high %v569, %v569
        %v579 = vunpack.c.l.s4 1966171168
        %v580 = vunpack.c.0.s8 %v579
        %v581 = vlaneseq
        %v582 = vshrl.u32 %v581, 7
        %v583 = vsub.s32 %v580, %v582
        %v584 = vrot.slane %v502, %v583
        %v585 = vcombine.high %v584, %v584
        %v587 = vunpack.c.l.s4 1966171168
        %v588 = vunpack.c.0.s8 %v587
        %v589 = vlaneseq
        %v590 = vshrl.u32 %v589, 7
        %v591 = vsub.s32 %v588, %v590
        %v592 = vrot.slane %v584, %v591
        %v594 = vunpack.c.l.s4 1966171168
        %v595 = vunpack.c.0.s8 %v594
        %v596 = vlaneseq
        %v597 = vshrl.u32 %v596, 7
        %v598 = vsub.s32 %v595, %v597
        %v599 = vrot.slane %v585, %v598
        %v600 = vcombine.high %v592, %v592
        %v601 = vunpack.c.l.b16 %v523
        %v602 = vunpack.c.l.b16 %v530
        %v603 = vunpack.c.l.b16 %v531
        %v604 = vunpack.c.l.b16 %v546
        %v605 = vunpack.c.l.b16 %v553
        %v606 = vunpack.c.l.b16 %v554
        %v607 = vunpack.c.l.b16 %v569
        %v608 = vunpack.c.l.b16 %v576
        %v609 = vunpack.c.l.b16 %v577
        %v610 = vunpack.c.l.b16 %v592
        %v611 = vunpack.c.l.b16 %v599
        %v612 = vunpack.c.l.b16 %v600
        %v613 = vrot.slane %v604, 7
        %vm614 = vcmask 1041409
        %v615 = vsel %vm614, %v613, %v601
        %v616 = vrot.slane %v607, 6
        %vm617 = vcmask 1042434
        %v618 = vsel %vm617, %v616, %v615
        %v619 = vrot.slane %v610, 5
        %vm620 = vcmask 1043459
        %v621 = vsel %vm620, %v619, %v618
        %v622 = vrot.slane %v605, 7
        %v623 = vsel %vm614, %v622, %v602
        %v624 = vrot.slane %v608, 6
        %v625 = vsel %vm617, %v624, %v623
        %v626 = vrot.slane %v611, 5
        %v627 = vsel %vm620, %v626, %v625
        %v628 = vrot.slane %v606, 7
        %v629 = vsel %vm614, %v628, %v603
        %v630 = vrot.slane %v609, 6
        %v631 = vsel %vm617, %v630, %v629
        %v632 = vrot.slane %v612, 5
        %v633 = vsel %vm620, %v632, %v631
        %v634 = vpack.c.b16 %v621, %v621
        %v635 = vpack.c.b16 %v627, %v627
        %v636 = vpack.c.b16 %v633, %v633
        %vm637 = vcmask 31744
        %v639 = vsel %vm637, %v504, 0
        %vm641 = vcmask 1041408
        %v643 = vsel %vm641, %v634, 0
        %v646 = vsel %vm641, %v635, 0
        %v649 = vsel %vm641, %v636, 0
        %651 = vmatprep.subr.bf16.mxu0 0
        %652 = vmatpush1.bf16.msra.mxu0 0
        %653 = vmatprep.subr.bf16.mxu0 0
        %654 = vmatpush1.bf16.msra.mxu0 0
        %655 = vmatprep.subr.bf16.mxu0 0
        %656 = vmatpush1.bf16.msra.mxu0 0
        %657 = vmatprep.subr.bf16.mxu0 0
        %658 = vmatpush1.bf16.msra.mxu0 0
        %659 = vmatprep.subr.bf16.mxu0 0
        %660 = vmatpush1.bf16.msra.mxu0 0
        %661 = vmatprep.subr.bf16.mxu0 0
        %662 = vmatpush1.bf16.msra.mxu0 0
        %663 = vmatprep.subr.bf16.mxu0 0
        %664 = vmatpush1.bf16.msra.mxu0 0
        %665 = vmatprep.subr.bf16.mxu0 %v646
        %666 = vmatpush1.bf16.msra.mxu0 %v643
        %667 = vmatprep.subr.bf16.mxu0 0
        %668 = vmatpush2.bf16.msra.mxu0 0
        %669 = vmatprep.subr.bf16.mxu0 0
        %670 = vmatpush2.bf16.msra.mxu0 0
        %671 = vmatprep.subr.bf16.mxu0 0
        %672 = vmatpush2.bf16.msra.mxu0 0
        %673 = vmatprep.subr.bf16.mxu0 0
        %674 = vmatpush2.bf16.msra.mxu0 0
        %675 = vmatprep.subr.bf16.mxu0 0
        %676 = vmatpush2.bf16.msra.mxu0 0
        %677 = vmatprep.subr.bf16.mxu0 0
        %678 = vmatpush2.bf16.msra.mxu0 0
        %679 = vmatprep.subr.bf16.mxu0 0
        %680 = vmatpush2.bf16.msra.mxu0 0
        %681 = vmatprep.subr.bf16.mxu0 0
        %682 = vmatpush2.bf16.msra.mxu0 0
        %683 = vmatprep.mubr.bf16.mxu0 0
        %684 = vmatmul.mubr.bf16.gmra.mxu0 %v639
        %v685 = vpop.f32.mrf.mxu0
        %v686 = vadd.f32 0.0, %v685
        %v687 = vpop.f32.mrf.mxu0
        %v688 = vadd.f32 0.0, %v687
        %v689 = vpop.f32.mrf.mxu0
        %v690 = vpop.f32.mrf.mxu0
        %691 = vdwg.mxu0
        %692 = vmatprep.subr.bf16.mxu0 0
        %693 = vmatpush1.bf16.msra.mxu0 0
        %694 = vmatprep.subr.bf16.mxu0 0
        %695 = vmatpush1.bf16.msra.mxu0 0
        %696 = vmatprep.subr.bf16.mxu0 0
        %697 = vmatpush1.bf16.msra.mxu0 0
        %698 = vmatprep.subr.bf16.mxu0 0
        %699 = vmatpush1.bf16.msra.mxu0 0
        %700 = vmatprep.subr.bf16.mxu0 0
        %701 = vmatpush1.bf16.msra.mxu0 0
        %702 = vmatprep.subr.bf16.mxu0 0
        %703 = vmatpush1.bf16.msra.mxu0 0
        %704 = vmatprep.subr.bf16.mxu0 0
        %705 = vmatpush1.bf16.msra.mxu0 0
        %706 = vmatprep.subr.bf16.mxu0 0
        %707 = vmatpush1.bf16.msra.mxu0 %v649
        %708 = vmatprep.subr.bf16.mxu0 0
        %709 = vmatpush2.bf16.msra.mxu0 0
        %710 = vmatprep.subr.bf16.mxu0 0
        %711 = vmatpush2.bf16.msra.mxu0 0
        %712 = vmatprep.subr.bf16.mxu0 0
        %713 = vmatpush2.bf16.msra.mxu0 0
        %714 = vmatprep.subr.bf16.mxu0 0
        %715 = vmatpush2.bf16.msra.mxu0 0
        %716 = vmatprep.subr.bf16.mxu0 0
        %717 = vmatpush2.bf16.msra.mxu0 0
        %718 = vmatprep.subr.bf16.mxu0 0
        %719 = vmatpush2.bf16.msra.mxu0 0
        %720 = vmatprep.subr.bf16.mxu0 0
        %721 = vmatpush2.bf16.msra.mxu0 0
        %722 = vmatprep.subr.bf16.mxu0 0
        %723 = vmatpush2.bf16.msra.mxu0 0
        %724 = vmatprep.mubr.bf16.mxu0 0
        %725 = vmatmul.mubr.bf16.gmra.mxu0 %v639
        %v726 = vpop.f32.mrf.mxu0
        %v727 = vadd.f32 0.0, %v726
        %v728 = vpop.f32.mrf.mxu0
        %v729 = vpop.f32.mrf.mxu0
        %v730 = vpop.f32.mrf.mxu0
        %731 = vdwg.mxu0
        %v741 = vunpack.c.l.s4 1966171168
        %v742 = vunpack.c.0.s8 %v741
        %v743 = vlaneseq
        %v744 = vshrl.u32 %v743, 7
        %v745 = vsub.s32 %v742, %v744
        %v746 = vrot.slane %v491, %v745
        %v747 = vcombine.high %v746, %v746
        %v749 = vunpack.c.l.s4 1966171168
        %v750 = vunpack.c.0.s8 %v749
        %v751 = vlaneseq
        %v752 = vshrl.u32 %v751, 7
        %v753 = vsub.s32 %v750, %v752
        %v754 = vrot.slane %v746, %v753
        %v756 = vunpack.c.l.s4 1966171168
        %v757 = vunpack.c.0.s8 %v756
        %v758 = vlaneseq
        %v759 = vshrl.u32 %v758, 7
        %v760 = vsub.s32 %v757, %v759
        %v761 = vrot.slane %v747, %v760
        %v762 = vcombine.high %v754, %v754
        %v764 = vunpack.c.l.s4 1966171168
        %v765 = vunpack.c.0.s8 %v764
        %v766 = vlaneseq
        %v767 = vshrl.u32 %v766, 7
        %v768 = vsub.s32 %v765, %v767
        %v769 = vrot.slane %v492, %v768
        %v770 = vcombine.high %v769, %v769
        %v772 = vunpack.c.l.s4 1966171168
        %v773 = vunpack.c.0.s8 %v772
        %v774 = vlaneseq
        %v775 = vshrl.u32 %v774, 7
        %v776 = vsub.s32 %v773, %v775
        %v777 = vrot.slane %v769, %v776
        %v779 = vunpack.c.l.s4 1966171168
        %v780 = vunpack.c.0.s8 %v779
        %v781 = vlaneseq
        %v782 = vshrl.u32 %v781, 7
        %v783 = vsub.s32 %v780, %v782
        %v784 = vrot.slane %v770, %v783
        %v785 = vcombine.high %v777, %v777
        %v787 = vunpack.c.l.s4 1966171168
        %v788 = vunpack.c.0.s8 %v787
        %v789 = vlaneseq
        %v790 = vshrl.u32 %v789, 7
        %v791 = vsub.s32 %v788, %v790
        %v792 = vrot.slane %v493, %v791
        %v793 = vcombine.high %v792, %v792
        %v795 = vunpack.c.l.s4 1966171168
        %v796 = vunpack.c.0.s8 %v795
        %v797 = vlaneseq
        %v798 = vshrl.u32 %v797, 7
        %v799 = vsub.s32 %v796, %v798
        %v800 = vrot.slane %v792, %v799
        %v802 = vunpack.c.l.s4 1966171168
        %v803 = vunpack.c.0.s8 %v802
        %v804 = vlaneseq
        %v805 = vshrl.u32 %v804, 7
        %v806 = vsub.s32 %v803, %v805
        %v807 = vrot.slane %v793, %v806
        %v808 = vcombine.high %v800, %v800
        %v810 = vunpack.c.l.s4 1966171168
        %v811 = vunpack.c.0.s8 %v810
        %v812 = vlaneseq
        %v813 = vshrl.u32 %v812, 7
        %v814 = vsub.s32 %v811, %v813
        %v815 = vrot.slane %v494, %v814
        %v816 = vcombine.high %v815, %v815
        %v818 = vunpack.c.l.s4 1966171168
        %v819 = vunpack.c.0.s8 %v818
        %v820 = vlaneseq
        %v821 = vshrl.u32 %v820, 7
        %v822 = vsub.s32 %v819, %v821
        %v823 = vrot.slane %v815, %v822
        %v825 = vunpack.c.l.s4 1966171168
        %v826 = vunpack.c.0.s8 %v825
        %v827 = vlaneseq
        %v828 = vshrl.u32 %v827, 7
        %v829 = vsub.s32 %v826, %v828
        %v830 = vrot.slane %v816, %v829
        %v831 = vcombine.high %v823, %v823
        %v833 = vunpack.c.l.s4 1966171168
        %v834 = vunpack.c.0.s8 %v833
        %v835 = vlaneseq
        %v836 = vshrl.u32 %v835, 7
        %v837 = vsub.s32 %v834, %v836
        %v838 = vrot.slane %v495, %v837
        %v839 = vcombine.high %v838, %v838
        %v841 = vunpack.c.l.s4 1966171168
        %v842 = vunpack.c.0.s8 %v841
        %v843 = vlaneseq
        %v844 = vshrl.u32 %v843, 7
        %v845 = vsub.s32 %v842, %v844
        %v846 = vrot.slane %v838, %v845
        %v848 = vunpack.c.l.s4 1966171168
        %v849 = vunpack.c.0.s8 %v848
        %v850 = vlaneseq
        %v851 = vshrl.u32 %v850, 7
        %v852 = vsub.s32 %v849, %v851
        %v853 = vrot.slane %v839, %v852
        %v854 = vcombine.high %v846, %v846
        %v856 = vunpack.c.l.s4 1966171168
        %v857 = vunpack.c.0.s8 %v856
        %v858 = vlaneseq
        %v859 = vshrl.u32 %v858, 7
        %v860 = vsub.s32 %v857, %v859
        %v861 = vrot.slane %v496, %v860
        %v862 = vcombine.high %v861, %v861
        %v864 = vunpack.c.l.s4 1966171168
        %v865 = vunpack.c.0.s8 %v864
        %v866 = vlaneseq
        %v867 = vshrl.u32 %v866, 7
        %v868 = vsub.s32 %v865, %v867
        %v869 = vrot.slane %v861, %v868
        %v871 = vunpack.c.l.s4 1966171168
        %v872 = vunpack.c.0.s8 %v871
        %v873 = vlaneseq
        %v874 = vshrl.u32 %v873, 7
        %v875 = vsub.s32 %v872, %v874
        %v876 = vrot.slane %v862, %v875
        %v877 = vcombine.high %v869, %v869
        %v879 = vunpack.c.l.s4 1966171168
        %v880 = vunpack.c.0.s8 %v879
        %v881 = vlaneseq
        %v882 = vshrl.u32 %v881, 7
        %v883 = vsub.s32 %v880, %v882
        %v884 = vrot.slane %v497, %v883
        %v885 = vcombine.high %v884, %v884
        %v887 = vunpack.c.l.s4 1966171168
        %v888 = vunpack.c.0.s8 %v887
        %v889 = vlaneseq
        %v890 = vshrl.u32 %v889, 7
        %v891 = vsub.s32 %v888, %v890
        %v892 = vrot.slane %v884, %v891
        %v894 = vunpack.c.l.s4 1966171168
        %v895 = vunpack.c.0.s8 %v894
        %v896 = vlaneseq
        %v897 = vshrl.u32 %v896, 7
        %v898 = vsub.s32 %v895, %v897
        %v899 = vrot.slane %v885, %v898
        %v900 = vcombine.high %v892, %v892
        %v902 = vunpack.c.l.s4 1966171168
        %v903 = vunpack.c.0.s8 %v902
        %v904 = vlaneseq
        %v905 = vshrl.u32 %v904, 7
        %v906 = vsub.s32 %v903, %v905
        %v907 = vrot.slane %v498, %v906
        %v908 = vcombine.high %v907, %v907
        %v910 = vunpack.c.l.s4 1966171168
        %v911 = vunpack.c.0.s8 %v910
        %v912 = vlaneseq
        %v913 = vshrl.u32 %v912, 7
        %v914 = vsub.s32 %v911, %v913
        %v915 = vrot.slane %v907, %v914
        %v917 = vunpack.c.l.s4 1966171168
        %v918 = vunpack.c.0.s8 %v917
        %v919 = vlaneseq
        %v920 = vshrl.u32 %v919, 7
        %v921 = vsub.s32 %v918, %v920
        %v922 = vrot.slane %v908, %v921
        %v923 = vcombine.high %v915, %v915
        %v924 = vunpack.c.l.b16 %v754
        %v925 = vunpack.c.l.b16 %v761
        %v926 = vunpack.c.l.b16 %v762
        %v927 = vunpack.c.l.b16 %v777
        %v928 = vunpack.c.l.b16 %v784
        %v929 = vunpack.c.l.b16 %v785
        %v930 = vunpack.c.l.b16 %v800
        %v931 = vunpack.c.l.b16 %v807
        %v932 = vunpack.c.l.b16 %v808
        %v933 = vunpack.c.l.b16 %v823
        %v934 = vunpack.c.l.b16 %v830
        %v935 = vunpack.c.l.b16 %v831
        %v936 = vunpack.c.l.b16 %v846
        %v937 = vunpack.c.l.b16 %v853
        %v938 = vunpack.c.l.b16 %v854
        %v939 = vunpack.c.l.b16 %v869
        %v940 = vunpack.c.l.b16 %v876
        %v941 = vunpack.c.l.b16 %v877
        %v942 = vunpack.c.l.b16 %v892
        %v943 = vunpack.c.l.b16 %v899
        %v944 = vunpack.c.l.b16 %v900
        %v945 = vunpack.c.l.b16 %v915
        %v946 = vunpack.c.l.b16 %v922
        %v947 = vunpack.c.l.b16 %v923
        %v948 = vrot.slane %v927, 7
        %v949 = vsel %vm614, %v948, %v924
        %v950 = vrot.slane %v930, 6
        %v951 = vsel %vm617, %v950, %v949
        %v952 = vrot.slane %v933, 5
        %v953 = vsel %vm620, %v952, %v951
        %v954 = vrot.slane %v936, 4
        %vm955 = vcmask 1044484
        %v956 = vsel %vm955, %v954, %v953
        %v957 = vrot.slane %v939, 3
        %vm958 = vcmask 1045509
        %v959 = vsel %vm958, %v957, %v956
        %v960 = vrot.slane %v942, 2
        %vm961 = vcmask 1046534
        %v962 = vsel %vm961, %v960, %v959
        %v963 = vrot.slane %v945, 1
        %vm964 = vcmask 1047559
        %v965 = vsel %vm964, %v963, %v962
        %v966 = vrot.slane %v928, 7
        %v967 = vsel %vm614, %v966, %v925
        %v968 = vrot.slane %v931, 6
        %v969 = vsel %vm617, %v968, %v967
        %v970 = vrot.slane %v934, 5
        %v971 = vsel %vm620, %v970, %v969
        %v972 = vrot.slane %v937, 4
        %v973 = vsel %vm955, %v972, %v971
        %v974 = vrot.slane %v940, 3
        %v975 = vsel %vm958, %v974, %v973
        %v976 = vrot.slane %v943, 2
        %v977 = vsel %vm961, %v976, %v975
        %v978 = vrot.slane %v946, 1
        %v979 = vsel %vm964, %v978, %v977
        %v980 = vrot.slane %v929, 7
        %v981 = vsel %vm614, %v980, %v926
        %v982 = vrot.slane %v932, 6
        %v983 = vsel %vm617, %v982, %v981
        %v984 = vrot.slane %v935, 5
        %v985 = vsel %vm620, %v984, %v983
        %v986 = vrot.slane %v938, 4
        %v987 = vsel %vm955, %v986, %v985
        %v988 = vrot.slane %v941, 3
        %v989 = vsel %vm958, %v988, %v987
        %v990 = vrot.slane %v944, 2
        %v991 = vsel %vm961, %v990, %v989
        %v992 = vrot.slane %v947, 1
        %v993 = vsel %vm964, %v992, %v991
        %v994 = vpack.c.b16 %v965, %v965
        %v995 = vpack.c.b16 %v979, %v979
        %v996 = vpack.c.b16 %v993, %v993
        %vm997 = vcmask 64512
        %v999 = vsel %vm997, %v503, 0
        %vm1001 = vcmask 1043456
        %v1003 = vsel %vm1001, %v994, 0
        %v1006 = vsel %vm1001, %v995, 0
        %v1009 = vsel %vm1001, %v996, 0
        %1011 = vmatprep.subr.bf16.mxu0 0
        %1012 = vmatpush1.bf16.msra.mxu0 0
        %1013 = vmatprep.subr.bf16.mxu0 0
        %1014 = vmatpush1.bf16.msra.mxu0 0
        %1015 = vmatprep.subr.bf16.mxu0 0
        %1016 = vmatpush1.bf16.msra.mxu0 0
        %1017 = vmatprep.subr.bf16.mxu0 0
        %1018 = vmatpush1.bf16.msra.mxu0 0
        %1019 = vmatprep.subr.bf16.mxu0 0
        %1020 = vmatpush1.bf16.msra.mxu0 0
        %1021 = vmatprep.subr.bf16.mxu0 0
        %1022 = vmatpush1.bf16.msra.mxu0 0
        %1023 = vmatprep.subr.bf16.mxu0 0
        %1024 = vmatpush1.bf16.msra.mxu0 0
        %1025 = vmatprep.subr.bf16.mxu0 %v1006
        %1026 = vmatpush1.bf16.msra.mxu0 %v1003
        %1027 = vmatprep.subr.bf16.mxu0 0
        %1028 = vmatpush2.bf16.msra.mxu0 0
        %1029 = vmatprep.subr.bf16.mxu0 0
        %1030 = vmatpush2.bf16.msra.mxu0 0
        %1031 = vmatprep.subr.bf16.mxu0 0
        %1032 = vmatpush2.bf16.msra.mxu0 0
        %1033 = vmatprep.subr.bf16.mxu0 0
        %1034 = vmatpush2.bf16.msra.mxu0 0
        %1035 = vmatprep.subr.bf16.mxu0 0
        %1036 = vmatpush2.bf16.msra.mxu0 0
        %1037 = vmatprep.subr.bf16.mxu0 0
        %1038 = vmatpush2.bf16.msra.mxu0 0
        %1039 = vmatprep.subr.bf16.mxu0 0
        %1040 = vmatpush2.bf16.msra.mxu0 0
        %1041 = vmatprep.subr.bf16.mxu0 0
        %1042 = vmatpush2.bf16.msra.mxu0 0
        %1043 = vmatprep.mubr.bf16.mxu0 0
        %1044 = vmatmul.mubr.bf16.gmra.mxu0 %v999
        %v1045 = vpop.f32.mrf.mxu0
        %v1046 = vadd.f32 %v686, %v1045
        %v1047 = vpop.f32.mrf.mxu0
        %v1048 = vadd.f32 %v688, %v1047
        %v1049 = vpop.f32.mrf.mxu0
        %v1050 = vpop.f32.mrf.mxu0
        %1051 = vdwg.mxu0
        %1052 = vmatprep.subr.bf16.mxu0 0
        %1053 = vmatpush1.bf16.msra.mxu0 0
        %1054 = vmatprep.subr.bf16.mxu0 0
        %1055 = vmatpush1.bf16.msra.mxu0 0
        %1056 = vmatprep.subr.bf16.mxu0 0
        %1057 = vmatpush1.bf16.msra.mxu0 0
        %1058 = vmatprep.subr.bf16.mxu0 0
        %1059 = vmatpush1.bf16.msra.mxu0 0
        %1060 = vmatprep.subr.bf16.mxu0 0
        %1061 = vmatpush1.bf16.msra.mxu0 0
        %1062 = vmatprep.subr.bf16.mxu0 0
        %1063 = vmatpush1.bf16.msra.mxu0 0
        %1064 = vmatprep.subr.bf16.mxu0 0
        %1065 = vmatpush1.bf16.msra.mxu0 0
        %1066 = vmatprep.subr.bf16.mxu0 0
        %1067 = vmatpush1.bf16.msra.mxu0 %v1009
        %1068 = vmatprep.subr.bf16.mxu0 0
        %1069 = vmatpush2.bf16.msra.mxu0 0
        %1070 = vmatprep.subr.bf16.mxu0 0
        %1071 = vmatpush2.bf16.msra.mxu0 0
        %1072 = vmatprep.subr.bf16.mxu0 0
        %1073 = vmatpush2.bf16.msra.mxu0 0
        %1074 = vmatprep.subr.bf16.mxu0 0
        %1075 = vmatpush2.bf16.msra.mxu0 0
        %1076 = vmatprep.subr.bf16.mxu0 0
        %1077 = vmatpush2.bf16.msra.mxu0 0
        %1078 = vmatprep.subr.bf16.mxu0 0
        %1079 = vmatpush2.bf16.msra.mxu0 0
        %1080 = vmatprep.subr.bf16.mxu0 0
        %1081 = vmatpush2.bf16.msra.mxu0 0
        %1082 = vmatprep.subr.bf16.mxu0 0
        %1083 = vmatpush2.bf16.msra.mxu0 0
        %1084 = vmatprep.mubr.bf16.mxu0 0
        %1085 = vmatmul.mubr.bf16.gmra.mxu0 %v999
        %v1086 = vpop.f32.mrf.mxu0
        %v1087 = vadd.f32 %v727, %v1086
        %v1088 = vpop.f32.mrf.mxu0
        %v1089 = vpop.f32.mrf.mxu0
        %v1090 = vpop.f32.mrf.mxu0
        %1091 = vdwg.mxu0
        %s1092 = scalar_lea.vmem %s476, 2
        %v1093 = vld [vmem:[%s1092] sm:$0x3]
        %1094 = vrot.lane.b32.xlu0 %v994, 127
        %v1095 = vpop.permute.xlu0 %1094
        %1096 = vrot.lane.b32.xlu0 %v995, 127
        %v1097 = vpop.permute.xlu0 %1096
        %1098 = vrot.lane.b32.xlu0 %v996, 127
        %v1099 = vpop.permute.xlu0 %1098
        %vm1100 = vcmask 1039360
        %v1101 = vsel %vm1100, %v1095, %v1097
        %v1102 = vsel %vm1100, %v1097, %v1099
        %v1104 = vsel %vm997, %v1093, 0
        %v1107 = vsel %vm1001, %v1101, 0
        %v1110 = vsel %vm1001, %v1102, 0
        %v1113 = vsel %vm1001, %v1099, 0
        %1115 = vmatprep.subr.bf16.mxu0 0
        %1116 = vmatpush1.bf16.msra.mxu0 0
        %1117 = vmatprep.subr.bf16.mxu0 0
        %1118 = vmatpush1.bf16.msra.mxu0 0
        %1119 = vmatprep.subr.bf16.mxu0 0
        %1120 = vmatpush1.bf16.msra.mxu0 0
        %1121 = vmatprep.subr.bf16.mxu0 0
        %1122 = vmatpush1.bf16.msra.mxu0 0
        %1123 = vmatprep.subr.bf16.mxu0 0
        %1124 = vmatpush1.bf16.msra.mxu0 0
        %1125 = vmatprep.subr.bf16.mxu0 0
        %1126 = vmatpush1.bf16.msra.mxu0 0
        %1127 = vmatprep.subr.bf16.mxu0 0
        %1128 = vmatpush1.bf16.msra.mxu0 0
        %1129 = vmatprep.subr.bf16.mxu0 %v1110
        %1130 = vmatpush1.bf16.msra.mxu0 %v1107
        %1131 = vmatprep.subr.bf16.mxu0 0
        %1132 = vmatpush2.bf16.msra.mxu0 0
        %1133 = vmatprep.subr.bf16.mxu0 0
        %1134 = vmatpush2.bf16.msra.mxu0 0
        %1135 = vmatprep.subr.bf16.mxu0 0
        %1136 = vmatpush2.bf16.msra.mxu0 0
        %1137 = vmatprep.subr.bf16.mxu0 0
        %1138 = vmatpush2.bf16.msra.mxu0 0
        %1139 = vmatprep.subr.bf16.mxu0 0
        %1140 = vmatpush2.bf16.msra.mxu0 0
        %1141 = vmatprep.subr.bf16.mxu0 0
        %1142 = vmatpush2.bf16.msra.mxu0 0
        %1143 = vmatprep.subr.bf16.mxu0 0
        %1144 = vmatpush2.bf16.msra.mxu0 0
        %1145 = vmatprep.subr.bf16.mxu0 0
        %1146 = vmatpush2.bf16.msra.mxu0 0
        %1147 = vmatprep.mubr.bf16.mxu0 0
        %1148 = vmatmul.mubr.bf16.gmra.mxu0 %v1104
        %v1149 = vpop.f32.mrf.mxu0
        %v1150 = vadd.f32 0.0, %v1149
        %v1151 = vpop.f32.mrf.mxu0
        %v1152 = vadd.f32 0.0, %v1151
        %v1153 = vpop.f32.mrf.mxu0
        %v1154 = vpop.f32.mrf.mxu0
        %1155 = vdwg.mxu0
        %1156 = vmatprep.subr.bf16.mxu0 0
        %1157 = vmatpush1.bf16.msra.mxu0 0
        %1158 = vmatprep.subr.bf16.mxu0 0
        %1159 = vmatpush1.bf16.msra.mxu0 0
        %1160 = vmatprep.subr.bf16.mxu0 0
        %1161 = vmatpush1.bf16.msra.mxu0 0
        %1162 = vmatprep.subr.bf16.mxu0 0
        %1163 = vmatpush1.bf16.msra.mxu0 0
        %1164 = vmatprep.subr.bf16.mxu0 0
        %1165 = vmatpush1.bf16.msra.mxu0 0
        %1166 = vmatprep.subr.bf16.mxu0 0
        %1167 = vmatpush1.bf16.msra.mxu0 0
        %1168 = vmatprep.subr.bf16.mxu0 0
        %1169 = vmatpush1.bf16.msra.mxu0 0
        %1170 = vmatprep.subr.bf16.mxu0 0
        %1171 = vmatpush1.bf16.msra.mxu0 %v1113
        %1172 = vmatprep.subr.bf16.mxu0 0
        %1173 = vmatpush2.bf16.msra.mxu0 0
        %1174 = vmatprep.subr.bf16.mxu0 0
        %1175 = vmatpush2.bf16.msra.mxu0 0
        %1176 = vmatprep.subr.bf16.mxu0 0
        %1177 = vmatpush2.bf16.msra.mxu0 0
        %1178 = vmatprep.subr.bf16.mxu0 0
        %1179 = vmatpush2.bf16.msra.mxu0 0
        %1180 = vmatprep.subr.bf16.mxu0 0
        %1181 = vmatpush2.bf16.msra.mxu0 0
        %1182 = vmatprep.subr.bf16.mxu0 0
        %1183 = vmatpush2.bf16.msra.mxu0 0
        %1184 = vmatprep.subr.bf16.mxu0 0
        %1185 = vmatpush2.bf16.msra.mxu0 0
        %1186 = vmatprep.subr.bf16.mxu0 0
        %1187 = vmatpush2.bf16.msra.mxu0 0
        %1188 = vmatprep.mubr.bf16.mxu0 0
        %1189 = vmatmul.mubr.bf16.gmra.mxu0 %v1104
        %v1190 = vpop.f32.mrf.mxu0
        %v1191 = vadd.f32 0.0, %v1190
        %v1192 = vpop.f32.mrf.mxu0
        %v1193 = vpop.f32.mrf.mxu0
        %v1194 = vpop.f32.mrf.mxu0
        %1195 = vdwg.mxu0
        %v1196 = vadd.f32 %v1046, %v1150
        %v1197 = vadd.f32 %v1048, %v1152
        %v1198 = vadd.f32 %v1087, %v1191
        %s1199 = scalar_lea.vmem %s481, 2
        %v1200 = vld [vmem:[%s1199] sm:$0x3]
        %1201 = vrot.lane.b32.xlu0 %v634, 127
        %v1202 = vpop.permute.xlu0 %1201
        %1203 = vrot.lane.b32.xlu0 %v635, 127
        %v1204 = vpop.permute.xlu0 %1203
        %1205 = vrot.lane.b32.xlu0 %v636, 127
        %v1206 = vpop.permute.xlu0 %1205
        %v1207 = vsel %vm1100, %v1202, %v1204
        %v1208 = vsel %vm1100, %v1204, %v1206
        %v1210 = vsel %vm637, %v1200, 0
        %v1213 = vsel %vm641, %v1207, 0
        %v1216 = vsel %vm641, %v1208, 0
        %v1219 = vsel %vm641, %v1206, 0
        %1221 = vmatprep.subr.bf16.mxu0 0
        %1222 = vmatpush1.bf16.msra.mxu0 0
        %1223 = vmatprep.subr.bf16.mxu0 0
        %1224 = vmatpush1.bf16.msra.mxu0 0
        %1225 = vmatprep.subr.bf16.mxu0 0
        %1226 = vmatpush1.bf16.msra.mxu0 0
        %1227 = vmatprep.subr.bf16.mxu0 0
        %1228 = vmatpush1.bf16.msra.mxu0 0
        %1229 = vmatprep.subr.bf16.mxu0 0
        %1230 = vmatpush1.bf16.msra.mxu0 0
        %1231 = vmatprep.subr.bf16.mxu0 0
        %1232 = vmatpush1.bf16.msra.mxu0 0
        %1233 = vmatprep.subr.bf16.mxu0 0
        %1234 = vmatpush1.bf16.msra.mxu0 0
        %1235 = vmatprep.subr.bf16.mxu0 %v1216
        %1236 = vmatpush1.bf16.msra.mxu0 %v1213
        %1237 = vmatprep.subr.bf16.mxu0 0
        %1238 = vmatpush2.bf16.msra.mxu0 0
        %1239 = vmatprep.subr.bf16.mxu0 0
        %1240 = vmatpush2.bf16.msra.mxu0 0
        %1241 = vmatprep.subr.bf16.mxu0 0
        %1242 = vmatpush2.bf16.msra.mxu0 0
        %1243 = vmatprep.subr.bf16.mxu0 0
        %1244 = vmatpush2.bf16.msra.mxu0 0
        %1245 = vmatprep.subr.bf16.mxu0 0
        %1246 = vmatpush2.bf16.msra.mxu0 0
        %1247 = vmatprep.subr.bf16.mxu0 0
        %1248 = vmatpush2.bf16.msra.mxu0 0
        %1249 = vmatprep.subr.bf16.mxu0 0
        %1250 = vmatpush2.bf16.msra.mxu0 0
        %1251 = vmatprep.subr.bf16.mxu0 0
        %1252 = vmatpush2.bf16.msra.mxu0 0
        %1253 = vmatprep.mubr.bf16.mxu0 0
        %1254 = vmatmul.mubr.bf16.gmra.mxu0 %v1210
        %v1255 = vpop.f32.mrf.mxu0
        %v1256 = vadd.f32 0.0, %v1255
        %v1257 = vpop.f32.mrf.mxu0
        %v1258 = vadd.f32 0.0, %v1257
        %v1259 = vpop.f32.mrf.mxu0
        %v1260 = vpop.f32.mrf.mxu0
        %1261 = vdwg.mxu0
        %1262 = vmatprep.subr.bf16.mxu0 0
        %1263 = vmatpush1.bf16.msra.mxu0 0
        %1264 = vmatprep.subr.bf16.mxu0 0
        %1265 = vmatpush1.bf16.msra.mxu0 0
        %1266 = vmatprep.subr.bf16.mxu0 0
        %1267 = vmatpush1.bf16.msra.mxu0 0
        %1268 = vmatprep.subr.bf16.mxu0 0
        %1269 = vmatpush1.bf16.msra.mxu0 0
        %1270 = vmatprep.subr.bf16.mxu0 0
        %1271 = vmatpush1.bf16.msra.mxu0 0
        %1272 = vmatprep.subr.bf16.mxu0 0
        %1273 = vmatpush1.bf16.msra.mxu0 0
        %1274 = vmatprep.subr.bf16.mxu0 0
        %1275 = vmatpush1.bf16.msra.mxu0 0
        %1276 = vmatprep.subr.bf16.mxu0 0
        %1277 = vmatpush1.bf16.msra.mxu0 %v1219
        %1278 = vmatprep.subr.bf16.mxu0 0
        %1279 = vmatpush2.bf16.msra.mxu0 0
        %1280 = vmatprep.subr.bf16.mxu0 0
        %1281 = vmatpush2.bf16.msra.mxu0 0
        %1282 = vmatprep.subr.bf16.mxu0 0
        %1283 = vmatpush2.bf16.msra.mxu0 0
        %1284 = vmatprep.subr.bf16.mxu0 0
        %1285 = vmatpush2.bf16.msra.mxu0 0
        %1286 = vmatprep.subr.bf16.mxu0 0
        %1287 = vmatpush2.bf16.msra.mxu0 0
        %1288 = vmatprep.subr.bf16.mxu0 0
        %1289 = vmatpush2.bf16.msra.mxu0 0
        %1290 = vmatprep.subr.bf16.mxu0 0
        %1291 = vmatpush2.bf16.msra.mxu0 0
        %1292 = vmatprep.subr.bf16.mxu0 0
        %1293 = vmatpush2.bf16.msra.mxu0 0
        %1294 = vmatprep.mubr.bf16.mxu0 0
        %1295 = vmatmul.mubr.bf16.gmra.mxu0 %v1210
        %v1296 = vpop.f32.mrf.mxu0
        %v1297 = vadd.f32 0.0, %v1296
        %v1298 = vpop.f32.mrf.mxu0
        %v1299 = vpop.f32.mrf.mxu0
        %v1300 = vpop.f32.mrf.mxu0
        %1301 = vdwg.mxu0
        %v1302 = vadd.f32 %v1196, %v1256
        %v1303 = vadd.f32 %v1197, %v1258
        %v1304 = vadd.f32 %v1198, %v1297
        %s1305 = scalar_lea.vmem %s476, 4
        %v1306 = vld [vmem:[%s1305] sm:$0x3]
        %1307 = vrot.lane.b32.xlu0 %v994, 126
        %v1308 = vpop.permute.xlu0 %1307
        %1309 = vrot.lane.b32.xlu0 %v995, 126
        %v1310 = vpop.permute.xlu0 %1309
        %1311 = vrot.lane.b32.xlu0 %v996, 126
        %v1312 = vpop.permute.xlu0 %1311
        %vm1313 = vcmask 1031168
        %v1314 = vsel %vm1313, %v1308, %v1310
        %v1315 = vsel %vm1313, %v1310, %v1312
        %v1317 = vsel %vm997, %v1306, 0
        %v1320 = vsel %vm1001, %v1314, 0
        %v1323 = vsel %vm1001, %v1315, 0
        %v1326 = vsel %vm1001, %v1312, 0
        %1328 = vmatprep.subr.bf16.mxu0 0
        %1329 = vmatpush1.bf16.msra.mxu0 0
        %1330 = vmatprep.subr.bf16.mxu0 0
        %1331 = vmatpush1.bf16.msra.mxu0 0
        %1332 = vmatprep.subr.bf16.mxu0 0
        %1333 = vmatpush1.bf16.msra.mxu0 0
        %1334 = vmatprep.subr.bf16.mxu0 0
        %1335 = vmatpush1.bf16.msra.mxu0 0
        %1336 = vmatprep.subr.bf16.mxu0 0
        %1337 = vmatpush1.bf16.msra.mxu0 0
        %1338 = vmatprep.subr.bf16.mxu0 0
        %1339 = vmatpush1.bf16.msra.mxu0 0
        %1340 = vmatprep.subr.bf16.mxu0 0
        %1341 = vmatpush1.bf16.msra.mxu0 0
        %1342 = vmatprep.subr.bf16.mxu0 %v1323
        %1343 = vmatpush1.bf16.msra.mxu0 %v1320
        %1344 = vmatprep.subr.bf16.mxu0 0
        %1345 = vmatpush2.bf16.msra.mxu0 0
        %1346 = vmatprep.subr.bf16.mxu0 0
        %1347 = vmatpush2.bf16.msra.mxu0 0
        %1348 = vmatprep.subr.bf16.mxu0 0
        %1349 = vmatpush2.bf16.msra.mxu0 0
        %1350 = vmatprep.subr.bf16.mxu0 0
        %1351 = vmatpush2.bf16.msra.mxu0 0
        %1352 = vmatprep.subr.bf16.mxu0 0
        %1353 = vmatpush2.bf16.msra.mxu0 0
        %1354 = vmatprep.subr.bf16.mxu0 0
        %1355 = vmatpush2.bf16.msra.mxu0 0
        %1356 = vmatprep.subr.bf16.mxu0 0
        %1357 = vmatpush2.bf16.msra.mxu0 0
        %1358 = vmatprep.subr.bf16.mxu0 0
        %1359 = vmatpush2.bf16.msra.mxu0 0
        %1360 = vmatprep.mubr.bf16.mxu0 0
        %1361 = vmatmul.mubr.bf16.gmra.mxu0 %v1317
        %v1362 = vpop.f32.mrf.mxu0
        %v1363 = vadd.f32 0.0, %v1362
        %v1364 = vpop.f32.mrf.mxu0
        %v1365 = vadd.f32 0.0, %v1364
        %v1366 = vpop.f32.mrf.mxu0
        %v1367 = vpop.f32.mrf.mxu0
        %1368 = vdwg.mxu0
        %1369 = vmatprep.subr.bf16.mxu0 0
        %1370 = vmatpush1.bf16.msra.mxu0 0
        %1371 = vmatprep.subr.bf16.mxu0 0
        %1372 = vmatpush1.bf16.msra.mxu0 0
        %1373 = vmatprep.subr.bf16.mxu0 0
        %1374 = vmatpush1.bf16.msra.mxu0 0
        %1375 = vmatprep.subr.bf16.mxu0 0
        %1376 = vmatpush1.bf16.msra.mxu0 0
        %1377 = vmatprep.subr.bf16.mxu0 0
        %1378 = vmatpush1.bf16.msra.mxu0 0
        %1379 = vmatprep.subr.bf16.mxu0 0
        %1380 = vmatpush1.bf16.msra.mxu0 0
        %1381 = vmatprep.subr.bf16.mxu0 0
        %1382 = vmatpush1.bf16.msra.mxu0 0
        %1383 = vmatprep.subr.bf16.mxu0 0
        %1384 = vmatpush1.bf16.msra.mxu0 %v1326
        %1385 = vmatprep.subr.bf16.mxu0 0
        %1386 = vmatpush2.bf16.msra.mxu0 0
        %1387 = vmatprep.subr.bf16.mxu0 0
        %1388 = vmatpush2.bf16.msra.mxu0 0
        %1389 = vmatprep.subr.bf16.mxu0 0
        %1390 = vmatpush2.bf16.msra.mxu0 0
        %1391 = vmatprep.subr.bf16.mxu0 0
        %1392 = vmatpush2.bf16.msra.mxu0 0
        %1393 = vmatprep.subr.bf16.mxu0 0
        %1394 = vmatpush2.bf16.msra.mxu0 0
        %1395 = vmatprep.subr.bf16.mxu0 0
        %1396 = vmatpush2.bf16.msra.mxu0 0
        %1397 = vmatprep.subr.bf16.mxu0 0
        %1398 = vmatpush2.bf16.msra.mxu0 0
        %1399 = vmatprep.subr.bf16.mxu0 0
        %1400 = vmatpush2.bf16.msra.mxu0 0
        %1401 = vmatprep.mubr.bf16.mxu0 0
        %1402 = vmatmul.mubr.bf16.gmra.mxu0 %v1317
        %v1403 = vpop.f32.mrf.mxu0
        %v1404 = vadd.f32 0.0, %v1403
        %v1405 = vpop.f32.mrf.mxu0
        %v1406 = vpop.f32.mrf.mxu0
        %v1407 = vpop.f32.mrf.mxu0
        %1408 = vdwg.mxu0
        %v1409 = vadd.f32 %v1302, %v1363
        %v1410 = vadd.f32 %v1303, %v1365
        %v1411 = vadd.f32 %v1304, %v1404
        %s1412 = scalar_lea.vmem %s481, 4
        %v1413 = vld [vmem:[%s1412] sm:$0x3]
        %1414 = vrot.lane.b32.xlu0 %v634, 126
        %v1415 = vpop.permute.xlu0 %1414
        %1416 = vrot.lane.b32.xlu0 %v635, 126
        %v1417 = vpop.permute.xlu0 %1416
        %1418 = vrot.lane.b32.xlu0 %v636, 126
        %v1419 = vpop.permute.xlu0 %1418
        %v1420 = vsel %vm1313, %v1415, %v1417
        %v1421 = vsel %vm1313, %v1417, %v1419
        %v1423 = vsel %vm637, %v1413, 0
        %v1426 = vsel %vm641, %v1420, 0
        %v1429 = vsel %vm641, %v1421, 0
        %v1432 = vsel %vm641, %v1419, 0
        %1434 = vmatprep.subr.bf16.mxu0 0
        %1435 = vmatpush1.bf16.msra.mxu0 0
        %1436 = vmatprep.subr.bf16.mxu0 0
        %1437 = vmatpush1.bf16.msra.mxu0 0
        %1438 = vmatprep.subr.bf16.mxu0 0
        %1439 = vmatpush1.bf16.msra.mxu0 0
        %1440 = vmatprep.subr.bf16.mxu0 0
        %1441 = vmatpush1.bf16.msra.mxu0 0
        %1442 = vmatprep.subr.bf16.mxu0 0
        %1443 = vmatpush1.bf16.msra.mxu0 0
        %1444 = vmatprep.subr.bf16.mxu0 0
        %1445 = vmatpush1.bf16.msra.mxu0 0
        %1446 = vmatprep.subr.bf16.mxu0 0
        %1447 = vmatpush1.bf16.msra.mxu0 0
        %1448 = vmatprep.subr.bf16.mxu0 %v1429
        %1449 = vmatpush1.bf16.msra.mxu0 %v1426
        %1450 = vmatprep.subr.bf16.mxu0 0
        %1451 = vmatpush2.bf16.msra.mxu0 0
        %1452 = vmatprep.subr.bf16.mxu0 0
        %1453 = vmatpush2.bf16.msra.mxu0 0
        %1454 = vmatprep.subr.bf16.mxu0 0
        %1455 = vmatpush2.bf16.msra.mxu0 0
        %1456 = vmatprep.subr.bf16.mxu0 0
        %1457 = vmatpush2.bf16.msra.mxu0 0
        %1458 = vmatprep.subr.bf16.mxu0 0
        %1459 = vmatpush2.bf16.msra.mxu0 0
        %1460 = vmatprep.subr.bf16.mxu0 0
        %1461 = vmatpush2.bf16.msra.mxu0 0
        %1462 = vmatprep.subr.bf16.mxu0 0
        %1463 = vmatpush2.bf16.msra.mxu0 0
        %1464 = vmatprep.subr.bf16.mxu0 0
        %1465 = vmatpush2.bf16.msra.mxu0 0
        %1466 = vmatprep.mubr.bf16.mxu0 0
        %1467 = vmatmul.mubr.bf16.gmra.mxu0 %v1423
        %v1468 = vpop.f32.mrf.mxu0
        %v1469 = vadd.f32 0.0, %v1468
        %v1470 = vpop.f32.mrf.mxu0
        %v1471 = vadd.f32 0.0, %v1470
        %v1472 = vpop.f32.mrf.mxu0
        %v1473 = vpop.f32.mrf.mxu0
        %1474 = vdwg.mxu0
        %1475 = vmatprep.subr.bf16.mxu0 0
        %1476 = vmatpush1.bf16.msra.mxu0 0
        %1477 = vmatprep.subr.bf16.mxu0 0
        %1478 = vmatpush1.bf16.msra.mxu0 0
        %1479 = vmatprep.subr.bf16.mxu0 0
        %1480 = vmatpush1.bf16.msra.mxu0 0
        %1481 = vmatprep.subr.bf16.mxu0 0
        %1482 = vmatpush1.bf16.msra.mxu0 0
        %1483 = vmatprep.subr.bf16.mxu0 0
        %1484 = vmatpush1.bf16.msra.mxu0 0
        %1485 = vmatprep.subr.bf16.mxu0 0
        %1486 = vmatpush1.bf16.msra.mxu0 0
        %1487 = vmatprep.subr.bf16.mxu0 0
        %1488 = vmatpush1.bf16.msra.mxu0 0
        %1489 = vmatprep.subr.bf16.mxu0 0
        %1490 = vmatpush1.bf16.msra.mxu0 %v1432
        %1491 = vmatprep.subr.bf16.mxu0 0
        %1492 = vmatpush2.bf16.msra.mxu0 0
        %1493 = vmatprep.subr.bf16.mxu0 0
        %1494 = vmatpush2.bf16.msra.mxu0 0
        %1495 = vmatprep.subr.bf16.mxu0 0
        %1496 = vmatpush2.bf16.msra.mxu0 0
        %1497 = vmatprep.subr.bf16.mxu0 0
        %1498 = vmatpush2.bf16.msra.mxu0 0
        %1499 = vmatprep.subr.bf16.mxu0 0
        %1500 = vmatpush2.bf16.msra.mxu0 0
        %1501 = vmatprep.subr.bf16.mxu0 0
        %1502 = vmatpush2.bf16.msra.mxu0 0
        %1503 = vmatprep.subr.bf16.mxu0 0
        %1504 = vmatpush2.bf16.msra.mxu0 0
        %1505 = vmatprep.subr.bf16.mxu0 0
        %1506 = vmatpush2.bf16.msra.mxu0 0
        %1507 = vmatprep.mubr.bf16.mxu0 0
        %1508 = vmatmul.mubr.bf16.gmra.mxu0 %v1423
        %v1509 = vpop.f32.mrf.mxu0
        %v1510 = vadd.f32 0.0, %v1509
        %v1511 = vpop.f32.mrf.mxu0
        %v1512 = vpop.f32.mrf.mxu0
        %v1513 = vpop.f32.mrf.mxu0
        %1514 = vdwg.mxu0
        %v1515 = vadd.f32 %v1409, %v1469
        %v1516 = vadd.f32 %v1410, %v1471
        %v1517 = vadd.f32 %v1411, %v1510
        %s1518 = scalar_lea.vmem %s476, 6
        %v1519 = vld [vmem:[%s1518] sm:$0x3]
        %1520 = vrot.lane.b32.xlu0 %v994, 110
        %v1521 = vpop.permute.xlu0 %1520
        %1522 = vrot.lane.b32.xlu0 %v995, 110
        %v1523 = vpop.permute.xlu0 %1522
        %1524 = vrot.lane.b32.xlu0 %v996, 110
        %v1525 = vpop.permute.xlu0 %1524
        %vm1526 = vcmask 900096
        %v1527 = vsel %vm1526, %v1521, %v1523
        %v1528 = vsel %vm1526, %v1523, %v1525
        %v1530 = vsel %vm997, %v1519, 0
        %v1533 = vsel %vm1001, %v1527, 0
        %v1536 = vsel %vm1001, %v1528, 0
        %v1539 = vsel %vm1001, %v1525, 0
        %1541 = vmatprep.subr.bf16.mxu0 0
        %1542 = vmatpush1.bf16.msra.mxu0 0
        %1543 = vmatprep.subr.bf16.mxu0 0
        %1544 = vmatpush1.bf16.msra.mxu0 0
        %1545 = vmatprep.subr.bf16.mxu0 0
        %1546 = vmatpush1.bf16.msra.mxu0 0
        %1547 = vmatprep.subr.bf16.mxu0 0
        %1548 = vmatpush1.bf16.msra.mxu0 0
        %1549 = vmatprep.subr.bf16.mxu0 0
        %1550 = vmatpush1.bf16.msra.mxu0 0
        %1551 = vmatprep.subr.bf16.mxu0 0
        %1552 = vmatpush1.bf16.msra.mxu0 0
        %1553 = vmatprep.subr.bf16.mxu0 0
        %1554 = vmatpush1.bf16.msra.mxu0 0
        %1555 = vmatprep.subr.bf16.mxu0 %v1536
        %1556 = vmatpush1.bf16.msra.mxu0 %v1533
        %1557 = vmatprep.subr.bf16.mxu0 0
        %1558 = vmatpush2.bf16.msra.mxu0 0
        %1559 = vmatprep.subr.bf16.mxu0 0
        %1560 = vmatpush2.bf16.msra.mxu0 0
        %1561 = vmatprep.subr.bf16.mxu0 0
        %1562 = vmatpush2.bf16.msra.mxu0 0
        %1563 = vmatprep.subr.bf16.mxu0 0
        %1564 = vmatpush2.bf16.msra.mxu0 0
        %1565 = vmatprep.subr.bf16.mxu0 0
        %1566 = vmatpush2.bf16.msra.mxu0 0
        %1567 = vmatprep.subr.bf16.mxu0 0
        %1568 = vmatpush2.bf16.msra.mxu0 0
        %1569 = vmatprep.subr.bf16.mxu0 0
        %1570 = vmatpush2.bf16.msra.mxu0 0
        %1571 = vmatprep.subr.bf16.mxu0 0
        %1572 = vmatpush2.bf16.msra.mxu0 0
        %1573 = vmatprep.mubr.bf16.mxu0 0
        %1574 = vmatmul.mubr.bf16.gmra.mxu0 %v1530
        %v1575 = vpop.f32.mrf.mxu0
        %v1576 = vadd.f32 0.0, %v1575
        %v1577 = vpop.f32.mrf.mxu0
        %v1578 = vadd.f32 0.0, %v1577
        %v1579 = vpop.f32.mrf.mxu0
        %v1580 = vpop.f32.mrf.mxu0
        %1581 = vdwg.mxu0
        %1582 = vmatprep.subr.bf16.mxu0 0
        %1583 = vmatpush1.bf16.msra.mxu0 0
        %1584 = vmatprep.subr.bf16.mxu0 0
        %1585 = vmatpush1.bf16.msra.mxu0 0
        %1586 = vmatprep.subr.bf16.mxu0 0
        %1587 = vmatpush1.bf16.msra.mxu0 0
        %1588 = vmatprep.subr.bf16.mxu0 0
        %1589 = vmatpush1.bf16.msra.mxu0 0
        %1590 = vmatprep.subr.bf16.mxu0 0
        %1591 = vmatpush1.bf16.msra.mxu0 0
        %1592 = vmatprep.subr.bf16.mxu0 0
        %1593 = vmatpush1.bf16.msra.mxu0 0
        %1594 = vmatprep.subr.bf16.mxu0 0
        %1595 = vmatpush1.bf16.msra.mxu0 0
        %1596 = vmatprep.subr.bf16.mxu0 0
        %1597 = vmatpush1.bf16.msra.mxu0 %v1539
        %1598 = vmatprep.subr.bf16.mxu0 0
        %1599 = vmatpush2.bf16.msra.mxu0 0
        %1600 = vmatprep.subr.bf16.mxu0 0
        %1601 = vmatpush2.bf16.msra.mxu0 0
        %1602 = vmatprep.subr.bf16.mxu0 0
        %1603 = vmatpush2.bf16.msra.mxu0 0
        %1604 = vmatprep.subr.bf16.mxu0 0
        %1605 = vmatpush2.bf16.msra.mxu0 0
        %1606 = vmatprep.subr.bf16.mxu0 0
        %1607 = vmatpush2.bf16.msra.mxu0 0
        %1608 = vmatprep.subr.bf16.mxu0 0
        %1609 = vmatpush2.bf16.msra.mxu0 0
        %1610 = vmatprep.subr.bf16.mxu0 0
        %1611 = vmatpush2.bf16.msra.mxu0 0
        %1612 = vmatprep.subr.bf16.mxu0 0
        %1613 = vmatpush2.bf16.msra.mxu0 0
        %1614 = vmatprep.mubr.bf16.mxu0 0
        %1615 = vmatmul.mubr.bf16.gmra.mxu0 %v1530
        %v1616 = vpop.f32.mrf.mxu0
        %v1617 = vadd.f32 0.0, %v1616
        %v1618 = vpop.f32.mrf.mxu0
        %v1619 = vpop.f32.mrf.mxu0
        %v1620 = vpop.f32.mrf.mxu0
        %1621 = vdwg.mxu0
        %v1622 = vadd.f32 %v1515, %v1576
        %v1623 = vadd.f32 %v1516, %v1578
        %v1624 = vadd.f32 %v1517, %v1617
        %s1625 = scalar_lea.vmem %s481, 6
        %v1626 = vld [vmem:[%s1625] sm:$0x3]
        %1627 = vrot.lane.b32.xlu0 %v634, 110
        %v1628 = vpop.permute.xlu0 %1627
        %1629 = vrot.lane.b32.xlu0 %v635, 110
        %v1630 = vpop.permute.xlu0 %1629
        %1631 = vrot.lane.b32.xlu0 %v636, 110
        %v1632 = vpop.permute.xlu0 %1631
        %v1633 = vsel %vm1526, %v1628, %v1630
        %v1634 = vsel %vm1526, %v1630, %v1632
        %v1636 = vsel %vm637, %v1626, 0
        %v1639 = vsel %vm641, %v1633, 0
        %v1642 = vsel %vm641, %v1634, 0
        %v1645 = vsel %vm641, %v1632, 0
        %1647 = vmatprep.subr.bf16.mxu0 0
        %1648 = vmatpush1.bf16.msra.mxu0 0
        %1649 = vmatprep.subr.bf16.mxu0 0
        %1650 = vmatpush1.bf16.msra.mxu0 0
        %1651 = vmatprep.subr.bf16.mxu0 0
        %1652 = vmatpush1.bf16.msra.mxu0 0
        %1653 = vmatprep.subr.bf16.mxu0 0
        %1654 = vmatpush1.bf16.msra.mxu0 0
        %1655 = vmatprep.subr.bf16.mxu0 0
        %1656 = vmatpush1.bf16.msra.mxu0 0
        %1657 = vmatprep.subr.bf16.mxu0 0
        %1658 = vmatpush1.bf16.msra.mxu0 0
        %1659 = vmatprep.subr.bf16.mxu0 0
        %1660 = vmatpush1.bf16.msra.mxu0 0
        %1661 = vmatprep.subr.bf16.mxu0 %v1642
        %1662 = vmatpush1.bf16.msra.mxu0 %v1639
        %1663 = vmatprep.subr.bf16.mxu0 0
        %1664 = vmatpush2.bf16.msra.mxu0 0
        %1665 = vmatprep.subr.bf16.mxu0 0
        %1666 = vmatpush2.bf16.msra.mxu0 0
        %1667 = vmatprep.subr.bf16.mxu0 0
        %1668 = vmatpush2.bf16.msra.mxu0 0
        %1669 = vmatprep.subr.bf16.mxu0 0
        %1670 = vmatpush2.bf16.msra.mxu0 0
        %1671 = vmatprep.subr.bf16.mxu0 0
        %1672 = vmatpush2.bf16.msra.mxu0 0
        %1673 = vmatprep.subr.bf16.mxu0 0
        %1674 = vmatpush2.bf16.msra.mxu0 0
        %1675 = vmatprep.subr.bf16.mxu0 0
        %1676 = vmatpush2.bf16.msra.mxu0 0
        %1677 = vmatprep.subr.bf16.mxu0 0
        %1678 = vmatpush2.bf16.msra.mxu0 0
        %1679 = vmatprep.mubr.bf16.mxu0 0
        %1680 = vmatmul.mubr.bf16.gmra.mxu0 %v1636
        %v1681 = vpop.f32.mrf.mxu0
        %v1682 = vadd.f32 0.0, %v1681
        %v1683 = vpop.f32.mrf.mxu0
        %v1684 = vadd.f32 0.0, %v1683
        %v1685 = vpop.f32.mrf.mxu0
        %v1686 = vpop.f32.mrf.mxu0
        %1687 = vdwg.mxu0
        %1688 = vmatprep.subr.bf16.mxu0 0
        %1689 = vmatpush1.bf16.msra.mxu0 0
        %1690 = vmatprep.subr.bf16.mxu0 0
        %1691 = vmatpush1.bf16.msra.mxu0 0
        %1692 = vmatprep.subr.bf16.mxu0 0
        %1693 = vmatpush1.bf16.msra.mxu0 0
        %1694 = vmatprep.subr.bf16.mxu0 0
        %1695 = vmatpush1.bf16.msra.mxu0 0
        %1696 = vmatprep.subr.bf16.mxu0 0
        %1697 = vmatpush1.bf16.msra.mxu0 0
        %1698 = vmatprep.subr.bf16.mxu0 0
        %1699 = vmatpush1.bf16.msra.mxu0 0
        %1700 = vmatprep.subr.bf16.mxu0 0
        %1701 = vmatpush1.bf16.msra.mxu0 0
        %1702 = vmatprep.subr.bf16.mxu0 0
        %1703 = vmatpush1.bf16.msra.mxu0 %v1645
        %1704 = vmatprep.subr.bf16.mxu0 0
        %1705 = vmatpush2.bf16.msra.mxu0 0
        %1706 = vmatprep.subr.bf16.mxu0 0
        %1707 = vmatpush2.bf16.msra.mxu0 0
        %1708 = vmatprep.subr.bf16.mxu0 0
        %1709 = vmatpush2.bf16.msra.mxu0 0
        %1710 = vmatprep.subr.bf16.mxu0 0
        %1711 = vmatpush2.bf16.msra.mxu0 0
        %1712 = vmatprep.subr.bf16.mxu0 0
        %1713 = vmatpush2.bf16.msra.mxu0 0
        %1714 = vmatprep.subr.bf16.mxu0 0
        %1715 = vmatpush2.bf16.msra.mxu0 0
        %1716 = vmatprep.subr.bf16.mxu0 0
        %1717 = vmatpush2.bf16.msra.mxu0 0
        %1718 = vmatprep.subr.bf16.mxu0 0
        %1719 = vmatpush2.bf16.msra.mxu0 0
        %1720 = vmatprep.mubr.bf16.mxu0 0
        %1721 = vmatmul.mubr.bf16.gmra.mxu0 %v1636
        %v1722 = vpop.f32.mrf.mxu0
        %v1723 = vadd.f32 0.0, %v1722
        %v1724 = vpop.f32.mrf.mxu0
        %v1725 = vpop.f32.mrf.mxu0
        %v1726 = vpop.f32.mrf.mxu0
        %1727 = vdwg.mxu0
        %v1728 = vadd.f32 %v1622, %v1682
        %v1729 = vadd.f32 %v1623, %v1684
        %v1730 = vadd.f32 %v1624, %v1723
        %s1731 = scalar_lea.vmem %s476, 8
        %v1732 = vld [vmem:[%s1731] sm:$0x3]
        %1733 = vrot.lane.b32.xlu0 %v994, 109
        %v1734 = vpop.permute.xlu0 %1733
        %1735 = vrot.lane.b32.xlu0 %v995, 109
        %v1736 = vpop.permute.xlu0 %1735
        %1737 = vrot.lane.b32.xlu0 %v996, 109
        %v1738 = vpop.permute.xlu0 %1737
        %vm1739 = vcmask 891904
        %v1740 = vsel %vm1739, %v1734, %v1736
        %v1741 = vsel %vm1739, %v1736, %v1738
        %v1743 = vsel %vm997, %v1732, 0
        %v1746 = vsel %vm1001, %v1740, 0
        %v1749 = vsel %vm1001, %v1741, 0
        %v1752 = vsel %vm1001, %v1738, 0
        %1754 = vmatprep.subr.bf16.mxu0 0
        %1755 = vmatpush1.bf16.msra.mxu0 0
        %1756 = vmatprep.subr.bf16.mxu0 0
        %1757 = vmatpush1.bf16.msra.mxu0 0
        %1758 = vmatprep.subr.bf16.mxu0 0
        %1759 = vmatpush1.bf16.msra.mxu0 0
        %1760 = vmatprep.subr.bf16.mxu0 0
        %1761 = vmatpush1.bf16.msra.mxu0 0
        %1762 = vmatprep.subr.bf16.mxu0 0
        %1763 = vmatpush1.bf16.msra.mxu0 0
        %1764 = vmatprep.subr.bf16.mxu0 0
        %1765 = vmatpush1.bf16.msra.mxu0 0
        %1766 = vmatprep.subr.bf16.mxu0 0
        %1767 = vmatpush1.bf16.msra.mxu0 0
        %1768 = vmatprep.subr.bf16.mxu0 %v1749
        %1769 = vmatpush1.bf16.msra.mxu0 %v1746
        %1770 = vmatprep.subr.bf16.mxu0 0
        %1771 = vmatpush2.bf16.msra.mxu0 0
        %1772 = vmatprep.subr.bf16.mxu0 0
        %1773 = vmatpush2.bf16.msra.mxu0 0
        %1774 = vmatprep.subr.bf16.mxu0 0
        %1775 = vmatpush2.bf16.msra.mxu0 0
        %1776 = vmatprep.subr.bf16.mxu0 0
        %1777 = vmatpush2.bf16.msra.mxu0 0
        %1778 = vmatprep.subr.bf16.mxu0 0
        %1779 = vmatpush2.bf16.msra.mxu0 0
        %1780 = vmatprep.subr.bf16.mxu0 0
        %1781 = vmatpush2.bf16.msra.mxu0 0
        %1782 = vmatprep.subr.bf16.mxu0 0
        %1783 = vmatpush2.bf16.msra.mxu0 0
        %1784 = vmatprep.subr.bf16.mxu0 0
        %1785 = vmatpush2.bf16.msra.mxu0 0
        %1786 = vmatprep.mubr.bf16.mxu0 0
        %1787 = vmatmul.mubr.bf16.gmra.mxu0 %v1743
        %v1788 = vpop.f32.mrf.mxu0
        %v1789 = vadd.f32 0.0, %v1788
        %v1790 = vpop.f32.mrf.mxu0
        %v1791 = vadd.f32 0.0, %v1790
        %v1792 = vpop.f32.mrf.mxu0
        %v1793 = vpop.f32.mrf.mxu0
        %1794 = vdwg.mxu0
        %1795 = vmatprep.subr.bf16.mxu0 0
        %1796 = vmatpush1.bf16.msra.mxu0 0
        %1797 = vmatprep.subr.bf16.mxu0 0
        %1798 = vmatpush1.bf16.msra.mxu0 0
        %1799 = vmatprep.subr.bf16.mxu0 0
        %1800 = vmatpush1.bf16.msra.mxu0 0
        %1801 = vmatprep.subr.bf16.mxu0 0
        %1802 = vmatpush1.bf16.msra.mxu0 0
        %1803 = vmatprep.subr.bf16.mxu0 0
        %1804 = vmatpush1.bf16.msra.mxu0 0
        %1805 = vmatprep.subr.bf16.mxu0 0
        %1806 = vmatpush1.bf16.msra.mxu0 0
        %1807 = vmatprep.subr.bf16.mxu0 0
        %1808 = vmatpush1.bf16.msra.mxu0 0
        %1809 = vmatprep.subr.bf16.mxu0 0
        %1810 = vmatpush1.bf16.msra.mxu0 %v1752
        %1811 = vmatprep.subr.bf16.mxu0 0
        %1812 = vmatpush2.bf16.msra.mxu0 0
        %1813 = vmatprep.subr.bf16.mxu0 0
        %1814 = vmatpush2.bf16.msra.mxu0 0
        %1815 = vmatprep.subr.bf16.mxu0 0
        %1816 = vmatpush2.bf16.msra.mxu0 0
        %1817 = vmatprep.subr.bf16.mxu0 0
        %1818 = vmatpush2.bf16.msra.mxu0 0
        %1819 = vmatprep.subr.bf16.mxu0 0
        %1820 = vmatpush2.bf16.msra.mxu0 0
        %1821 = vmatprep.subr.bf16.mxu0 0
        %1822 = vmatpush2.bf16.msra.mxu0 0
        %1823 = vmatprep.subr.bf16.mxu0 0
        %1824 = vmatpush2.bf16.msra.mxu0 0
        %1825 = vmatprep.subr.bf16.mxu0 0
        %1826 = vmatpush2.bf16.msra.mxu0 0
        %1827 = vmatprep.mubr.bf16.mxu0 0
        %1828 = vmatmul.mubr.bf16.gmra.mxu0 %v1743
        %v1829 = vpop.f32.mrf.mxu0
        %v1830 = vadd.f32 0.0, %v1829
        %v1831 = vpop.f32.mrf.mxu0
        %v1832 = vpop.f32.mrf.mxu0
        %v1833 = vpop.f32.mrf.mxu0
        %1834 = vdwg.mxu0
        %v1835 = vadd.f32 %v1728, %v1789
        %v1836 = vadd.f32 %v1729, %v1791
        %v1837 = vadd.f32 %v1730, %v1830
        %s1838 = scalar_lea.vmem %s481, 8
        %v1839 = vld [vmem:[%s1838] sm:$0x3]
        %1840 = vrot.lane.b32.xlu0 %v634, 109
        %v1841 = vpop.permute.xlu0 %1840
        %1842 = vrot.lane.b32.xlu0 %v635, 109
        %v1843 = vpop.permute.xlu0 %1842
        %1844 = vrot.lane.b32.xlu0 %v636, 109
        %v1845 = vpop.permute.xlu0 %1844
        %v1846 = vsel %vm1739, %v1841, %v1843
        %v1847 = vsel %vm1739, %v1843, %v1845
        %v1849 = vsel %vm637, %v1839, 0
        %v1852 = vsel %vm641, %v1846, 0
        %v1855 = vsel %vm641, %v1847, 0
        %v1858 = vsel %vm641, %v1845, 0
        %1860 = vmatprep.subr.bf16.mxu0 0
        %1861 = vmatpush1.bf16.msra.mxu0 0
        %1862 = vmatprep.subr.bf16.mxu0 0
        %1863 = vmatpush1.bf16.msra.mxu0 0
        %1864 = vmatprep.subr.bf16.mxu0 0
        %1865 = vmatpush1.bf16.msra.mxu0 0
        %1866 = vmatprep.subr.bf16.mxu0 0
        %1867 = vmatpush1.bf16.msra.mxu0 0
        %1868 = vmatprep.subr.bf16.mxu0 0
        %1869 = vmatpush1.bf16.msra.mxu0 0
        %1870 = vmatprep.subr.bf16.mxu0 0
        %1871 = vmatpush1.bf16.msra.mxu0 0
        %1872 = vmatprep.subr.bf16.mxu0 0
        %1873 = vmatpush1.bf16.msra.mxu0 0
        %1874 = vmatprep.subr.bf16.mxu0 %v1855
        %1875 = vmatpush1.bf16.msra.mxu0 %v1852
        %1876 = vmatprep.subr.bf16.mxu0 0
        %1877 = vmatpush2.bf16.msra.mxu0 0
        %1878 = vmatprep.subr.bf16.mxu0 0
        %1879 = vmatpush2.bf16.msra.mxu0 0
        %1880 = vmatprep.subr.bf16.mxu0 0
        %1881 = vmatpush2.bf16.msra.mxu0 0
        %1882 = vmatprep.subr.bf16.mxu0 0
        %1883 = vmatpush2.bf16.msra.mxu0 0
        %1884 = vmatprep.subr.bf16.mxu0 0
        %1885 = vmatpush2.bf16.msra.mxu0 0
        %1886 = vmatprep.subr.bf16.mxu0 0
        %1887 = vmatpush2.bf16.msra.mxu0 0
        %1888 = vmatprep.subr.bf16.mxu0 0
        %1889 = vmatpush2.bf16.msra.mxu0 0
        %1890 = vmatprep.subr.bf16.mxu0 0
        %1891 = vmatpush2.bf16.msra.mxu0 0
        %1892 = vmatprep.mubr.bf16.mxu0 0
        %1893 = vmatmul.mubr.bf16.gmra.mxu0 %v1849
        %v1894 = vpop.f32.mrf.mxu0
        %v1895 = vadd.f32 0.0, %v1894
        %v1896 = vpop.f32.mrf.mxu0
        %v1897 = vadd.f32 0.0, %v1896
        %v1898 = vpop.f32.mrf.mxu0
        %v1899 = vpop.f32.mrf.mxu0
        %1900 = vdwg.mxu0
        %1901 = vmatprep.subr.bf16.mxu0 0
        %1902 = vmatpush1.bf16.msra.mxu0 0
        %1903 = vmatprep.subr.bf16.mxu0 0
        %1904 = vmatpush1.bf16.msra.mxu0 0
        %1905 = vmatprep.subr.bf16.mxu0 0
        %1906 = vmatpush1.bf16.msra.mxu0 0
        %1907 = vmatprep.subr.bf16.mxu0 0
        %1908 = vmatpush1.bf16.msra.mxu0 0
        %1909 = vmatprep.subr.bf16.mxu0 0
        %1910 = vmatpush1.bf16.msra.mxu0 0
        %1911 = vmatprep.subr.bf16.mxu0 0
        %1912 = vmatpush1.bf16.msra.mxu0 0
        %1913 = vmatprep.subr.bf16.mxu0 0
        %1914 = vmatpush1.bf16.msra.mxu0 0
        %1915 = vmatprep.subr.bf16.mxu0 0
        %1916 = vmatpush1.bf16.msra.mxu0 %v1858
        %1917 = vmatprep.subr.bf16.mxu0 0
        %1918 = vmatpush2.bf16.msra.mxu0 0
        %1919 = vmatprep.subr.bf16.mxu0 0
        %1920 = vmatpush2.bf16.msra.mxu0 0
        %1921 = vmatprep.subr.bf16.mxu0 0
        %1922 = vmatpush2.bf16.msra.mxu0 0
        %1923 = vmatprep.subr.bf16.mxu0 0
        %1924 = vmatpush2.bf16.msra.mxu0 0
        %1925 = vmatprep.subr.bf16.mxu0 0
        %1926 = vmatpush2.bf16.msra.mxu0 0
        %1927 = vmatprep.subr.bf16.mxu0 0
        %1928 = vmatpush2.bf16.msra.mxu0 0
        %1929 = vmatprep.subr.bf16.mxu0 0
        %1930 = vmatpush2.bf16.msra.mxu0 0
        %1931 = vmatprep.subr.bf16.mxu0 0
        %1932 = vmatpush2.bf16.msra.mxu0 0
        %1933 = vmatprep.mubr.bf16.mxu0 0
        %1934 = vmatmul.mubr.bf16.gmra.mxu0 %v1849
        %v1935 = vpop.f32.mrf.mxu0
        %v1936 = vadd.f32 0.0, %v1935
        %v1937 = vpop.f32.mrf.mxu0
        %v1938 = vpop.f32.mrf.mxu0
        %v1939 = vpop.f32.mrf.mxu0
        %1940 = vdwg.mxu0
        %v1941 = vadd.f32 %v1835, %v1895
        %v1942 = vadd.f32 %v1836, %v1897
        %v1943 = vadd.f32 %v1837, %v1936
        %s1944 = scalar_lea.vmem %s476, 10
        %v1945 = vld [vmem:[%s1944] sm:$0x3]
        %1946 = vrot.lane.b32.xlu0 %v994, 108
        %v1947 = vpop.permute.xlu0 %1946
        %1948 = vrot.lane.b32.xlu0 %v995, 108
        %v1949 = vpop.permute.xlu0 %1948
        %1950 = vrot.lane.b32.xlu0 %v996, 108
        %v1951 = vpop.permute.xlu0 %1950
        %vm1952 = vcmask 883712
        %v1953 = vsel %vm1952, %v1947, %v1949
        %v1954 = vsel %vm1952, %v1949, %v1951
        %v1956 = vsel %vm997, %v1945, 0
        %v1959 = vsel %vm1001, %v1953, 0
        %v1962 = vsel %vm1001, %v1954, 0
        %v1965 = vsel %vm1001, %v1951, 0
        %1967 = vmatprep.subr.bf16.mxu0 0
        %1968 = vmatpush1.bf16.msra.mxu0 0
        %1969 = vmatprep.subr.bf16.mxu0 0
        %1970 = vmatpush1.bf16.msra.mxu0 0
        %1971 = vmatprep.subr.bf16.mxu0 0
        %1972 = vmatpush1.bf16.msra.mxu0 0
        %1973 = vmatprep.subr.bf16.mxu0 0
        %1974 = vmatpush1.bf16.msra.mxu0 0
        %1975 = vmatprep.subr.bf16.mxu0 0
        %1976 = vmatpush1.bf16.msra.mxu0 0
        %1977 = vmatprep.subr.bf16.mxu0 0
        %1978 = vmatpush1.bf16.msra.mxu0 0
        %1979 = vmatprep.subr.bf16.mxu0 0
        %1980 = vmatpush1.bf16.msra.mxu0 0
        %1981 = vmatprep.subr.bf16.mxu0 %v1962
        %1982 = vmatpush1.bf16.msra.mxu0 %v1959
        %1983 = vmatprep.subr.bf16.mxu0 0
        %1984 = vmatpush2.bf16.msra.mxu0 0
        %1985 = vmatprep.subr.bf16.mxu0 0
        %1986 = vmatpush2.bf16.msra.mxu0 0
        %1987 = vmatprep.subr.bf16.mxu0 0
        %1988 = vmatpush2.bf16.msra.mxu0 0
        %1989 = vmatprep.subr.bf16.mxu0 0
        %1990 = vmatpush2.bf16.msra.mxu0 0
        %1991 = vmatprep.subr.bf16.mxu0 0
        %1992 = vmatpush2.bf16.msra.mxu0 0
        %1993 = vmatprep.subr.bf16.mxu0 0
        %1994 = vmatpush2.bf16.msra.mxu0 0
        %1995 = vmatprep.subr.bf16.mxu0 0
        %1996 = vmatpush2.bf16.msra.mxu0 0
        %1997 = vmatprep.subr.bf16.mxu0 0
        %1998 = vmatpush2.bf16.msra.mxu0 0
        %1999 = vmatprep.mubr.bf16.mxu0 0
        %2000 = vmatmul.mubr.bf16.gmra.mxu0 %v1956
        %v2001 = vpop.f32.mrf.mxu0
        %v2002 = vadd.f32 0.0, %v2001
        %v2003 = vpop.f32.mrf.mxu0
        %v2004 = vadd.f32 0.0, %v2003
        %v2005 = vpop.f32.mrf.mxu0
        %v2006 = vpop.f32.mrf.mxu0
        %2007 = vdwg.mxu0
        %2008 = vmatprep.subr.bf16.mxu0 0
        %2009 = vmatpush1.bf16.msra.mxu0 0
        %2010 = vmatprep.subr.bf16.mxu0 0
        %2011 = vmatpush1.bf16.msra.mxu0 0
        %2012 = vmatprep.subr.bf16.mxu0 0
        %2013 = vmatpush1.bf16.msra.mxu0 0
        %2014 = vmatprep.subr.bf16.mxu0 0
        %2015 = vmatpush1.bf16.msra.mxu0 0
        %2016 = vmatprep.subr.bf16.mxu0 0
        %2017 = vmatpush1.bf16.msra.mxu0 0
        %2018 = vmatprep.subr.bf16.mxu0 0
        %2019 = vmatpush1.bf16.msra.mxu0 0
        %2020 = vmatprep.subr.bf16.mxu0 0
        %2021 = vmatpush1.bf16.msra.mxu0 0
        %2022 = vmatprep.subr.bf16.mxu0 0
        %2023 = vmatpush1.bf16.msra.mxu0 %v1965
        %2024 = vmatprep.subr.bf16.mxu0 0
        %2025 = vmatpush2.bf16.msra.mxu0 0
        %2026 = vmatprep.subr.bf16.mxu0 0
        %2027 = vmatpush2.bf16.msra.mxu0 0
        %2028 = vmatprep.subr.bf16.mxu0 0
        %2029 = vmatpush2.bf16.msra.mxu0 0
        %2030 = vmatprep.subr.bf16.mxu0 0
        %2031 = vmatpush2.bf16.msra.mxu0 0
        %2032 = vmatprep.subr.bf16.mxu0 0
        %2033 = vmatpush2.bf16.msra.mxu0 0
        %2034 = vmatprep.subr.bf16.mxu0 0
        %2035 = vmatpush2.bf16.msra.mxu0 0
        %2036 = vmatprep.subr.bf16.mxu0 0
        %2037 = vmatpush2.bf16.msra.mxu0 0
        %2038 = vmatprep.subr.bf16.mxu0 0
        %2039 = vmatpush2.bf16.msra.mxu0 0
        %2040 = vmatprep.mubr.bf16.mxu0 0
        %2041 = vmatmul.mubr.bf16.gmra.mxu0 %v1956
        %v2042 = vpop.f32.mrf.mxu0
        %v2043 = vadd.f32 0.0, %v2042
        %v2044 = vpop.f32.mrf.mxu0
        %v2045 = vpop.f32.mrf.mxu0
        %v2046 = vpop.f32.mrf.mxu0
        %2047 = vdwg.mxu0
        %v2048 = vadd.f32 %v1941, %v2002
        %v2049 = vadd.f32 %v1942, %v2004
        %v2050 = vadd.f32 %v1943, %v2043
        %s2051 = scalar_lea.vmem %s481, 10
        %v2052 = vld [vmem:[%s2051] sm:$0x3]
        %2053 = vrot.lane.b32.xlu0 %v634, 108
        %v2054 = vpop.permute.xlu0 %2053
        %2055 = vrot.lane.b32.xlu0 %v635, 108
        %v2056 = vpop.permute.xlu0 %2055
        %2057 = vrot.lane.b32.xlu0 %v636, 108
        %v2058 = vpop.permute.xlu0 %2057
        %v2059 = vsel %vm1952, %v2054, %v2056
        %v2060 = vsel %vm1952, %v2056, %v2058
        %v2062 = vsel %vm637, %v2052, 0
        %v2065 = vsel %vm641, %v2059, 0
        %v2068 = vsel %vm641, %v2060, 0
        %v2071 = vsel %vm641, %v2058, 0
        %2073 = vmatprep.subr.bf16.mxu0 0
        %2074 = vmatpush1.bf16.msra.mxu0 0
        %2075 = vmatprep.subr.bf16.mxu0 0
        %2076 = vmatpush1.bf16.msra.mxu0 0
        %2077 = vmatprep.subr.bf16.mxu0 0
        %2078 = vmatpush1.bf16.msra.mxu0 0
        %2079 = vmatprep.subr.bf16.mxu0 0
        %2080 = vmatpush1.bf16.msra.mxu0 0
        %2081 = vmatprep.subr.bf16.mxu0 0
        %2082 = vmatpush1.bf16.msra.mxu0 0
        %2083 = vmatprep.subr.bf16.mxu0 0
        %2084 = vmatpush1.bf16.msra.mxu0 0
        %2085 = vmatprep.subr.bf16.mxu0 0
        %2086 = vmatpush1.bf16.msra.mxu0 0
        %2087 = vmatprep.subr.bf16.mxu0 %v2068
        %2088 = vmatpush1.bf16.msra.mxu0 %v2065
        %2089 = vmatprep.subr.bf16.mxu0 0
        %2090 = vmatpush2.bf16.msra.mxu0 0
        %2091 = vmatprep.subr.bf16.mxu0 0
        %2092 = vmatpush2.bf16.msra.mxu0 0
        %2093 = vmatprep.subr.bf16.mxu0 0
        %2094 = vmatpush2.bf16.msra.mxu0 0
        %2095 = vmatprep.subr.bf16.mxu0 0
        %2096 = vmatpush2.bf16.msra.mxu0 0
        %2097 = vmatprep.subr.bf16.mxu0 0
        %2098 = vmatpush2.bf16.msra.mxu0 0
        %2099 = vmatprep.subr.bf16.mxu0 0
        %2100 = vmatpush2.bf16.msra.mxu0 0
        %2101 = vmatprep.subr.bf16.mxu0 0
        %2102 = vmatpush2.bf16.msra.mxu0 0
        %2103 = vmatprep.subr.bf16.mxu0 0
        %2104 = vmatpush2.bf16.msra.mxu0 0
        %2105 = vmatprep.mubr.bf16.mxu0 0
        %2106 = vmatmul.mubr.bf16.gmra.mxu0 %v2062
        %v2107 = vpop.f32.mrf.mxu0
        %v2108 = vadd.f32 0.0, %v2107
        %v2109 = vpop.f32.mrf.mxu0
        %v2110 = vadd.f32 0.0, %v2109
        %v2111 = vpop.f32.mrf.mxu0
        %v2112 = vpop.f32.mrf.mxu0
        %2113 = vdwg.mxu0
        %2114 = vmatprep.subr.bf16.mxu0 0
        %2115 = vmatpush1.bf16.msra.mxu0 0
        %2116 = vmatprep.subr.bf16.mxu0 0
        %2117 = vmatpush1.bf16.msra.mxu0 0
        %2118 = vmatprep.subr.bf16.mxu0 0
        %2119 = vmatpush1.bf16.msra.mxu0 0
        %2120 = vmatprep.subr.bf16.mxu0 0
        %2121 = vmatpush1.bf16.msra.mxu0 0
        %2122 = vmatprep.subr.bf16.mxu0 0
        %2123 = vmatpush1.bf16.msra.mxu0 0
        %2124 = vmatprep.subr.bf16.mxu0 0
        %2125 = vmatpush1.bf16.msra.mxu0 0
        %2126 = vmatprep.subr.bf16.mxu0 0
        %2127 = vmatpush1.bf16.msra.mxu0 0
        %2128 = vmatprep.subr.bf16.mxu0 0
        %2129 = vmatpush1.bf16.msra.mxu0 %v2071
        %2130 = vmatprep.subr.bf16.mxu0 0
        %2131 = vmatpush2.bf16.msra.mxu0 0
        %2132 = vmatprep.subr.bf16.mxu0 0
        %2133 = vmatpush2.bf16.msra.mxu0 0
        %2134 = vmatprep.subr.bf16.mxu0 0
        %2135 = vmatpush2.bf16.msra.mxu0 0
        %2136 = vmatprep.subr.bf16.mxu0 0
        %2137 = vmatpush2.bf16.msra.mxu0 0
        %2138 = vmatprep.subr.bf16.mxu0 0
        %2139 = vmatpush2.bf16.msra.mxu0 0
        %2140 = vmatprep.subr.bf16.mxu0 0
        %2141 = vmatpush2.bf16.msra.mxu0 0
        %2142 = vmatprep.subr.bf16.mxu0 0
        %2143 = vmatpush2.bf16.msra.mxu0 0
        %2144 = vmatprep.subr.bf16.mxu0 0
        %2145 = vmatpush2.bf16.msra.mxu0 0
        %2146 = vmatprep.mubr.bf16.mxu0 0
        %2147 = vmatmul.mubr.bf16.gmra.mxu0 %v2062
        %v2148 = vpop.f32.mrf.mxu0
        %v2149 = vadd.f32 0.0, %v2148
        %v2150 = vpop.f32.mrf.mxu0
        %v2151 = vpop.f32.mrf.mxu0
        %v2152 = vpop.f32.mrf.mxu0
        %2153 = vdwg.mxu0
        %v2154 = vadd.f32 %v2048, %v2108
        %v2155 = vadd.f32 %v2049, %v2110
        %v2156 = vadd.f32 %v2050, %v2149
        %s2157 = scalar_lea.vmem %s476, 12
        %v2158 = vld [vmem:[%s2157] sm:$0x3]
        %2159 = vrot.lane.b32.xlu0 %v994, 92
        %v2160 = vpop.permute.xlu0 %2159
        %2161 = vrot.lane.b32.xlu0 %v995, 92
        %v2162 = vpop.permute.xlu0 %2161
        %2163 = vrot.lane.b32.xlu0 %v996, 92
        %v2164 = vpop.permute.xlu0 %2163
        %vm2165 = vcmask 752640
        %v2166 = vsel %vm2165, %v2160, %v2162
        %v2167 = vsel %vm2165, %v2162, %v2164
        %v2169 = vsel %vm997, %v2158, 0
        %v2172 = vsel %vm1001, %v2166, 0
        %v2175 = vsel %vm1001, %v2167, 0
        %v2178 = vsel %vm1001, %v2164, 0
        %2180 = vmatprep.subr.bf16.mxu0 0
        %2181 = vmatpush1.bf16.msra.mxu0 0
        %2182 = vmatprep.subr.bf16.mxu0 0
        %2183 = vmatpush1.bf16.msra.mxu0 0
        %2184 = vmatprep.subr.bf16.mxu0 0
        %2185 = vmatpush1.bf16.msra.mxu0 0
        %2186 = vmatprep.subr.bf16.mxu0 0
        %2187 = vmatpush1.bf16.msra.mxu0 0
        %2188 = vmatprep.subr.bf16.mxu0 0
        %2189 = vmatpush1.bf16.msra.mxu0 0
        %2190 = vmatprep.subr.bf16.mxu0 0
        %2191 = vmatpush1.bf16.msra.mxu0 0
        %2192 = vmatprep.subr.bf16.mxu0 0
        %2193 = vmatpush1.bf16.msra.mxu0 0
        %2194 = vmatprep.subr.bf16.mxu0 %v2175
        %2195 = vmatpush1.bf16.msra.mxu0 %v2172
        %2196 = vmatprep.subr.bf16.mxu0 0
        %2197 = vmatpush2.bf16.msra.mxu0 0
        %2198 = vmatprep.subr.bf16.mxu0 0
        %2199 = vmatpush2.bf16.msra.mxu0 0
        %2200 = vmatprep.subr.bf16.mxu0 0
        %2201 = vmatpush2.bf16.msra.mxu0 0
        %2202 = vmatprep.subr.bf16.mxu0 0
        %2203 = vmatpush2.bf16.msra.mxu0 0
        %2204 = vmatprep.subr.bf16.mxu0 0
        %2205 = vmatpush2.bf16.msra.mxu0 0
        %2206 = vmatprep.subr.bf16.mxu0 0
        %2207 = vmatpush2.bf16.msra.mxu0 0
        %2208 = vmatprep.subr.bf16.mxu0 0
        %2209 = vmatpush2.bf16.msra.mxu0 0
        %2210 = vmatprep.subr.bf16.mxu0 0
        %2211 = vmatpush2.bf16.msra.mxu0 0
        %2212 = vmatprep.mubr.bf16.mxu0 0
        %2213 = vmatmul.mubr.bf16.gmra.mxu0 %v2169
        %v2214 = vpop.f32.mrf.mxu0
        %v2215 = vadd.f32 0.0, %v2214
        %v2216 = vpop.f32.mrf.mxu0
        %v2217 = vadd.f32 0.0, %v2216
        %v2218 = vpop.f32.mrf.mxu0
        %v2219 = vpop.f32.mrf.mxu0
        %2220 = vdwg.mxu0
        %2221 = vmatprep.subr.bf16.mxu0 0
        %2222 = vmatpush1.bf16.msra.mxu0 0
        %2223 = vmatprep.subr.bf16.mxu0 0
        %2224 = vmatpush1.bf16.msra.mxu0 0
        %2225 = vmatprep.subr.bf16.mxu0 0
        %2226 = vmatpush1.bf16.msra.mxu0 0
        %2227 = vmatprep.subr.bf16.mxu0 0
        %2228 = vmatpush1.bf16.msra.mxu0 0
        %2229 = vmatprep.subr.bf16.mxu0 0
        %2230 = vmatpush1.bf16.msra.mxu0 0
        %2231 = vmatprep.subr.bf16.mxu0 0
        %2232 = vmatpush1.bf16.msra.mxu0 0
        %2233 = vmatprep.subr.bf16.mxu0 0
        %2234 = vmatpush1.bf16.msra.mxu0 0
        %2235 = vmatprep.subr.bf16.mxu0 0
        %2236 = vmatpush1.bf16.msra.mxu0 %v2178
        %2237 = vmatprep.subr.bf16.mxu0 0
        %2238 = vmatpush2.bf16.msra.mxu0 0
        %2239 = vmatprep.subr.bf16.mxu0 0
        %2240 = vmatpush2.bf16.msra.mxu0 0
        %2241 = vmatprep.subr.bf16.mxu0 0
        %2242 = vmatpush2.bf16.msra.mxu0 0
        %2243 = vmatprep.subr.bf16.mxu0 0
        %2244 = vmatpush2.bf16.msra.mxu0 0
        %2245 = vmatprep.subr.bf16.mxu0 0
        %2246 = vmatpush2.bf16.msra.mxu0 0
        %2247 = vmatprep.subr.bf16.mxu0 0
        %2248 = vmatpush2.bf16.msra.mxu0 0
        %2249 = vmatprep.subr.bf16.mxu0 0
        %2250 = vmatpush2.bf16.msra.mxu0 0
        %2251 = vmatprep.subr.bf16.mxu0 0
        %2252 = vmatpush2.bf16.msra.mxu0 0
        %2253 = vmatprep.mubr.bf16.mxu0 0
        %2254 = vmatmul.mubr.bf16.gmra.mxu0 %v2169
        %v2255 = vpop.f32.mrf.mxu0
        %v2256 = vadd.f32 0.0, %v2255
        %v2257 = vpop.f32.mrf.mxu0
        %v2258 = vpop.f32.mrf.mxu0
        %v2259 = vpop.f32.mrf.mxu0
        %2260 = vdwg.mxu0
        %v2261 = vadd.f32 %v2154, %v2215
        %v2262 = vadd.f32 %v2155, %v2217
        %v2263 = vadd.f32 %v2156, %v2256
        %s2264 = scalar_lea.vmem %s481, 12
        %v2265 = vld [vmem:[%s2264] sm:$0x3]
        %2266 = vrot.lane.b32.xlu0 %v634, 92
        %v2267 = vpop.permute.xlu0 %2266
        %2268 = vrot.lane.b32.xlu0 %v635, 92
        %v2269 = vpop.permute.xlu0 %2268
        %2270 = vrot.lane.b32.xlu0 %v636, 92
        %v2271 = vpop.permute.xlu0 %2270
        %v2272 = vsel %vm2165, %v2267, %v2269
        %v2273 = vsel %vm2165, %v2269, %v2271
        %v2275 = vsel %vm637, %v2265, 0
        %v2278 = vsel %vm641, %v2272, 0
        %v2281 = vsel %vm641, %v2273, 0
        %v2284 = vsel %vm641, %v2271, 0
        %2286 = vmatprep.subr.bf16.mxu0 0
        %2287 = vmatpush1.bf16.msra.mxu0 0
        %2288 = vmatprep.subr.bf16.mxu0 0
        %2289 = vmatpush1.bf16.msra.mxu0 0
        %2290 = vmatprep.subr.bf16.mxu0 0
        %2291 = vmatpush1.bf16.msra.mxu0 0
        %2292 = vmatprep.subr.bf16.mxu0 0
        %2293 = vmatpush1.bf16.msra.mxu0 0
        %2294 = vmatprep.subr.bf16.mxu0 0
        %2295 = vmatpush1.bf16.msra.mxu0 0
        %2296 = vmatprep.subr.bf16.mxu0 0
        %2297 = vmatpush1.bf16.msra.mxu0 0
        %2298 = vmatprep.subr.bf16.mxu0 0
        %2299 = vmatpush1.bf16.msra.mxu0 0
        %2300 = vmatprep.subr.bf16.mxu0 %v2281
        %2301 = vmatpush1.bf16.msra.mxu0 %v2278
        %2302 = vmatprep.subr.bf16.mxu0 0
        %2303 = vmatpush2.bf16.msra.mxu0 0
        %2304 = vmatprep.subr.bf16.mxu0 0
        %2305 = vmatpush2.bf16.msra.mxu0 0
        %2306 = vmatprep.subr.bf16.mxu0 0
        %2307 = vmatpush2.bf16.msra.mxu0 0
        %2308 = vmatprep.subr.bf16.mxu0 0
        %2309 = vmatpush2.bf16.msra.mxu0 0
        %2310 = vmatprep.subr.bf16.mxu0 0
        %2311 = vmatpush2.bf16.msra.mxu0 0
        %2312 = vmatprep.subr.bf16.mxu0 0
        %2313 = vmatpush2.bf16.msra.mxu0 0
        %2314 = vmatprep.subr.bf16.mxu0 0
        %2315 = vmatpush2.bf16.msra.mxu0 0
        %2316 = vmatprep.subr.bf16.mxu0 0
        %2317 = vmatpush2.bf16.msra.mxu0 0
        %2318 = vmatprep.mubr.bf16.mxu0 0
        %2319 = vmatmul.mubr.bf16.gmra.mxu0 %v2275
        %v2320 = vpop.f32.mrf.mxu0
        %v2321 = vadd.f32 0.0, %v2320
        %v2322 = vpop.f32.mrf.mxu0
        %v2323 = vadd.f32 0.0, %v2322
        %v2324 = vpop.f32.mrf.mxu0
        %v2325 = vpop.f32.mrf.mxu0
        %2326 = vdwg.mxu0
        %2327 = vmatprep.subr.bf16.mxu0 0
        %2328 = vmatpush1.bf16.msra.mxu0 0
        %2329 = vmatprep.subr.bf16.mxu0 0
        %2330 = vmatpush1.bf16.msra.mxu0 0
        %2331 = vmatprep.subr.bf16.mxu0 0
        %2332 = vmatpush1.bf16.msra.mxu0 0
        %2333 = vmatprep.subr.bf16.mxu0 0
        %2334 = vmatpush1.bf16.msra.mxu0 0
        %2335 = vmatprep.subr.bf16.mxu0 0
        %2336 = vmatpush1.bf16.msra.mxu0 0
        %2337 = vmatprep.subr.bf16.mxu0 0
        %2338 = vmatpush1.bf16.msra.mxu0 0
        %2339 = vmatprep.subr.bf16.mxu0 0
        %2340 = vmatpush1.bf16.msra.mxu0 0
        %2341 = vmatprep.subr.bf16.mxu0 0
        %2342 = vmatpush1.bf16.msra.mxu0 %v2284
        %2343 = vmatprep.subr.bf16.mxu0 0
        %2344 = vmatpush2.bf16.msra.mxu0 0
        %2345 = vmatprep.subr.bf16.mxu0 0
        %2346 = vmatpush2.bf16.msra.mxu0 0
        %2347 = vmatprep.subr.bf16.mxu0 0
        %2348 = vmatpush2.bf16.msra.mxu0 0
        %2349 = vmatprep.subr.bf16.mxu0 0
        %2350 = vmatpush2.bf16.msra.mxu0 0
        %2351 = vmatprep.subr.bf16.mxu0 0
        %2352 = vmatpush2.bf16.msra.mxu0 0
        %2353 = vmatprep.subr.bf16.mxu0 0
        %2354 = vmatpush2.bf16.msra.mxu0 0
        %2355 = vmatprep.subr.bf16.mxu0 0
        %2356 = vmatpush2.bf16.msra.mxu0 0
        %2357 = vmatprep.subr.bf16.mxu0 0
        %2358 = vmatpush2.bf16.msra.mxu0 0
        %2359 = vmatprep.mubr.bf16.mxu0 0
        %2360 = vmatmul.mubr.bf16.gmra.mxu0 %v2275
        %v2361 = vpop.f32.mrf.mxu0
        %v2362 = vadd.f32 0.0, %v2361
        %v2363 = vpop.f32.mrf.mxu0
        %v2364 = vpop.f32.mrf.mxu0
        %v2365 = vpop.f32.mrf.mxu0
        %2366 = vdwg.mxu0
        %v2367 = vadd.f32 %v2261, %v2321
        %v2368 = vadd.f32 %v2262, %v2323
        %v2369 = vadd.f32 %v2263, %v2362
        %s2370 = scalar_lea.vmem %s476, 14
        %v2371 = vld [vmem:[%s2370] sm:$0x3]
        %2372 = vrot.lane.b32.xlu0 %v994, 91
        %v2373 = vpop.permute.xlu0 %2372
        %2374 = vrot.lane.b32.xlu0 %v995, 91
        %v2375 = vpop.permute.xlu0 %2374
        %2376 = vrot.lane.b32.xlu0 %v996, 91
        %v2377 = vpop.permute.xlu0 %2376
        %vm2378 = vcmask 744448
        %v2379 = vsel %vm2378, %v2373, %v2375
        %v2380 = vsel %vm2378, %v2375, %v2377
        %v2382 = vsel %vm997, %v2371, 0
        %v2385 = vsel %vm1001, %v2379, 0
        %v2388 = vsel %vm1001, %v2380, 0
        %v2391 = vsel %vm1001, %v2377, 0
        %2393 = vmatprep.subr.bf16.mxu0 0
        %2394 = vmatpush1.bf16.msra.mxu0 0
        %2395 = vmatprep.subr.bf16.mxu0 0
        %2396 = vmatpush1.bf16.msra.mxu0 0
        %2397 = vmatprep.subr.bf16.mxu0 0
        %2398 = vmatpush1.bf16.msra.mxu0 0
        %2399 = vmatprep.subr.bf16.mxu0 0
        %2400 = vmatpush1.bf16.msra.mxu0 0
        %2401 = vmatprep.subr.bf16.mxu0 0
        %2402 = vmatpush1.bf16.msra.mxu0 0
        %2403 = vmatprep.subr.bf16.mxu0 0
        %2404 = vmatpush1.bf16.msra.mxu0 0
        %2405 = vmatprep.subr.bf16.mxu0 0
        %2406 = vmatpush1.bf16.msra.mxu0 0
        %2407 = vmatprep.subr.bf16.mxu0 %v2388
        %2408 = vmatpush1.bf16.msra.mxu0 %v2385
        %2409 = vmatprep.subr.bf16.mxu0 0
        %2410 = vmatpush2.bf16.msra.mxu0 0
        %2411 = vmatprep.subr.bf16.mxu0 0
        %2412 = vmatpush2.bf16.msra.mxu0 0
        %2413 = vmatprep.subr.bf16.mxu0 0
        %2414 = vmatpush2.bf16.msra.mxu0 0
        %2415 = vmatprep.subr.bf16.mxu0 0
        %2416 = vmatpush2.bf16.msra.mxu0 0
        %2417 = vmatprep.subr.bf16.mxu0 0
        %2418 = vmatpush2.bf16.msra.mxu0 0
        %2419 = vmatprep.subr.bf16.mxu0 0
        %2420 = vmatpush2.bf16.msra.mxu0 0
        %2421 = vmatprep.subr.bf16.mxu0 0
        %2422 = vmatpush2.bf16.msra.mxu0 0
        %2423 = vmatprep.subr.bf16.mxu0 0
        %2424 = vmatpush2.bf16.msra.mxu0 0
        %2425 = vmatprep.mubr.bf16.mxu0 0
        %2426 = vmatmul.mubr.bf16.gmra.mxu0 %v2382
        %v2427 = vpop.f32.mrf.mxu0
        %v2428 = vadd.f32 0.0, %v2427
        %v2429 = vpop.f32.mrf.mxu0
        %v2430 = vadd.f32 0.0, %v2429
        %v2431 = vpop.f32.mrf.mxu0
        %v2432 = vpop.f32.mrf.mxu0
        %2433 = vdwg.mxu0
        %2434 = vmatprep.subr.bf16.mxu0 0
        %2435 = vmatpush1.bf16.msra.mxu0 0
        %2436 = vmatprep.subr.bf16.mxu0 0
        %2437 = vmatpush1.bf16.msra.mxu0 0
        %2438 = vmatprep.subr.bf16.mxu0 0
        %2439 = vmatpush1.bf16.msra.mxu0 0
        %2440 = vmatprep.subr.bf16.mxu0 0
        %2441 = vmatpush1.bf16.msra.mxu0 0
        %2442 = vmatprep.subr.bf16.mxu0 0
        %2443 = vmatpush1.bf16.msra.mxu0 0
        %2444 = vmatprep.subr.bf16.mxu0 0
        %2445 = vmatpush1.bf16.msra.mxu0 0
        %2446 = vmatprep.subr.bf16.mxu0 0
        %2447 = vmatpush1.bf16.msra.mxu0 0
        %2448 = vmatprep.subr.bf16.mxu0 0
        %2449 = vmatpush1.bf16.msra.mxu0 %v2391
        %2450 = vmatprep.subr.bf16.mxu0 0
        %2451 = vmatpush2.bf16.msra.mxu0 0
        %2452 = vmatprep.subr.bf16.mxu0 0
        %2453 = vmatpush2.bf16.msra.mxu0 0
        %2454 = vmatprep.subr.bf16.mxu0 0
        %2455 = vmatpush2.bf16.msra.mxu0 0
        %2456 = vmatprep.subr.bf16.mxu0 0
        %2457 = vmatpush2.bf16.msra.mxu0 0
        %2458 = vmatprep.subr.bf16.mxu0 0
        %2459 = vmatpush2.bf16.msra.mxu0 0
        %2460 = vmatprep.subr.bf16.mxu0 0
        %2461 = vmatpush2.bf16.msra.mxu0 0
        %2462 = vmatprep.subr.bf16.mxu0 0
        %2463 = vmatpush2.bf16.msra.mxu0 0
        %2464 = vmatprep.subr.bf16.mxu0 0
        %2465 = vmatpush2.bf16.msra.mxu0 0
        %2466 = vmatprep.mubr.bf16.mxu0 0
        %2467 = vmatmul.mubr.bf16.gmra.mxu0 %v2382
        %v2468 = vpop.f32.mrf.mxu0
        %v2469 = vadd.f32 0.0, %v2468
        %v2470 = vpop.f32.mrf.mxu0
        %v2471 = vpop.f32.mrf.mxu0
        %v2472 = vpop.f32.mrf.mxu0
        %2473 = vdwg.mxu0
        %v2474 = vadd.f32 %v2367, %v2428
        %v2475 = vadd.f32 %v2368, %v2430
        %v2476 = vadd.f32 %v2369, %v2469
        %s2477 = scalar_lea.vmem %s481, 14
        %v2478 = vld [vmem:[%s2477] sm:$0x3]
        %2479 = vrot.lane.b32.xlu0 %v634, 91
        %v2480 = vpop.permute.xlu0 %2479
        %2481 = vrot.lane.b32.xlu0 %v635, 91
        %v2482 = vpop.permute.xlu0 %2481
        %2483 = vrot.lane.b32.xlu0 %v636, 91
        %v2484 = vpop.permute.xlu0 %2483
        %v2485 = vsel %vm2378, %v2480, %v2482
        %v2486 = vsel %vm2378, %v2482, %v2484
        %v2488 = vsel %vm637, %v2478, 0
        %v2491 = vsel %vm641, %v2485, 0
        %v2494 = vsel %vm641, %v2486, 0
        %v2497 = vsel %vm641, %v2484, 0
        %2499 = vmatprep.subr.bf16.mxu0 0
        %2500 = vmatpush1.bf16.msra.mxu0 0
        %2501 = vmatprep.subr.bf16.mxu0 0
        %2502 = vmatpush1.bf16.msra.mxu0 0
        %2503 = vmatprep.subr.bf16.mxu0 0
        %2504 = vmatpush1.bf16.msra.mxu0 0
        %2505 = vmatprep.subr.bf16.mxu0 0
        %2506 = vmatpush1.bf16.msra.mxu0 0
        %2507 = vmatprep.subr.bf16.mxu0 0
        %2508 = vmatpush1.bf16.msra.mxu0 0
        %2509 = vmatprep.subr.bf16.mxu0 0
        %2510 = vmatpush1.bf16.msra.mxu0 0
        %2511 = vmatprep.subr.bf16.mxu0 0
        %2512 = vmatpush1.bf16.msra.mxu0 0
        %2513 = vmatprep.subr.bf16.mxu0 %v2494
        %2514 = vmatpush1.bf16.msra.mxu0 %v2491
        %2515 = vmatprep.subr.bf16.mxu0 0
        %2516 = vmatpush2.bf16.msra.mxu0 0
        %2517 = vmatprep.subr.bf16.mxu0 0
        %2518 = vmatpush2.bf16.msra.mxu0 0
        %2519 = vmatprep.subr.bf16.mxu0 0
        %2520 = vmatpush2.bf16.msra.mxu0 0
        %2521 = vmatprep.subr.bf16.mxu0 0
        %2522 = vmatpush2.bf16.msra.mxu0 0
        %2523 = vmatprep.subr.bf16.mxu0 0
        %2524 = vmatpush2.bf16.msra.mxu0 0
        %2525 = vmatprep.subr.bf16.mxu0 0
        %2526 = vmatpush2.bf16.msra.mxu0 0
        %2527 = vmatprep.subr.bf16.mxu0 0
        %2528 = vmatpush2.bf16.msra.mxu0 0
        %2529 = vmatprep.subr.bf16.mxu0 0
        %2530 = vmatpush2.bf16.msra.mxu0 0
        %2531 = vmatprep.mubr.bf16.mxu0 0
        %2532 = vmatmul.mubr.bf16.gmra.mxu0 %v2488
        %v2533 = vpop.f32.mrf.mxu0
        %v2534 = vadd.f32 0.0, %v2533
        %v2535 = vpop.f32.mrf.mxu0
        %v2536 = vadd.f32 0.0, %v2535
        %v2537 = vpop.f32.mrf.mxu0
        %v2538 = vpop.f32.mrf.mxu0
        %2539 = vdwg.mxu0
        %2540 = vmatprep.subr.bf16.mxu0 0
        %2541 = vmatpush1.bf16.msra.mxu0 0
        %2542 = vmatprep.subr.bf16.mxu0 0
        %2543 = vmatpush1.bf16.msra.mxu0 0
        %2544 = vmatprep.subr.bf16.mxu0 0
        %2545 = vmatpush1.bf16.msra.mxu0 0
        %2546 = vmatprep.subr.bf16.mxu0 0
        %2547 = vmatpush1.bf16.msra.mxu0 0
        %2548 = vmatprep.subr.bf16.mxu0 0
        %2549 = vmatpush1.bf16.msra.mxu0 0
        %2550 = vmatprep.subr.bf16.mxu0 0
        %2551 = vmatpush1.bf16.msra.mxu0 0
        %2552 = vmatprep.subr.bf16.mxu0 0
        %2553 = vmatpush1.bf16.msra.mxu0 0
        %2554 = vmatprep.subr.bf16.mxu0 0
        %2555 = vmatpush1.bf16.msra.mxu0 %v2497
        %2556 = vmatprep.subr.bf16.mxu0 0
        %2557 = vmatpush2.bf16.msra.mxu0 0
        %2558 = vmatprep.subr.bf16.mxu0 0
        %2559 = vmatpush2.bf16.msra.mxu0 0
        %2560 = vmatprep.subr.bf16.mxu0 0
        %2561 = vmatpush2.bf16.msra.mxu0 0
        %2562 = vmatprep.subr.bf16.mxu0 0
        %2563 = vmatpush2.bf16.msra.mxu0 0
        %2564 = vmatprep.subr.bf16.mxu0 0
        %2565 = vmatpush2.bf16.msra.mxu0 0
        %2566 = vmatprep.subr.bf16.mxu0 0
        %2567 = vmatpush2.bf16.msra.mxu0 0
        %2568 = vmatprep.subr.bf16.mxu0 0
        %2569 = vmatpush2.bf16.msra.mxu0 0
        %2570 = vmatprep.subr.bf16.mxu0 0
        %2571 = vmatpush2.bf16.msra.mxu0 0
        %2572 = vmatprep.mubr.bf16.mxu0 0
        %2573 = vmatmul.mubr.bf16.gmra.mxu0 %v2488
        %v2574 = vpop.f32.mrf.mxu0
        %v2575 = vadd.f32 0.0, %v2574
        %v2576 = vpop.f32.mrf.mxu0
        %v2577 = vpop.f32.mrf.mxu0
        %v2578 = vpop.f32.mrf.mxu0
        %2579 = vdwg.mxu0
        %v2580 = vadd.f32 %v2474, %v2534
        %v2581 = vadd.f32 %v2475, %v2536
        %v2582 = vadd.f32 %v2476, %v2575
        %s2583 = scalar_lea.vmem %s476, 16
        %v2584 = vld [vmem:[%s2583] sm:$0x3]
        %2585 = vrot.lane.b32.xlu0 %v994, 90
        %v2586 = vpop.permute.xlu0 %2585
        %2587 = vrot.lane.b32.xlu0 %v995, 90
        %v2588 = vpop.permute.xlu0 %2587
        %2589 = vrot.lane.b32.xlu0 %v996, 90
        %v2590 = vpop.permute.xlu0 %2589
        %vm2591 = vcmask 736256
        %v2592 = vsel %vm2591, %v2586, %v2588
        %v2593 = vsel %vm2591, %v2588, %v2590
        %v2595 = vsel %vm997, %v2584, 0
        %v2598 = vsel %vm1001, %v2592, 0
        %v2601 = vsel %vm1001, %v2593, 0
        %v2604 = vsel %vm1001, %v2590, 0
        %2606 = vmatprep.subr.bf16.mxu0 0
        %2607 = vmatpush1.bf16.msra.mxu0 0
        %2608 = vmatprep.subr.bf16.mxu0 0
        %2609 = vmatpush1.bf16.msra.mxu0 0
        %2610 = vmatprep.subr.bf16.mxu0 0
        %2611 = vmatpush1.bf16.msra.mxu0 0
        %2612 = vmatprep.subr.bf16.mxu0 0
        %2613 = vmatpush1.bf16.msra.mxu0 0
        %2614 = vmatprep.subr.bf16.mxu0 0
        %2615 = vmatpush1.bf16.msra.mxu0 0
        %2616 = vmatprep.subr.bf16.mxu0 0
        %2617 = vmatpush1.bf16.msra.mxu0 0
        %2618 = vmatprep.subr.bf16.mxu0 0
        %2619 = vmatpush1.bf16.msra.mxu0 0
        %2620 = vmatprep.subr.bf16.mxu0 %v2601
        %2621 = vmatpush1.bf16.msra.mxu0 %v2598
        %2622 = vmatprep.subr.bf16.mxu0 0
        %2623 = vmatpush2.bf16.msra.mxu0 0
        %2624 = vmatprep.subr.bf16.mxu0 0
        %2625 = vmatpush2.bf16.msra.mxu0 0
        %2626 = vmatprep.subr.bf16.mxu0 0
        %2627 = vmatpush2.bf16.msra.mxu0 0
        %2628 = vmatprep.subr.bf16.mxu0 0
        %2629 = vmatpush2.bf16.msra.mxu0 0
        %2630 = vmatprep.subr.bf16.mxu0 0
        %2631 = vmatpush2.bf16.msra.mxu0 0
        %2632 = vmatprep.subr.bf16.mxu0 0
        %2633 = vmatpush2.bf16.msra.mxu0 0
        %2634 = vmatprep.subr.bf16.mxu0 0
        %2635 = vmatpush2.bf16.msra.mxu0 0
        %2636 = vmatprep.subr.bf16.mxu0 0
        %2637 = vmatpush2.bf16.msra.mxu0 0
        %2638 = vmatprep.mubr.bf16.mxu0 0
        %2639 = vmatmul.mubr.bf16.gmra.mxu0 %v2595
        %v2640 = vpop.f32.mrf.mxu0
        %v2641 = vadd.f32 0.0, %v2640
        %v2642 = vpop.f32.mrf.mxu0
        %v2643 = vadd.f32 0.0, %v2642
        %v2644 = vpop.f32.mrf.mxu0
        %v2645 = vpop.f32.mrf.mxu0
        %2646 = vdwg.mxu0
        %2647 = vmatprep.subr.bf16.mxu0 0
        %2648 = vmatpush1.bf16.msra.mxu0 0
        %2649 = vmatprep.subr.bf16.mxu0 0
        %2650 = vmatpush1.bf16.msra.mxu0 0
        %2651 = vmatprep.subr.bf16.mxu0 0
        %2652 = vmatpush1.bf16.msra.mxu0 0
        %2653 = vmatprep.subr.bf16.mxu0 0
        %2654 = vmatpush1.bf16.msra.mxu0 0
        %2655 = vmatprep.subr.bf16.mxu0 0
        %2656 = vmatpush1.bf16.msra.mxu0 0
        %2657 = vmatprep.subr.bf16.mxu0 0
        %2658 = vmatpush1.bf16.msra.mxu0 0
        %2659 = vmatprep.subr.bf16.mxu0 0
        %2660 = vmatpush1.bf16.msra.mxu0 0
        %2661 = vmatprep.subr.bf16.mxu0 0
        %2662 = vmatpush1.bf16.msra.mxu0 %v2604
        %2663 = vmatprep.subr.bf16.mxu0 0
        %2664 = vmatpush2.bf16.msra.mxu0 0
        %2665 = vmatprep.subr.bf16.mxu0 0
        %2666 = vmatpush2.bf16.msra.mxu0 0
        %2667 = vmatprep.subr.bf16.mxu0 0
        %2668 = vmatpush2.bf16.msra.mxu0 0
        %2669 = vmatprep.subr.bf16.mxu0 0
        %2670 = vmatpush2.bf16.msra.mxu0 0
        %2671 = vmatprep.subr.bf16.mxu0 0
        %2672 = vmatpush2.bf16.msra.mxu0 0
        %2673 = vmatprep.subr.bf16.mxu0 0
        %2674 = vmatpush2.bf16.msra.mxu0 0
        %2675 = vmatprep.subr.bf16.mxu0 0
        %2676 = vmatpush2.bf16.msra.mxu0 0
        %2677 = vmatprep.subr.bf16.mxu0 0
        %2678 = vmatpush2.bf16.msra.mxu0 0
        %2679 = vmatprep.mubr.bf16.mxu0 0
        %2680 = vmatmul.mubr.bf16.gmra.mxu0 %v2595
        %v2681 = vpop.f32.mrf.mxu0
        %v2682 = vadd.f32 0.0, %v2681
        %v2683 = vpop.f32.mrf.mxu0
        %v2684 = vpop.f32.mrf.mxu0
        %v2685 = vpop.f32.mrf.mxu0
        %2686 = vdwg.mxu0
        %v2687 = vadd.f32 %v2580, %v2641
        %v2688 = vadd.f32 %v2581, %v2643
        %v2689 = vadd.f32 %v2582, %v2682
        %s2690 = scalar_lea.vmem %s481, 16
        %v2691 = vld [vmem:[%s2690] sm:$0x3]
        %2692 = vrot.lane.b32.xlu0 %v634, 90
        %v2693 = vpop.permute.xlu0 %2692
        %2694 = vrot.lane.b32.xlu0 %v635, 90
        %v2695 = vpop.permute.xlu0 %2694
        %2696 = vrot.lane.b32.xlu0 %v636, 90
        %v2697 = vpop.permute.xlu0 %2696
        %v2698 = vsel %vm2591, %v2693, %v2695
        %v2699 = vsel %vm2591, %v2695, %v2697
        %v2701 = vsel %vm637, %v2691, 0
        %v2704 = vsel %vm641, %v2698, 0
        %v2707 = vsel %vm641, %v2699, 0
        %v2710 = vsel %vm641, %v2697, 0
        %2712 = vmatprep.subr.bf16.mxu0 0
        %2713 = vmatpush1.bf16.msra.mxu0 0
        %2714 = vmatprep.subr.bf16.mxu0 0
        %2715 = vmatpush1.bf16.msra.mxu0 0
        %2716 = vmatprep.subr.bf16.mxu0 0
        %2717 = vmatpush1.bf16.msra.mxu0 0
        %2718 = vmatprep.subr.bf16.mxu0 0
        %2719 = vmatpush1.bf16.msra.mxu0 0
        %2720 = vmatprep.subr.bf16.mxu0 0
        %2721 = vmatpush1.bf16.msra.mxu0 0
        %2722 = vmatprep.subr.bf16.mxu0 0
        %2723 = vmatpush1.bf16.msra.mxu0 0
        %2724 = vmatprep.subr.bf16.mxu0 0
        %2725 = vmatpush1.bf16.msra.mxu0 0
        %2726 = vmatprep.subr.bf16.mxu0 %v2707
        %2727 = vmatpush1.bf16.msra.mxu0 %v2704
        %2728 = vmatprep.subr.bf16.mxu0 0
        %2729 = vmatpush2.bf16.msra.mxu0 0
        %2730 = vmatprep.subr.bf16.mxu0 0
        %2731 = vmatpush2.bf16.msra.mxu0 0
        %2732 = vmatprep.subr.bf16.mxu0 0
        %2733 = vmatpush2.bf16.msra.mxu0 0
        %2734 = vmatprep.subr.bf16.mxu0 0
        %2735 = vmatpush2.bf16.msra.mxu0 0
        %2736 = vmatprep.subr.bf16.mxu0 0
        %2737 = vmatpush2.bf16.msra.mxu0 0
        %2738 = vmatprep.subr.bf16.mxu0 0
        %2739 = vmatpush2.bf16.msra.mxu0 0
        %2740 = vmatprep.subr.bf16.mxu0 0
        %2741 = vmatpush2.bf16.msra.mxu0 0
        %2742 = vmatprep.subr.bf16.mxu0 0
        %2743 = vmatpush2.bf16.msra.mxu0 0
        %2744 = vmatprep.mubr.bf16.mxu0 0
        %2745 = vmatmul.mubr.bf16.gmra.mxu0 %v2701
        %v2746 = vpop.f32.mrf.mxu0
        %v2747 = vadd.f32 0.0, %v2746
        %v2748 = vpop.f32.mrf.mxu0
        %v2749 = vadd.f32 0.0, %v2748
        %v2750 = vpop.f32.mrf.mxu0
        %v2751 = vpop.f32.mrf.mxu0
        %2752 = vdwg.mxu0
        %2753 = vmatprep.subr.bf16.mxu0 0
        %2754 = vmatpush1.bf16.msra.mxu0 0
        %2755 = vmatprep.subr.bf16.mxu0 0
        %2756 = vmatpush1.bf16.msra.mxu0 0
        %2757 = vmatprep.subr.bf16.mxu0 0
        %2758 = vmatpush1.bf16.msra.mxu0 0
        %2759 = vmatprep.subr.bf16.mxu0 0
        %2760 = vmatpush1.bf16.msra.mxu0 0
        %2761 = vmatprep.subr.bf16.mxu0 0
        %2762 = vmatpush1.bf16.msra.mxu0 0
        %2763 = vmatprep.subr.bf16.mxu0 0
        %2764 = vmatpush1.bf16.msra.mxu0 0
        %2765 = vmatprep.subr.bf16.mxu0 0
        %2766 = vmatpush1.bf16.msra.mxu0 0
        %2767 = vmatprep.subr.bf16.mxu0 0
        %2768 = vmatpush1.bf16.msra.mxu0 %v2710
        %2769 = vmatprep.subr.bf16.mxu0 0
        %2770 = vmatpush2.bf16.msra.mxu0 0
        %2771 = vmatprep.subr.bf16.mxu0 0
        %2772 = vmatpush2.bf16.msra.mxu0 0
        %2773 = vmatprep.subr.bf16.mxu0 0
        %2774 = vmatpush2.bf16.msra.mxu0 0
        %2775 = vmatprep.subr.bf16.mxu0 0
        %2776 = vmatpush2.bf16.msra.mxu0 0
        %2777 = vmatprep.subr.bf16.mxu0 0
        %2778 = vmatpush2.bf16.msra.mxu0 0
        %2779 = vmatprep.subr.bf16.mxu0 0
        %2780 = vmatpush2.bf16.msra.mxu0 0
        %2781 = vmatprep.subr.bf16.mxu0 0
        %2782 = vmatpush2.bf16.msra.mxu0 0
        %2783 = vmatprep.subr.bf16.mxu0 0
        %2784 = vmatpush2.bf16.msra.mxu0 0
        %2785 = vmatprep.mubr.bf16.mxu0 0
        %2786 = vmatmul.mubr.bf16.gmra.mxu0 %v2701
        %v2787 = vpop.f32.mrf.mxu0
        %v2788 = vadd.f32 0.0, %v2787
        %v2789 = vpop.f32.mrf.mxu0
        %v2790 = vpop.f32.mrf.mxu0
        %v2791 = vpop.f32.mrf.mxu0
        %2792 = vdwg.mxu0
        %v2793 = vadd.f32 %v2687, %v2747
        %v2794 = vadd.f32 %v2688, %v2749
        %v2795 = vadd.f32 %v2689, %v2788
        %p2796 = scmp.eq.s32.totalorder %s25, 0
        // Predicated region
        $region123: #{up_merge_forward.2} parent=113 // pred_check
          %p2797 = pneg %p2796
        $region124: #{up_merge_forward.2} parent=113 // pred_check_branch
          %2799 = sbr.rel (%p2797) target = $region126
        $region125: #{up_merge_forward.2} parent=113 // pred_region
          %v2803 = vcombine.low %v2793, %v2794
          %v2805 = vunpack.c.l.s4 1966171168
          %v2806 = vunpack.c.0.s8 %v2805
          %v2807 = vlaneseq
          %v2808 = vshrl.u32 %v2807, 7
          %v2809 = vsub.s32 %v2806, %v2808
          %v2810 = vrot.slane %v2803, %v2809
          %v2812 = vunpack.c.l.s4 1966171168
          %v2813 = vunpack.c.0.s8 %v2812
          %v2814 = vlaneseq
          %v2815 = vshrl.u32 %v2814, 7
          %v2816 = vsub.s32 %v2813, %v2815
          %v2817 = vrot.slane %v2795, %v2816
          %v2818 = vcombine.low %v2810, %v2817
          %v2819 = vcombine.high %v2810, %v2817
          %v2821 = vunpack.c.l.s4 1966171168
          %v2822 = vunpack.c.0.s8 %v2821
          %v2823 = vlaneseq
          %v2824 = vshrl.u32 %v2823, 7
          %v2825 = vsub.s32 %v2822, %v2824
          %v2826 = vrot.slane %v2818, %v2825
          %v2828 = vunpack.c.l.s4 1966171168
          %v2829 = vunpack.c.0.s8 %v2828
          %v2830 = vlaneseq
          %v2831 = vshrl.u32 %v2830, 7
          %v2832 = vsub.s32 %v2829, %v2831
          %v2833 = vrot.slane %v2819, %v2832
          %v2834 = vcombine.high %v2826, %v2826
          %v2835 = vcombine.high %v2833, %v2833
          %v2840 = vlaneseq
          %vm2841 = vcmp.ge.s32.totalorder %v2840, 0
          %vm2842 = vcmp.lt.s32.totalorder %v2840, 324
          %vm2843 = vmand %vm2841, %vm2842
          %2844 = vst.msk [vmem:[%s459] sm:$0x7] %vm2843, %v2826
          %2845 = vst.msk [vmem:[%s459 + $0x3] sm:$0x7] %vm2843, %v2833
          %2846 = vst.msk [vmem:[%s459 + $0x6] sm:$0x7] %vm2843, %v2834
          %2847 = vst.msk [vmem:[%s459 + $0x9] sm:$0x7] %vm2843, %v2835
        $region126: #{up_merge_forward.2} parent=113 // pred_fallthru
          _
        %p2848 = scmp.gt.s32.totalorder %s25, 0
        // Predicated region
        $region127: #{up_merge_forward.2} parent=113 // pred_check
          %p2849 = pneg %p2848
        $region128: #{up_merge_forward.2} parent=113 // pred_check_branch
          %2851 = sbr.rel (%p2849) target = $region130
        $region129: #{up_merge_forward.2} parent=113 // pred_region
          %v2852 = vld [vmem:[%s459] sm:$0x7]
          %v2853 = vld [vmem:[%s459 + $0x3] sm:$0x7]
          %v2854 = vld [vmem:[%s459 + $0x6] sm:$0x7]
          %v2855 = vld [vmem:[%s459 + $0x9] sm:$0x7]
          %v2859 = vcombine.low %v2793, %v2794
          %v2861 = vunpack.c.l.s4 1966171168
          %v2862 = vunpack.c.0.s8 %v2861
          %v2863 = vlaneseq
          %v2864 = vshrl.u32 %v2863, 7
          %v2865 = vsub.s32 %v2862, %v2864
          %v2866 = vrot.slane %v2859, %v2865
          %v2868 = vunpack.c.l.s4 1966171168
          %v2869 = vunpack.c.0.s8 %v2868
          %v2870 = vlaneseq
          %v2871 = vshrl.u32 %v2870, 7
          %v2872 = vsub.s32 %v2869, %v2871
          %v2873 = vrot.slane %v2795, %v2872
          %v2874 = vcombine.low %v2866, %v2873
          %v2875 = vcombine.high %v2866, %v2873
          %v2877 = vunpack.c.l.s4 1966171168
          %v2878 = vunpack.c.0.s8 %v2877
          %v2879 = vlaneseq
          %v2880 = vshrl.u32 %v2879, 7
          %v2881 = vsub.s32 %v2878, %v2880
          %v2882 = vrot.slane %v2874, %v2881
          %v2884 = vunpack.c.l.s4 1966171168
          %v2885 = vunpack.c.0.s8 %v2884
          %v2886 = vlaneseq
          %v2887 = vshrl.u32 %v2886, 7
          %v2888 = vsub.s32 %v2885, %v2887
          %v2889 = vrot.slane %v2875, %v2888
          %v2890 = vcombine.high %v2882, %v2882
          %v2891 = vcombine.high %v2889, %v2889
          %v2896 = vadd.f32 %v2852, %v2882
          %v2897 = vadd.f32 %v2853, %v2889
          %v2898 = vadd.f32 %v2854, %v2890
          %v2899 = vadd.f32 %v2855, %v2891
          %v2900 = vlaneseq
          %vm2901 = vcmp.ge.s32.totalorder %v2900, 0
          %vm2902 = vcmp.lt.s32.totalorder %v2900, 324
          %vm2903 = vmand %vm2901, %vm2902
          %2904 = vst.msk [vmem:[%s459] sm:$0x7] %vm2903, %v2896
          %2905 = vst.msk [vmem:[%s459 + $0x3] sm:$0x7] %vm2903, %v2897
          %2906 = vst.msk [vmem:[%s459 + $0x6] sm:$0x7] %vm2903, %v2898
          %2907 = vst.msk [vmem:[%s459 + $0x9] sm:$0x7] %vm2903, %v2899
        $region130: #{up_merge_forward.2} parent=113 // pred_fallthru
          _
        %p2908 = scmp.eq.s32.totalorder %s25, 2
        // Predicated region
        $region131: #{up_merge_forward.2} parent=113 // pred_check
          %p2909 = pneg %p2908
        $region132: #{up_merge_forward.2} parent=113 // pred_check_branch
          %2911 = sbr.rel (%p2909) target = $region134
        $region133: #{up_merge_forward.2} parent=113 // pred_region
          %v2912 = vld [vmem:[%s459] sm:$0x7]
          %v2913 = vld [vmem:[%s459 + $0x3] sm:$0x7]
          %v2914 = vld [vmem:[%s459 + $0x6] sm:$0x7]
          %v2915 = vld [vmem:[%s459 + $0x9] sm:$0x7]
          %v2916 = vld [vmem:[%s4] sm:$0x7]
          %v2918 = vlaneseq
          %v2919 = vshrl.u32 %v2918, 7
          %v2920 = vsub.s32 0, %v2919
          %v2921 = vrot.slane %v2916, %v2920
          %v2922 = vlaneseq
          %v2923 = vshrl.u32 %v2922, 7
          %v2924 = vsub.s32 1, %v2923
          %v2925 = vrot.slane %v2916, %v2924
          %v2926 = vlaneseq
          %v2927 = vshrl.u32 %v2926, 7
          %v2928 = vsub.s32 2, %v2927
          %v2929 = vrot.slane %v2916, %v2928
          %v2930 = vcombine.low %v2921, %v2925
          %v2932 = vunpack.c.l.s4 1966171168
          %v2933 = vunpack.c.0.s8 %v2932
          %v2934 = vlaneseq
          %v2935 = vshrl.u32 %v2934, 7
          %v2936 = vsub.s32 %v2933, %v2935
          %v2937 = vrot.slane %v2930, %v2936
          %v2939 = vunpack.c.l.s4 1966171168
          %v2940 = vunpack.c.0.s8 %v2939
          %v2941 = vlaneseq
          %v2942 = vshrl.u32 %v2941, 7
          %v2943 = vsub.s32 %v2940, %v2942
          %v2944 = vrot.slane %v2929, %v2943
          %v2945 = vcombine.low %v2937, %v2944
          %v2946 = vcombine.high %v2937, %v2944
          %v2948 = vunpack.c.l.s4 1966171168
          %v2949 = vunpack.c.0.s8 %v2948
          %v2950 = vlaneseq
          %v2951 = vshrl.u32 %v2950, 7
          %v2952 = vsub.s32 %v2949, %v2951
          %v2953 = vrot.slane %v2945, %v2952
          %v2955 = vunpack.c.l.s4 1966171168
          %v2956 = vunpack.c.0.s8 %v2955
          %v2957 = vlaneseq
          %v2958 = vshrl.u32 %v2957, 7
          %v2959 = vsub.s32 %v2956, %v2958
          %v2960 = vrot.slane %v2946, %v2959
          %v2961 = vcombine.high %v2953, %v2953
          %v2962 = vcombine.high %v2960, %v2960
          %v2967 = vmul.f32 %v2912, %v2953
          %v2968 = vmul.f32 %v2913, %v2960
          %v2969 = vmul.f32 %v2914, %v2961
          %v2970 = vmul.f32 %v2915, %v2962
          %v2975 = vcombine.low %v2967, %v2968
          %v2976 = vcombine.low %v2969, %v2970
          %v2978 = vunpack.c.l.s4 1966171168
          %v2979 = vunpack.c.0.s8 %v2978
          %v2980 = vlaneseq
          %v2981 = vshrl.u32 %v2980, 7
          %v2982 = vsub.s32 %v2979, %v2981
          %v2983 = vrot.slane %v2975, %v2982
          %v2985 = vunpack.c.l.s4 1966171168
          %v2986 = vunpack.c.0.s8 %v2985
          %v2987 = vlaneseq
          %v2988 = vshrl.u32 %v2987, 7
          %v2989 = vsub.s32 %v2986, %v2988
          %v2990 = vrot.slane %v2976, %v2989
          %v2991 = vcombine.low %v2983, %v2990
          %v2992 = vcombine.high %v2983, %v2990
          %v2994 = vunpack.c.l.s4 1966171168
          %v2995 = vunpack.c.0.s8 %v2994
          %v2996 = vlaneseq
          %v2997 = vshrl.u32 %v2996, 7
          %v2998 = vsub.s32 %v2995, %v2997
          %v2999 = vrot.slane %v2991, %v2998
          %v3001 = vunpack.c.l.s4 1966171168
          %v3002 = vunpack.c.0.s8 %v3001
          %v3003 = vlaneseq
          %v3004 = vshrl.u32 %v3003, 7
          %v3005 = vsub.s32 %v3002, %v3004
          %v3006 = vrot.slane %v2992, %v3005
          %v3007 = vcombine.high %v2999, %v2999
          %v3011 = vsel %vm1001, %v2999, 0.0
          %v3012 = vsel %vm1001, %v3006, 0.0
          %v3013 = vadd.f32 %v3011, %v3012
          %vm3014 = vcmask 551936
          %v3015 = vsel %vm3014, %v3007, 0.0
          %v3016 = vadd.f32 %v3013, %v3015
          %3017 = vadd.xlane.f32.xlu0 %v3016
          %v3018 = vpop.xlane.xlu0 %3017
          %vm3019 = vcmask 3072
          %3020 = vst.msk [vmem:[%s489] sm:$0xf] %vm3019, %v3018
          %v3021 = vmul.f32 %v2967, %v2912
          %v3022 = vmul.f32 %v2968, %v2913
          %v3023 = vmul.f32 %v2969, %v2914
          %v3024 = vmul.f32 %v2970, %v2915
          %v3029 = vcombine.low %v3021, %v3022
          %v3030 = vcombine.low %v3023, %v3024
          %v3032 = vunpack.c.l.s4 1966171168
          %v3033 = vunpack.c.0.s8 %v3032
          %v3034 = vlaneseq
          %v3035 = vshrl.u32 %v3034, 7
          %v3036 = vsub.s32 %v3033, %v3035
          %v3037 = vrot.slane %v3029, %v3036
          %v3039 = vunpack.c.l.s4 1966171168
          %v3040 = vunpack.c.0.s8 %v3039
          %v3041 = vlaneseq
          %v3042 = vshrl.u32 %v3041, 7
          %v3043 = vsub.s32 %v3040, %v3042
          %v3044 = vrot.slane %v3030, %v3043
          %v3045 = vcombine.low %v3037, %v3044
          %v3046 = vcombine.high %v3037, %v3044
          %v3048 = vunpack.c.l.s4 1966171168
          %v3049 = vunpack.c.0.s8 %v3048
          %v3050 = vlaneseq
          %v3051 = vshrl.u32 %v3050, 7
          %v3052 = vsub.s32 %v3049, %v3051
          %v3053 = vrot.slane %v3045, %v3052
          %v3055 = vunpack.c.l.s4 1966171168
          %v3056 = vunpack.c.0.s8 %v3055
          %v3057 = vlaneseq
          %v3058 = vshrl.u32 %v3057, 7
          %v3059 = vsub.s32 %v3056, %v3058
          %v3060 = vrot.slane %v3046, %v3059
          %v3061 = vcombine.high %v3053, %v3053
          %v3065 = vsel %vm1001, %v3053, 0.0
          %v3066 = vsel %vm1001, %v3060, 0.0
          %v3067 = vadd.f32 %v3065, %v3066
          %v3068 = vsel %vm3014, %v3061, 0.0
          %v3069 = vadd.f32 %v3067, %v3068
          %3070 = vadd.xlane.f32.xlu0 %v3069
          %v3071 = vpop.xlane.xlu0 %3070
          %vm3072 = vcmask 11272
          %3073 = vst.msk [vmem:[%s489] sm:$0xf] %vm3072, %v3071
        $region134: #{up_merge_forward.2} parent=113 // pred_fallthru
          _
        %s3074 = sand.u32 %s180, 1
        %s3075 = sand.u32 %s180, 1
        %s3076 = smul.addr %s3075, 12
        %s3077 = scalar_lea.vmem [#allocation4], %s3076
        %p3078 = scmp.lt.s32.totalorder %s23, 1
        %s3079 = scalar_select %p3078, %s23, 1
        %p3080 = scmp.lt.s32.totalorder %s24, 7
        %s3081 = scalar_select %p3080, %s24, 7
        %s3082 = smul.addr %s3079, 8
        %s3083 = sadd.s32 %s3081, %s3082
        %s3084 = smul.addr %s3083, 4
        %s3085 = scalar_lea.vmem %s6, %s3084
        // Predicated region
        $region135: #{up_merge_forward.2} parent=113 // pred_check
          %p3086 = pneg %p190
        $region136: #{up_merge_forward.2} parent=113 // pred_check_branch
          %3088 = sbr.rel (%p3086) target = $region138
        $region137: #{up_merge_forward.2} parent=113 // pred_region
          %s3089 = smul.addr %s24, 3
          %s3090 = smul.addr %s23, 96
          %s3091 = sadd.s32 %s3089, %s3090
          %s3092 = scalar_lea.vmem %s5, %s3091
          // Predicated region
          $region139: #{up_merge_forward.2} parent=137 // pred_check
            _
          $region140: #{up_merge_forward.2} parent=137 // pred_check_branch
            %3094 = sbr.rel (0) target = $region142
          $region141: #{up_merge_forward.2} parent=137 // pred_region
            // Predicated region
            $region143: #{up_merge_forward.2} parent=141 // pred_check
              _
            $region144: #{up_merge_forward.2} parent=141 // pred_check_branch
              %3096 = sbr.rel target = $region146
            $region145: #{up_merge_forward.2} parent=141 // pred_region
              // Predicated region
              $region158: #{up_merge_forward.2} parent=145 // pred_check
                _
              $region159: #{up_merge_forward.2} parent=145 // pred_check_branch
                %3118 = sbr.rel (0) target = $region161
              $region160: #{up_merge_forward.2} parent=145 // pred_region
                loop: start=0, step=1, limit=1
                $region162: #{up_merge_forward.2} parent=160 // loop_pre_header
                  _
                $region163: #{up_merge_forward.2} parent=160 // loop_header
                  %s3120 = sphi 0, %s3124
                  %p3121 = scmp.ge.s32.totalorder %s3120, 1
                  %s3125 = sphi %s3077, %s3077
                  %s3126 = sphi %s3092, %s3092
                $region164: #{up_merge_forward.2} parent=160 // loop_header_branch
                  %3123 = sbr.rel (%p3121) target = $region168
                $region165: #{up_merge_forward.2} parent=160 // loop_body
                  _
                $region166: #{up_merge_forward.2} parent=160 // loop_footer
                  %s3124 = sadd.s32 1, %s3120
                $region167: #{up_merge_forward.2} parent=160 // loop_footer_branch
                  %3119 = sbr.rel target = $region163
                $region168: #{up_merge_forward.2} parent=160 // loop_exit
                  _
                %s3128 = ssub.s32 8, 1
                loop: start=0, step=1, limit=1
                $region169: #{up_merge_forward.2} parent=160 // loop_pre_header
                  _
                $region170: #{up_merge_forward.2} parent=160 // loop_header
                  %s3130 = sphi 0, %s3134
                  %p3131 = scmp.ge.s32.totalorder %s3130, 1
                  %s3135 = sphi %s3077, %s3077
                  %s3136 = sphi %s3092, %s3092
                $region171: #{up_merge_forward.2} parent=160 // loop_header_branch
                  %3133 = sbr.rel (%p3131) target = $region175
                $region172: #{up_merge_forward.2} parent=160 // loop_body
                  %v3137 = vld [vmem:[%s3135] sm:%s3128]
                  %3138 = vst [vmem:[%s3136] sm:%s3128] %v3137
                  %v3139 = vld [vmem:[%s3135 + $0x3] sm:%s3128]
                  %3140 = vst [vmem:[%s3136 + $0x18] sm:%s3128] %v3139
                  %v3141 = vld [vmem:[%s3135 + $0x6] sm:%s3128]
                  %3142 = vst [vmem:[%s3136 + $0x30] sm:%s3128] %v3141
                  %v3143 = vld [vmem:[%s3135 + $0x9] sm:%s3128]
                  %3144 = vst [vmem:[%s3136 + $0x48] sm:%s3128] %v3143
                $region173: #{up_merge_forward.2} parent=160 // loop_footer
                  %s3134 = sadd.s32 1, %s3130
                $region174: #{up_merge_forward.2} parent=160 // loop_footer_branch
                  %3129 = sbr.rel target = $region170
                $region175: #{up_merge_forward.2} parent=160 // loop_exit
                  _
              $region161: #{up_merge_forward.2} parent=145 // pred_fallthru
                _
            $region146: #{up_merge_forward.2} parent=141 // pred_fallthru
              _
            // Predicated region
            $region147: #{up_merge_forward.2} parent=141 // pred_check
              _
            $region148: #{up_merge_forward.2} parent=141 // pred_check_branch
              %3098 = sbr.rel (0) target = $region150
            $region149: #{up_merge_forward.2} parent=141 // pred_region
              %s3100 = ssub.s32 8, 1
              loop: start=0, step=1, limit=1
              $region151: #{up_merge_forward.2} parent=149 // loop_pre_header
                _
              $region152: #{up_merge_forward.2} parent=149 // loop_header
                %s3102 = sphi 0, %s3106
                %p3103 = scmp.ge.s32.totalorder %s3102, 1
                %s3107 = sphi %s3077, %s3077
                %s3108 = sphi %s3092, %s3092
              $region153: #{up_merge_forward.2} parent=149 // loop_header_branch
                %3105 = sbr.rel (%p3103) target = $region157
              $region154: #{up_merge_forward.2} parent=149 // loop_body
                %v3109 = vld [vmem:[%s3107] sm:%s3100]
                %3110 = vst [vmem:[%s3108] sm:%s3100] %v3109
                %v3111 = vld [vmem:[%s3107 + $0x3] sm:%s3100]
                %3112 = vst [vmem:[%s3108 + $0x18] sm:%s3100] %v3111
                %v3113 = vld [vmem:[%s3107 + $0x6] sm:%s3100]
                %3114 = vst [vmem:[%s3108 + $0x30] sm:%s3100] %v3113
                %v3115 = vld [vmem:[%s3107 + $0x9] sm:%s3100]
                %3116 = vst [vmem:[%s3108 + $0x48] sm:%s3100] %v3115
              $region155: #{up_merge_forward.2} parent=149 // loop_footer
                %s3106 = sadd.s32 1, %s3102
              $region156: #{up_merge_forward.2} parent=149 // loop_footer_branch
                %3101 = sbr.rel target = $region152
              $region157: #{up_merge_forward.2} parent=149 // loop_exit
                _
            $region150: #{up_merge_forward.2} parent=141 // pred_fallthru
              _
          $region142: #{up_merge_forward.2} parent=137 // pred_fallthru
            _
          %3145 = vnop
        $region138: #{up_merge_forward.2} parent=113 // pred_fallthru
          _
        // Predicated region
        $region176: #{up_merge_forward.2} parent=113 // pred_check
          %p3146 = pneg %p218
        $region177: #{up_merge_forward.2} parent=113 // pred_check_branch
          %3148 = sbr.rel (%p3146) target = $region179
        $region178: #{up_merge_forward.2} parent=113 // pred_region
          _
        $region179: #{up_merge_forward.2} parent=113 // pred_fallthru
          _
      $region114: #{up_merge_forward.2} parent=5 // pred_fallthru
        _
      %p3149 = scmp.le.s32.totalorder 2, %s13
      // Predicated region
      $region180: #{up_merge_forward.2} parent=5 // pred_check
        %p3150 = pneg %p3149
      $region181: #{up_merge_forward.2} parent=5 // pred_check_branch
        %3152 = sbr.rel (%p3150) target = $region183
      $region182: #{up_merge_forward.2} parent=5 // pred_region
        %s3153 = ssub.s32 %s13, 2
        // Predicated region
        $region184: #{up_merge_forward.2} parent=182 // pred_check
          %p3154 = pneg %p196
        $region185: #{up_merge_forward.2} parent=182 // pred_check_branch
          %3156 = sbr.rel (%p3154) target = $region187
        $region186: #{up_merge_forward.2} parent=182 // pred_region
          %s3157 = sand.u32 %s181, 1
          %s3158 = sand.u32 %s181, 1
          %s3159 = smul.addr %s3158, 12
          %s3160 = scalar_lea.vmem [#allocation4], %s3159
        $region187: #{up_merge_forward.2} parent=182 // pred_fallthru
          _
        // Predicated region
        $region188: #{up_merge_forward.2} parent=182 // pred_check
          %p3161 = pneg %p224
        $region189: #{up_merge_forward.2} parent=182 // pred_check_branch
          %3163 = sbr.rel (%p3161) target = $region191
        $region190: #{up_merge_forward.2} parent=182 // pred_region
          %p3164 = scmp.lt.s32.totalorder %s26, 1
          %s3165 = scalar_select %p3164, %s26, 1
          %p3166 = scmp.lt.s32.totalorder %s27, 7
          %s3167 = scalar_select %p3166, %s27, 7
          %s3168 = smul.addr %s3165, 8
          %s3169 = sadd.s32 %s3167, %s3168
          %s3170 = smul.addr %s3169, 4
          %s3171 = scalar_lea.vmem %s6, %s3170
        $region191: #{up_merge_forward.2} parent=182 // pred_fallthru
          _
      $region183: #{up_merge_forward.2} parent=5 // pred_fallthru
        _
    $region6: #{up_merge_forward.2} parent=1 // loop_footer
      %s17 = sadd.s32 1, %s13
    $region7: #{up_merge_forward.2} parent=1 // loop_footer_branch
      %12 = sbr.rel target = $region3
    $region8: #{up_merge_forward.2} parent=1 // loop_exit
      _

</llo_original>
